<compile_context>
chip_gen: v7x
topology: tpu7x:2x2x1
jax: 0.10.0
libtpu: 0.0.40
codegen_flags: <defaults>
</compile_context>

<pallas_src>
import functools
import math

import jax
import jax.numpy as jnp
from jax import lax
from jax.experimental import pallas as pl
from jax.experimental.pallas import tpu as pltpu


def _round_up(x, m):
    return ((x + m - 1) // m) * m


def _vmem_capacity_bytes():
    """Per-TensorCore VMEM capacity; conservative 64 MiB (v7x) fallback."""
    try:
        return int(pltpu.get_tpu_info().vmem_capacity_bytes)
    except Exception:
        return 64 << 20


def _row_normalize(xf):
    """Row-wise L2 normalize (features on the lane axis); rsqrt -> EUP slot."""
    sumsq = jnp.sum(xf * xf, axis=1, keepdims=True)
    inv_norm = jnp.minimum(lax.rsqrt(sumsq), jnp.float32(1e12))  # ||x|| >= 1e-12
    return xf * inv_norm


def _sin_acos(d):
    """sin(acos(d/10)) = sqrt(1 - (d/10)^2) via an even polynomial.

    |d| <= 1 (dot product of unit vectors), so t = (d/10)^2 <= 0.01 and the
    truncation error of 1 - t/2 - t^2/8 is < 1e-7.  Avoids the EUP sqrt in the
    EUP-bound epilogue; the extra multiplies land on the 4-wide VALU.
    """
    t = jnp.float32(0.01) * d * d
    return jnp.float32(1.0) - jnp.float32(0.5) * t - jnp.float32(0.125) * (t * t)


def _fast_div(num, denom):
    """num / denom via EUP approx reciprocal + one Newton step (~f32 accurate)."""
    inv = pl.reciprocal(denom, approx=True)
    inv = inv * (jnp.float32(2.0) - denom * inv)
    return num * inv


# --------------------------------------------------------------------------- #
# Kernels
# --------------------------------------------------------------------------- #
def _arcsoftmax_resident_kernel(x_ref, w_ref, out_ref, *, s, s_cos_m, s10_sin_m,
                                mxu_dtype):
    """One batch tile against the full VMEM-resident class extent.

    x_ref (block_b, F): raw features, row-normalized in-kernel.
    w_ref (F, C):       pre-normalized weight columns (hoisted to the wrapper).
    """
    x_n = _row_normalize(x_ref[...].astype(jnp.float32)).astype(mxu_dtype)
    d = jnp.dot(x_n, w_ref[...], preferred_element_type=jnp.float32)  # = 10*cosa

    e_cos = jnp.exp(jnp.float32(s) * d)                    # exp(s * cosa * 10)
    e_margin = jnp.exp(jnp.float32(s_cos_m) * d
                       - jnp.float32(s10_sin_m) * _sin_acos(d))  # exp(s*cos(a+m)*10)

    denom = jnp.sum(e_cos, axis=1, keepdims=True) - e_cos + e_margin
    out_ref[...] = _fast_div(e_margin, denom).astype(out_ref.dtype)


def _arcsoftmax_tiled_kernel(x_ref, w_ref, num_ref, adj_ref, rowsum_ref, xn_ref,
                             *, s, s_cos_m, s10_sin_m, block_c, valid_c,
                             mask_classes):
    """Class-tiled pass 1: grid (batch_tiles, class_tiles), class axis last.

    Stages num = e_margin and adj = e_margin - e_cos to HBM and accumulates the
    per-row sum of e_cos across class tiles in a resident (block_b, 1) output.
    """
    j = pl.program_id(1)

    @pl.when(j == 0)
    def _():
        # New batch tile: normalize x once (reused for every class tile) and
        # reset the denominator row-sum accumulator.
        xn_ref[...] = _row_normalize(
            x_ref[...].astype(jnp.float32)).astype(xn_ref.dtype)
        rowsum_ref[...] = jnp.zeros_like(rowsum_ref)

    d = jnp.dot(xn_ref[...], w_ref[...], preferred_element_type=jnp.float32)
    e_cos = jnp.exp(jnp.float32(s) * d)
    e_margin = jnp.exp(jnp.float32(s_cos_m) * d
                       - jnp.float32(s10_sin_m) * _sin_acos(d))

    if mask_classes:
        # Zero-padded weight columns give d == 0 -> e_cos == 1: keep them out
        # of the denominator row-sum.
        col = j * block_c + lax.broadcasted_iota(jnp.int32, e_cos.shape, 1)
        rowsum_ref[...] += jnp.sum(
            jnp.where(col < valid_c, e_cos, jnp.float32(0.0)),
            axis=1, keepdims=True)
    else:
        rowsum_ref[...] += jnp.sum(e_cos, axis=1, keepdims=True)

    num_ref[...] = e_margin
    adj_ref[...] = e_margin - e_cos


def _arcsoftmax_finalize_kernel(num_ref, adj_ref, rowsum_ref, out_ref):
    """Class-tiled pass 2: out = num / (rowsum + adj), elementwise."""
    denom = rowsum_ref[...] + adj_ref[...]
    out_ref[...] = _fast_div(num_ref[...], denom).astype(out_ref.dtype)


# --------------------------------------------------------------------------- #
# Wrappers
# --------------------------------------------------------------------------- #
def _arcsoftmax_resident(x, w_norm, s, s_cos_m, s10_sin_m, block_b, out_dtype,
                         vmem_cap, est):
    B, F = x.shape
    C = w_norm.shape[1]
    B_pad = _round_up(B, block_b)
    x_pad = jnp.pad(x, ((0, B_pad - B), (0, 0))) if B_pad != B else x
    grid = (B_pad // block_b,)

    kernel = functools.partial(_arcsoftmax_resident_kernel, s=s, s_cos_m=s_cos_m,
                               s10_sin_m=s10_sin_m, mxu_dtype=w_norm.dtype)
    params = pltpu.CompilerParams(
        dimension_semantics=("parallel",),            # batch tiles -> both TCs
        vmem_limit_bytes=int(min(max(est + (4 << 20), 32 << 20), vmem_cap)))

    def call(w_spec):
        return pl.pallas_call(
            kernel,
            out_shape=jax.ShapeDtypeStruct((B_pad, C), out_dtype),
            grid=grid,
            in_specs=[pl.BlockSpec((block_b, F), lambda i: (i, 0)), w_spec],
            out_specs=pl.BlockSpec((block_b, C), lambda i: (i, 0)),
            compiler_params=params,
        )(x_pad, w_norm)

    try:
        # w_norm's block index never changes -> single-buffer it; the default
        # second pipeline buffer would double the dominant VMEM term.
        out = call(pl.BlockSpec((F, C), lambda i: (0, 0),
                                pipeline_mode=pl.Buffered(1)))
    except Exception:
        # Fallback for JAX versions without pipeline_mode / Buffered(1).
        out = call(pl.BlockSpec((F, C), lambda i: (0, 0)))

    return out[:B] if B_pad != B else out


def _arcsoftmax_class_tiled(x, w_norm, s, s_cos_m, s10_sin_m, block_b, block_c,
                            out_dtype, vmem_cap, est):
    B, F = x.shape
    C = w_norm.shape[1]
    B_pad = _round_up(B, block_b)
    C_pad = _round_up(C, block_c)
    x_pad = jnp.pad(x, ((0, B_pad - B), (0, 0))) if B_pad != B else x
    w_pad = jnp.pad(w_norm, ((0, 0), (0, C_pad - C))) if C_pad != C else w_norm
    nb, nc = B_pad // block_b, C_pad // block_c

    kernel = functools.partial(
        _arcsoftmax_tiled_kernel, s=s, s_cos_m=s_cos_m, s10_sin_m=s10_sin_m,
        block_c=block_c, valid_c=C, mask_classes=(C_pad != C))

    # Pass 1: matmul + exp per class tile; accumulate the denominator row-sum
    # across the ("arbitrary", last) class axis; stage num / adj to HBM in f32.
    # TODO(synk): stage num/adj in bf16 to halve intermediate HBM traffic once
    # the downstream accuracy budget allows it.
    num, adj, rowsum = pl.pallas_call(
        kernel,
        out_shape=(jax.ShapeDtypeStruct((B_pad, C_pad), jnp.float32),
                   jax.ShapeDtypeStruct((B_pad, C_pad), jnp.float32),
                   jax.ShapeDtypeStruct((B_pad, 1), jnp.float32)),
        grid=(nb, nc),
        in_specs=[pl.BlockSpec((block_b, F), lambda i, j: (i, 0)),
                  pl.BlockSpec((F, block_c), lambda i, j: (0, j))],
        out_specs=(pl.BlockSpec((block_b, block_c), lambda i, j: (i, j)),
                   pl.BlockSpec((block_b, block_c), lambda i, j: (i, j)),
                   pl.BlockSpec((block_b, 1), lambda i, j: (i, 0))),
        scratch_shapes=[pltpu.VMEM((block_b, F), w_norm.dtype)],
        compiler_params=pltpu.CompilerParams(
            dimension_semantics=("parallel", "arbitrary"),
            vmem_limit_bytes=int(min(max(est + (4 << 20), 32 << 20), vmem_cap))),
    )(x_pad, w_pad)

    # Pass 2: cheap elementwise divide by the completed row denominator.
    fin_est = (2 * block_b * block_c * (4 + 4 + jnp.dtype(out_dtype).itemsize)
               + 2 * block_b * 4 + 4 * block_b * block_c * 4)
    out = pl.pallas_call(
        _arcsoftmax_finalize_kernel,
        out_shape=jax.ShapeDtypeStruct((B_pad, C_pad), out_dtype),
        grid=(nb, nc),
        in_specs=[pl.BlockSpec((block_b, block_c), lambda i, j: (i, j)),
                  pl.BlockSpec((block_b, block_c), lambda i, j: (i, j)),
                  pl.BlockSpec((block_b, 1), lambda i, j: (i, 0))],
        out_specs=pl.BlockSpec((block_b, block_c), lambda i, j: (i, j)),
        compiler_params=pltpu.CompilerParams(
            dimension_semantics=("parallel", "parallel"),
            vmem_limit_bytes=int(min(max(fin_est + (4 << 20), 32 << 20),
                                     vmem_cap))),
    )(num, adj, rowsum)

    if B_pad != B or C_pad != C:
        out = out[:B, :C]
    return out


def arcsoftmax(x, w, s, m, *, block_b=128, block_c=512, out_dtype=None,
               mxu_bf16=False, force_class_tiled=False):
    """ArcFace margin softmax forward.  x: (B, F), w: (F, C), s/m: static scalars.

    out_dtype: output dtype (default x.dtype).  bf16 halves the (B, C) HBM
      writeback -> recommended on v5e/v6e when downstream tolerates it.
    mxu_bf16:  cast the matmul operands to bf16 (f32 accumulation).  Recovers
      full MXU rate for f32 inputs on v5e, at ~1e-3 accuracy.
    """
    B, F = x.shape
    F2, C = w.shape
    assert F == F2, (F, F2)
    out_dtype = x.dtype if out_dtype is None else jnp.dtype(out_dtype)
    mxu_dtype = jnp.dtype(jnp.bfloat16) if mxu_bf16 else x.dtype

    # Static hyperparameters baked in as closure constants (the reference's /10
    # and *10 are folded into them); one recompile per (s, m) pair.
    s = float(s)
    m = float(m)
    s_cos_m = s * math.cos(m)
    s10_sin_m = 10.0 * s * math.sin(m)

    # Column-wise weight normalization hoisted out of the kernel: identical for
    # every batch tile (and across calls for a fixed w).
    wf = w.astype(jnp.float32)
    w_inv = jnp.minimum(lax.rsqrt(jnp.sum(wf * wf, axis=0, keepdims=True)),
                        jnp.float32(1e12))
    w_norm = (wf * w_inv).astype(mxu_dtype)

    # ---- batch tiling: fixed multiple-of-8 tiles; zero-pad the tail ----------
    block_b = max(8, _round_up(int(block_b), 8))
    block_b = min(block_b, _round_up(B, 8))
    # Prefer >= 2 batch tiles (each still >= 64 rows) so ("parallel",) actually
    # engages both TensorCores on v7x.
    while _round_up(B, block_b) // block_b < 2 and block_b >= 128:
        block_b //= 2

    # ---- VMEM budgeting against the actual device ----------------------------
    # On v7x the resident w_norm is replicated into *each* core's 64 MiB VMEM,
    # so the budget below is per TensorCore.
    vmem_cap = _vmem_capacity_bytes()
    budget = int(0.70 * vmem_cap)        # headroom for Mosaic-internal scratch
    x_b = jnp.dtype(x.dtype).itemsize
    w_b = jnp.dtype(mxu_dtype).itemsize
    o_b = jnp.dtype(out_dtype).itemsize

    def resident_est(bb):
        return (F * C * w_b              # w_norm, single-buffered
                + 2 * bb * F * x_b       # double-buffered x tile
                + 2 * bb * C * o_b       # double-buffered out tile
                + 2 * bb * F * 4         # f32 xf / x_n temporaries
                + 8 * bb * C * 4)        # live f32 temps (d, e_cos, e_margin, ...)

    def tiled_est(bb, bc):
        return (2 * F * bc * w_b                  # double-buffered w tile
                + 2 * bb * F * x_b + bb * F * w_b # x tiles + x_n scratch
                + 2 * 2 * bb * bc * 4             # double-buffered num/adj tiles
                + 2 * bb * 4                      # resident row-sum accumulator
                + 8 * bb * bc * 4)                # live f32 temps

    use_resident = not force_class_tiled
    if use_resident:
        bb = block_b
        while resident_est(bb) > budget and bb > 8:
            bb = max(8, _round_up(bb // 2, 8))
        use_resident = resident_est(bb) <= budget
        if use_resident:
            block_b = bb

    if use_resident:
        return _arcsoftmax_resident(x, w_norm, s, s_cos_m, s10_sin_m, block_b,
                                    out_dtype, vmem_cap, resident_est(block_b))

    # Large cls_num (or forced): class-tiled two-pass path.
    block_c = max(128, _round_up(int(block_c), 128))
    block_c = min(block_c, _round_up(C, 128))
    while tiled_est(block_b, block_c) > budget and block_c > 128:
        block_c = max(128, _round_up(block_c // 2, 128))
    while tiled_est(block_b, block_c) > budget and block_b > 8:
        block_b = max(8, _round_up(block_b // 2, 8))
    return _arcsoftmax_class_tiled(x, w_norm, s, s_cos_m, s10_sin_m, block_b,
                                   block_c, out_dtype, vmem_cap,
                                   tiled_est(block_b, block_c))


def arcsoftmax_ref(x, w, s, m):
    """Pure-JAX reference mirroring the PyTorch module exactly."""
    x = x.astype(jnp.float32)
    w = w.astype(jnp.float32)
    x_norm = x / jnp.maximum(jnp.linalg.norm(x, axis=1, keepdims=True), 1e-12)
    w_norm = w / jnp.maximum(jnp.linalg.norm(w, axis=0, keepdims=True), 1e-12)
    cosa = jnp.matmul(x_norm, w_norm) / 10.0
    a = jnp.arccos(cosa)
    e_margin = jnp.exp(s * jnp.cos(a + m) * 10.0)
    e_cos = jnp.exp(s * cosa * 10.0)
    return e_margin / (jnp.sum(e_cos, axis=1, keepdims=True) - e_cos + e_margin)


if __name__ == "__main__":
    key = jax.random.PRNGKey(0)
    kx, kw = jax.random.split(key)
    # Small, module-consistent shapes: batch=256, feature_num=128, cls_num=512.
    # 256 rows -> two 128-row batch tiles (pipelined + megacore-shardable).
    batch, feature_num, cls_num = 256, 128, 512

    x = jax.random.normal(kx, (batch, feature_num), dtype=jnp.float32)
    # Deterministic stand-in for nn.Parameter(torch.randn((feature_num, cls_num))).
    w = jax.random.normal(kw, (feature_num, cls_num), dtype=jnp.float32)
    s, m = 1.0, 0.5

    ref = arcsoftmax_ref(x, w, s, m)

    # Path 1: resident-weight kernel (w_norm comfortably fits VMEM here).
    out = arcsoftmax(x, w, s, m, block_b=128)
    jax.block_until_ready(out)
    assert out.shape == (batch, cls_num)
    err = jnp.max(jnp.abs(out - ref))
    assert jnp.allclose(out, ref, rtol=1e-4, atol=1e-5), (
        f"resident path mismatch vs reference, max abs err = {err}")

    # Path 2: class-tiled two-pass kernel (the large-cls_num route), forced at
    # these small shapes to exercise it end-to-end.
    out_t = arcsoftmax(x, w, s, m, block_b=128, block_c=128,
                       force_class_tiled=True)
    jax.block_until_ready(out_t)
    err_t = jnp.max(jnp.abs(out_t - ref))
    assert jnp.allclose(out_t, ref, rtol=1e-4, atol=1e-5), (
        f"class-tiled path mismatch vs reference, max abs err = {err_t}")

    print("KERNEL_OK")
</pallas_src>

<mosaic_0001>
module attributes {stable_mosaic.version = 11 : i64} {
  func.func @_arcsoftmax_resident_kernel(%arg0: i32, %arg1: memref<128x128xf32, #tpu.memory_space<vmem>>, %arg2: memref<128x512xf32, #tpu.memory_space<vmem>>, %arg3: memref<128x512xf32, #tpu.memory_space<vmem>>) attributes {dimension_semantics = [#tpu.dimension_semantics<parallel>], iteration_bounds = array<i64: 2>, scalar_prefetch = 0 : i64, scratch_operands = 0 : i64, tpu.core_type = #tpu.core_type<tc>, window_params = [{transform_indices = @transform_0, window_bounds = array<i64: 128, 128>}, {pipeline_mode = #tpu.pipeline_mode<synchronous>, transform_indices = @transform_1, window_bounds = array<i64: 128, 512>}, {transform_indices = @transform_2, window_bounds = array<i64: 128, 512>}]} {
    %c0 = arith.constant 0 : index
    %c0_0 = arith.constant 0 : index
    %0 = vector.load %arg1[%c0, %c0_0] : memref<128x128xf32, #tpu.memory_space<vmem>>, vector<128x128xf32>
    %1 = arith.mulf %0, %0 : vector<128x128xf32>
    %cst = arith.constant dense<0.000000e+00> : vector<128xf32>
    %2 = vector.multi_reduction <add>, %1, %cst [1] : vector<128x128xf32> to vector<128xf32>
    %3 = vector.shape_cast %2 : vector<128xf32> to vector<128x1xf32>
    %4 = math.rsqrt %3 : vector<128x1xf32>
    %cst_1 = arith.constant 9.99999995E+11 : f32
    %5 = vector.broadcast %cst_1 : f32 to vector<128x1xf32>
    %6 = arith.minimumf %4, %5 : vector<128x1xf32>
    %7 = vector.broadcast %6 : vector<128x1xf32> to vector<128x128xf32>
    %8 = arith.mulf %0, %7 : vector<128x128xf32>
    %c0_2 = arith.constant 0 : index
    %c0_3 = arith.constant 0 : index
    %9 = vector.load %arg2[%c0_2, %c0_3] : memref<128x512xf32, #tpu.memory_space<vmem>>, vector<128x512xf32>
    %cst_4 = arith.constant dense<0.000000e+00> : vector<128x512xf32>
    %10 = tpu.matmul %8, %9, %cst_4 {dimension_numbers = #tpu.dot_dimension_numbers<[1], [0], [0], [1], [0, 0, 1, 1], [], []>} : vector<128x128xf32>, vector<128x512xf32>, vector<128x512xf32> -> vector<128x512xf32>
    %cst_5 = arith.constant 1.000000e+00 : f32
    %11 = vector.broadcast %cst_5 : f32 to vector<128x512xf32>
    %12 = arith.mulf %11, %10 : vector<128x512xf32>
    %13 = math.exp %12 : vector<128x512xf32>
    %cst_6 = arith.constant 0.87758255 : f32
    %14 = vector.broadcast %cst_6 : f32 to vector<128x512xf32>
    %15 = arith.mulf %14, %10 : vector<128x512xf32>
    %cst_7 = arith.constant 0.00999999977 : f32
    %16 = vector.broadcast %cst_7 : f32 to vector<128x512xf32>
    %17 = arith.mulf %16, %10 : vector<128x512xf32>
    %18 = arith.mulf %17, %10 : vector<128x512xf32>
    %cst_8 = arith.constant 5.000000e-01 : f32
    %19 = vector.broadcast %cst_8 : f32 to vector<128x512xf32>
    %20 = arith.mulf %19, %18 : vector<128x512xf32>
    %cst_9 = arith.constant 1.000000e+00 : f32
    %21 = vector.broadcast %cst_9 : f32 to vector<128x512xf32>
    %22 = arith.subf %21, %20 : vector<128x512xf32>
    %23 = arith.mulf %18, %18 : vector<128x512xf32>
    %cst_10 = arith.constant 1.250000e-01 : f32
    %24 = vector.broadcast %cst_10 : f32 to vector<128x512xf32>
    %25 = arith.mulf %24, %23 : vector<128x512xf32>
    %26 = arith.subf %22, %25 : vector<128x512xf32>
    %cst_11 = arith.constant 4.79425526 : f32
    %27 = vector.broadcast %cst_11 : f32 to vector<128x512xf32>
    %28 = arith.mulf %27, %26 : vector<128x512xf32>
    %29 = arith.subf %15, %28 : vector<128x512xf32>
    %30 = math.exp %29 : vector<128x512xf32>
    %cst_12 = arith.constant dense<0.000000e+00> : vector<128xf32>
    %31 = vector.multi_reduction <add>, %13, %cst_12 [1] : vector<128x512xf32> to vector<128xf32>
    %32 = vector.shape_cast %31 : vector<128xf32> to vector<128x1xf32>
    %33 = vector.broadcast %32 : vector<128x1xf32> to vector<128x512xf32>
    %34 = arith.subf %33, %13 : vector<128x512xf32>
    %35 = arith.addf %34, %30 : vector<128x512xf32>
    %36 = tpu.reciprocal %35 {approx = true} : vector<128x512xf32> -> vector<128x512xf32>
    %37 = arith.mulf %35, %36 : vector<128x512xf32>
    %cst_13 = arith.constant 2.000000e+00 : f32
    %38 = vector.broadcast %cst_13 : f32 to vector<128x512xf32>
    %39 = arith.subf %38, %37 : vector<128x512xf32>
    %40 = arith.mulf %36, %39 : vector<128x512xf32>
    %41 = arith.mulf %30, %40 : vector<128x512xf32>
    %c0_14 = arith.constant 0 : index
    %c0_15 = arith.constant 0 : index
    %42 = vector.load %arg3[%c0_14, %c0_15] : memref<128x512xf32, #tpu.memory_space<vmem>>, vector<128x512xf32>
    tpu.vector_store %arg3[%c0_14, %c0_15], %41 {strides = array<i32>} : memref<128x512xf32, #tpu.memory_space<vmem>>, vector<128x512xf32>,
    return
  }
  func.func @transform_0(%arg0: i32) -> (i32, i32) {
    %c0_i32 = arith.constant 0 : i32
    %c0_i32_0 = arith.constant 0 : i32
    return %arg0, %c0_i32 : i32, i32
  }
  func.func @transform_1(%arg0: i32) -> (i32, i32) {
    %c0_i32 = arith.constant 0 : i32
    %c0_i32_0 = arith.constant 0 : i32
    %c0_i32_1 = arith.constant 0 : i32
    return %c0_i32, %c0_i32_0 : i32, i32
  }
  func.func @transform_2(%arg0: i32) -> (i32, i32) {
    %c0_i32 = arith.constant 0 : i32
    %c0_i32_0 = arith.constant 0 : i32
    return %arg0, %c0_i32 : i32, i32
  }
}

module attributes {stable_mosaic.version = 11 : i64} {
  func.func @_arcsoftmax_resident_kernel(%arg0: i32, %arg1: memref<128x128xf32, #tpu.memory_space<vmem>>, %arg2: memref<128x512xf32, #tpu.memory_space<vmem>>, %arg3: memref<128x512xf32, #tpu.memory_space<vmem>>) attributes {dimension_semantics = [#tpu.dimension_semantics<parallel>], iteration_bounds = array<i64: 2>, scalar_prefetch = 0 : i64, scratch_operands = 0 : i64, tpu.core_type = #tpu.core_type<tc>, window_params = [{transform_indices = @transform_0, window_bounds = array<i64: 128, 128>}, {pipeline_mode = #tpu.pipeline_mode<synchronous>, transform_indices = @transform_1, window_bounds = array<i64: 128, 512>}, {transform_indices = @transform_2, window_bounds = array<i64: 128, 512>}]} {
    %c0 = arith.constant 0 : index
    %c0_0 = arith.constant 0 : index
    %0 = vector.load %arg1[%c0, %c0_0] : memref<128x128xf32, #tpu.memory_space<vmem>>, vector<128x128xf32>
    %1 = arith.mulf %0, %0 : vector<128x128xf32>
    %cst = arith.constant dense<0.000000e+00> : vector<128xf32>
    %2 = vector.multi_reduction <add>, %1, %cst [1] : vector<128x128xf32> to vector<128xf32>
    %3 = vector.shape_cast %2 : vector<128xf32> to vector<128x1xf32>
    %4 = math.rsqrt %3 : vector<128x1xf32>
    %cst_1 = arith.constant 9.99999995E+11 : f32
    %5 = vector.broadcast %cst_1 : f32 to vector<128x1xf32>
    %6 = arith.minimumf %4, %5 : vector<128x1xf32>
    %7 = vector.broadcast %6 : vector<128x1xf32> to vector<128x128xf32>
    %8 = arith.mulf %0, %7 : vector<128x128xf32>
    %c0_2 = arith.constant 0 : index
    %c0_3 = arith.constant 0 : index
    %9 = vector.load %arg2[%c0_2, %c0_3] : memref<128x512xf32, #tpu.memory_space<vmem>>, vector<128x512xf32>
    %cst_4 = arith.constant dense<0.000000e+00> : vector<128x512xf32>
    %10 = tpu.matmul %8, %9, %cst_4 {dimension_numbers = #tpu.dot_dimension_numbers<[1], [0], [0], [1], [0, 0, 1, 1], [], []>} : vector<128x128xf32>, vector<128x512xf32>, vector<128x512xf32> -> vector<128x512xf32>
    %cst_5 = arith.constant 1.000000e+00 : f32
    %11 = vector.broadcast %cst_5 : f32 to vector<128x512xf32>
    %12 = arith.mulf %11, %10 : vector<128x512xf32>
    %13 = math.exp %12 : vector<128x512xf32>
    %cst_6 = arith.constant 0.87758255 : f32
    %14 = vector.broadcast %cst_6 : f32 to vector<128x512xf32>
    %15 = arith.mulf %14, %10 : vector<128x512xf32>
    %cst_7 = arith.constant 0.00999999977 : f32
    %16 = vector.broadcast %cst_7 : f32 to vector<128x512xf32>
    %17 = arith.mulf %16, %10 : vector<128x512xf32>
    %18 = arith.mulf %17, %10 : vector<128x512xf32>
    %cst_8 = arith.constant 5.000000e-01 : f32
    %19 = vector.broadcast %cst_8 : f32 to vector<128x512xf32>
    %20 = arith.mulf %19, %18 : vector<128x512xf32>
    %cst_9 = arith.constant 1.000000e+00 : f32
    %21 = vector.broadcast %cst_9 : f32 to vector<128x512xf32>
    %22 = arith.subf %21, %20 : vector<128x512xf32>
    %23 = arith.mulf %18, %18 : vector<128x512xf32>
    %cst_10 = arith.constant 1.250000e-01 : f32
    %24 = vector.broadcast %cst_10 : f32 to vector<128x512xf32>
    %25 = arith.mulf %24, %23 : vector<128x512xf32>
    %26 = arith.subf %22, %25 : vector<128x512xf32>
    %cst_11 = arith.constant 4.79425526 : f32
    %27 = vector.broadcast %cst_11 : f32 to vector<128x512xf32>
    %28 = arith.mulf %27, %26 : vector<128x512xf32>
    %29 = arith.subf %15, %28 : vector<128x512xf32>
    %30 = math.exp %29 : vector<128x512xf32>
    %cst_12 = arith.constant dense<0.000000e+00> : vector<128xf32>
    %31 = vector.multi_reduction <add>, %13, %cst_12 [1] : vector<128x512xf32> to vector<128xf32>
    %32 = vector.shape_cast %31 : vector<128xf32> to vector<128x1xf32>
    %33 = vector.broadcast %32 : vector<128x1xf32> to vector<128x512xf32>
    %34 = arith.subf %33, %13 : vector<128x512xf32>
    %35 = arith.addf %34, %30 : vector<128x512xf32>
    %36 = tpu.reciprocal %35 {approx = true} : vector<128x512xf32> -> vector<128x512xf32>
    %37 = arith.mulf %35, %36 : vector<128x512xf32>
    %cst_13 = arith.constant 2.000000e+00 : f32
    %38 = vector.broadcast %cst_13 : f32 to vector<128x512xf32>
    %39 = arith.subf %38, %37 : vector<128x512xf32>
    %40 = arith.mulf %36, %39 : vector<128x512xf32>
    %41 = arith.mulf %30, %40 : vector<128x512xf32>
    %c0_14 = arith.constant 0 : index
    %c0_15 = arith.constant 0 : index
    %42 = vector.load %arg3[%c0_14, %c0_15] : memref<128x512xf32, #tpu.memory_space<vmem>>, vector<128x512xf32>
    tpu.vector_store %arg3[%c0_14, %c0_15], %41 {strides = array<i32>} : memref<128x512xf32, #tpu.memory_space<vmem>>, vector<128x512xf32>,
    return
  }
  func.func @transform_0(%arg0: i32) -> (i32, i32) {
    %c0_i32 = arith.constant 0 : i32
    %c0_i32_0 = arith.constant 0 : i32
    return %arg0, %c0_i32 : i32, i32
  }
  func.func @transform_1(%arg0: i32) -> (i32, i32) {
    %c0_i32 = arith.constant 0 : i32
    %c0_i32_0 = arith.constant 0 : i32
    %c0_i32_1 = arith.constant 0 : i32
    return %c0_i32, %c0_i32_0 : i32, i32
  }
  func.func @transform_2(%arg0: i32) -> (i32, i32) {
    %c0_i32 = arith.constant 0 : i32
    %c0_i32_0 = arith.constant 0 : i32
    return %arg0, %c0_i32 : i32, i32
  }
}

</mosaic_0001>

<llo_original>
// kernel: tpu_custom_call.1
$region0: #{tpu_custom_call.1}
  #allocation0 [shape = 'u32[]', space=smem, size = 0x4, offset = 0x4, fixed_abs, tag = 'smem constant byte address 0x4 - core index']
  #allocation1 [shape = 'u32[144,128]{1,0:T(1,128)}', space=vmem, size = 0x12000, scoped, tag = 'internal scratch']
  %s0 = inlined_call_operand.hbm [shape: f32[256,128], index: 0, kind: input, shape index: {}]
  %s1 = inlined_call_operand.hbm [shape: f32[128,512], index: 1, kind: input, shape index: {}]
  %s2 = inlined_call_operand.hbm [shape: f32[256,512], index: 2, kind: output, shape index: {}]
  %s3 = sld [smem:[#allocation0]]
  $region49: #{tpu_custom_call.1} parent=0
    _
  %s5 = ssub.s32 1, %s3
  %s6 = scalar_select 0, %s5, %s3
  $region1: #{tpu_custom_call.1} parent=0
    #allocation2 [shape = 'u8[131072]{0}', space=vmem, size = 0x20000, scoped, tag = 'input window, operand 0']
    #allocation3 [shape = 's32[2]{0}', space=sflag, size = 0x8, scoped, tag = 'scoped memory for tpu_custom_call.1']
    #allocation4 [shape = 's32[2]{0}', space=sflag, size = 0x8, scoped, tag = 'scoped memory for tpu_custom_call.1']
    #allocation5 [shape = 'u8[262144]{0}', space=vmem, size = 0x40000, scoped, tag = 'input window, operand 1, single buffered']
    #allocation6 [shape = 's32[1]{0}', space=sflag, size = 0x4, scoped, tag = 'scoped memory for tpu_custom_call.1']
    #allocation7 [shape = 'u8[524288]{0}', space=vmem, size = 0x80000, scoped, tag = 'output window, operand 0']
    %7 = vsyncpa [#allocation3], 0
    %s8 = scalar_lea.sflag [#allocation3], 1
    %9 = vsyncpa %s8, 0
    %10 = vsyncpa [#allocation6], 0
    %11 = vsyncpa [#allocation4], 0
    %s12 = scalar_lea.sflag [#allocation4], 1
    %13 = vsyncpa %s12, 0
    loop: start=0, step=1, limit=4
    $region2: #{tpu_custom_call.1} parent=1 // loop_pre_header
      _
    $region3: #{tpu_custom_call.1} parent=1 // loop_header
      %s15 = sphi 0, %s19
      %p16 = scmp.ge.s32.totalorder %s15, 4
      %s25 = sphi 0, %s27
      %s28 = sphi 0, %s25
      %s29 = sphi 0, %s28
      %s45 = sphi 0, %s29
      %s49 = sphi 0, %s49
      %s51 = sphi 0, %s49
      %s52 = sphi 0, %s51
      %s66 = sphi 0, %s52
      %s72 = sphi 0, %s74
      %s75 = sphi 0, %s72
      %s76 = sphi 0, %s75
      %s92 = sphi 0, %s76
    $region4: #{tpu_custom_call.1} parent=1 // loop_header_branch
      %18 = sbr.rel (%p16) target = $region8
    $region5: #{tpu_custom_call.1} parent=1 // loop_body
      %s20 = ssub.s32 %s15, 1
      %s21 = ssub.s32 %s15, 2
      %s22 = sadd.s32 %s15, 1
      %s23 = ssub.s32 %s15, %s22
      %p24 = scmp.eq.s32.totalorder %s23, 0
      %s26 = sadd.s32 %s25, 1
      %s27 = scalar_select %p24, %s25, %s26
      %p30 = pneg %p24
      %p31 = scmp.eq.s32.totalorder %s15, 1
      %p32 = por %p30, %p31
      %p33 = scmp.ne.s32.totalorder %s25, %s28
      %p34 = scmp.eq.s32.totalorder %s15, 0
      %p35 = por %p33, %p34
      %p36 = scmp.ne.s32.totalorder %s25, %s28
      %p37 = scmp.eq.s32.totalorder %s20, 1
      %p38 = por %p36, %p37
      %p39 = scmp.ne.s32.totalorder %s28, %s29
      %p40 = scmp.eq.s32.totalorder %s20, 0
      %p41 = por %p39, %p40
      %p42 = scmp.ne.s32.totalorder %s28, %s29
      %p43 = scmp.eq.s32.totalorder %s21, 1
      %p44 = por %p42, %p43
      %p46 = scmp.ne.s32.totalorder %s29, %s45
      %p47 = scmp.eq.s32.totalorder %s21, 0
      %p48 = por %p46, %p47
      %s50 = sadd.s32 %s49, 1
      %p53 = scmp.eq.s32.totalorder %s15, 1
      %p54 = scmp.ne.s32.totalorder %s49, %s51
      %p55 = scmp.eq.s32.totalorder %s15, 0
      %p56 = por %p54, %p55
      %p57 = scmp.ne.s32.totalorder %s49, %s51
      %p58 = scmp.eq.s32.totalorder %s20, 1
      %p59 = por %p57, %p58
      %p60 = scmp.ne.s32.totalorder %s51, %s52
      %p61 = scmp.eq.s32.totalorder %s20, 0
      %p62 = por %p60, %p61
      %p63 = scmp.ne.s32.totalorder %s51, %s52
      %p64 = scmp.eq.s32.totalorder %s21, 1
      %p65 = por %p63, %p64
      %p67 = scmp.ne.s32.totalorder %s52, %s66
      %p68 = scmp.eq.s32.totalorder %s21, 0
      %p69 = por %p67, %p68
      %s70 = ssub.s32 %s15, %s22
      %p71 = scmp.eq.s32.totalorder %s70, 0
      %s73 = sadd.s32 %s72, 1
      %s74 = scalar_select %p71, %s72, %s73
      %p77 = pneg %p71
      %p78 = scmp.eq.s32.totalorder %s15, 1
      %p79 = por %p77, %p78
      %p80 = scmp.ne.s32.totalorder %s72, %s75
      %p81 = scmp.eq.s32.totalorder %s15, 0
      %p82 = por %p80, %p81
      %p83 = scmp.ne.s32.totalorder %s72, %s75
      %p84 = scmp.eq.s32.totalorder %s20, 1
      %p85 = por %p83, %p84
      %p86 = scmp.ne.s32.totalorder %s75, %s76
      %p87 = scmp.eq.s32.totalorder %s20, 0
      %p88 = por %p86, %p87
      %p89 = scmp.ne.s32.totalorder %s75, %s76
      %p90 = scmp.eq.s32.totalorder %s21, 1
      %p91 = por %p89, %p90
      %p93 = scmp.ne.s32.totalorder %s76, %s92
      %p94 = scmp.eq.s32.totalorder %s21, 0
      %p95 = por %p93, %p94
      %p96 = scmp.le.s32.totalorder 1, %s15
      %p97 = scmp.lt.s32.totalorder %s15, 3
      %p98 = pnand %p96, %p97
      %p99 = pneg %p98
      // Predicated region
      $region9: #{tpu_custom_call.1} parent=5 // pred_check
        _
      $region10: #{tpu_custom_call.1} parent=5 // pred_check_branch
        %101 = sbr.rel (%p98) target = $region12
      $region11: #{tpu_custom_call.1} parent=5 // pred_region
        %s102 = ssub.s32 %s15, 1
        // Predicated region
        $region13: #{tpu_custom_call.1} parent=11 // pred_check
          %p103 = pneg %p62
        $region14: #{tpu_custom_call.1} parent=11 // pred_check_branch
          %105 = sbr.rel (%p103) target = $region16
        $region15: #{tpu_custom_call.1} parent=11 // pred_region
          %s107 = ssub.s32 8192, 8192
          %108 = vsyncadd [#allocation6], %s107
          %s109 = sshll.u32 [#allocation5], 4
          %s110 = int_to_ptr.vmem [resolvable:$true] %s109
          %115 = dma.hbm_to_vmem [thread:$0]  %s1, 8192, %s110, [#allocation6], 512, 512, 32
        $region16: #{tpu_custom_call.1} parent=11 // pred_fallthru
          _
      $region12: #{tpu_custom_call.1} parent=5 // pred_fallthru
        _
      %p116 = scmp.lt.s32.totalorder %s15, 2
      // Predicated region
      $region17: #{tpu_custom_call.1} parent=5 // pred_check
        %p117 = pneg %p116
      $region18: #{tpu_custom_call.1} parent=5 // pred_check_branch
        %119 = sbr.rel (%p117) target = $region20
      $region19: #{tpu_custom_call.1} parent=5 // pred_region
        // Predicated region
        $region21: #{tpu_custom_call.1} parent=19 // pred_check
          %p120 = pneg %p35
        $region22: #{tpu_custom_call.1} parent=19 // pred_check_branch
          %122 = sbr.rel (%p120) target = $region24
        $region23: #{tpu_custom_call.1} parent=19 // pred_region
          %s123 = sand.u32 %s25, 1
          %s124 = scalar_lea.sflag [#allocation3], %s123
          %s125 = sand.u32 %s25, 1
          %s126 = smul.addr %s125, 128
          %s127 = scalar_lea.vmem [#allocation2], %s126
          %s128 = smul.u32 16, %s15
          %s130 = ssub.s32 2048, 2048
          %131 = vsyncadd %s124, %s130
          %s132 = smul.addr %s128, 128
          %s133 = scalar_lea.hbm %s0, %s132
          %s134 = sshll.u32 %s127, 4
          %s135 = int_to_ptr.vmem [resolvable:$true] %s134
          %140 = dma.hbm_to_vmem [thread:$0]  %s133, 2048, %s135, %s124, 128, 128, 8
        $region24: #{tpu_custom_call.1} parent=19 // pred_fallthru
          _
      $region20: #{tpu_custom_call.1} parent=5 // pred_fallthru
        _
      %p141 = scmp.le.s32.totalorder 1, %s15
      %p142 = scmp.lt.s32.totalorder %s15, 3
      %p143 = pnand %p141, %p142
      %p144 = pneg %p143
      // Predicated region
      $region25: #{tpu_custom_call.1} parent=5 // pred_check
        _
      $region26: #{tpu_custom_call.1} parent=5 // pred_check_branch
        %146 = sbr.rel (%p143) target = $region28
      $region27: #{tpu_custom_call.1} parent=5 // pred_region
        %s147 = ssub.s32 %s15, 1
        %s148 = sand.u32 %s28, 1
        %s149 = scalar_lea.sflag [#allocation3], %s148
        %s150 = sand.u32 %s28, 1
        %s151 = smul.addr %s150, 128
        %s152 = scalar_lea.vmem [#allocation2], %s151
        // Predicated region
        $region29: #{tpu_custom_call.1} parent=27 // pred_check
          %p153 = pneg %p41
        $region30: #{tpu_custom_call.1} parent=27 // pred_check_branch
          %155 = sbr.rel (%p153) target = $region32
        $region31: #{tpu_custom_call.1} parent=27 // pred_region
          %156 = dma.done %s149, 2048
        $region32: #{tpu_custom_call.1} parent=27 // pred_fallthru
          _
        // Predicated region
        $region33: #{tpu_custom_call.1} parent=27 // pred_check
          %p157 = pneg %p62
        $region34: #{tpu_custom_call.1} parent=27 // pred_check_branch
          %159 = sbr.rel (%p157) target = $region36
        $region35: #{tpu_custom_call.1} parent=27 // pred_region
          %160 = dma.done [#allocation6], 8192
        $region36: #{tpu_custom_call.1} parent=27 // pred_fallthru
          _
        %s161 = sand.u32 %s28, 1
        %s162 = scalar_lea.sflag [#allocation3], %s161
        %s163 = sand.u32 %s28, 1
        %s164 = smul.addr %s163, 128
        %s165 = scalar_lea.vmem [#allocation2], %s164
        %p166 = pneg %p41
        %p167 = pneg %p38
        %p168 = pneg %p62
        %p169 = pneg %p59
        %p170 = pneg %p88
        %p171 = pneg %p85
        %s172 = sand.u32 %s75, 1
        %s173 = scalar_lea.sflag [#allocation4], %s172
        %s174 = sand.u32 %s75, 1
        %s175 = smul.addr %s174, 512
        %s176 = scalar_lea.vmem [#allocation7], %s175
        %s177 = smul.u32 16, %s20
        %s178 = smul.u32 16, %s20
        %v179 = vld [vmem:[%s152] sm:$0xff]
        %v180 = vld [vmem:[%s152 + $0x8] sm:$0xff]
        %v181 = vld [vmem:[%s152 + $0x10] sm:$0xff]
        %v182 = vld [vmem:[%s152 + $0x18] sm:$0xff]
        %v183 = vld [vmem:[%s152 + $0x20] sm:$0xff]
        %v184 = vld [vmem:[%s152 + $0x28] sm:$0xff]
        %v185 = vld [vmem:[%s152 + $0x30] sm:$0xff]
        %v186 = vld [vmem:[%s152 + $0x38] sm:$0xff]
        %v187 = vld [vmem:[%s152 + $0x40] sm:$0xff]
        %v188 = vld [vmem:[%s152 + $0x48] sm:$0xff]
        %v189 = vld [vmem:[%s152 + $0x50] sm:$0xff]
        %v190 = vld [vmem:[%s152 + $0x58] sm:$0xff]
        %v191 = vld [vmem:[%s152 + $0x60] sm:$0xff]
        %v192 = vld [vmem:[%s152 + $0x68] sm:$0xff]
        %v193 = vld [vmem:[%s152 + $0x70] sm:$0xff]
        %v194 = vld [vmem:[%s152 + $0x78] sm:$0xff]
        %v195 = vmul.f32 %v179, %v179
        %v196 = vmul.f32 %v180, %v180
        %v197 = vmul.f32 %v181, %v181
        %v198 = vmul.f32 %v182, %v182
        %v199 = vmul.f32 %v183, %v183
        %v200 = vmul.f32 %v184, %v184
        %v201 = vmul.f32 %v185, %v185
        %v202 = vmul.f32 %v186, %v186
        %v203 = vmul.f32 %v187, %v187
        %v204 = vmul.f32 %v188, %v188
        %v205 = vmul.f32 %v189, %v189
        %v206 = vmul.f32 %v190, %v190
        %v207 = vmul.f32 %v191, %v191
        %v208 = vmul.f32 %v192, %v192
        %v209 = vmul.f32 %v193, %v193
        %v210 = vmul.f32 %v194, %v194
        %211 = vadd.xlane.f32.xlu0 %v195
        %v212 = vpop.xlane.xlu0 %211
        %213 = vadd.xlane.f32.xlu0 %v196
        %v214 = vpop.xlane.xlu0 %213
        %215 = vadd.xlane.f32.xlu0 %v197
        %v216 = vpop.xlane.xlu0 %215
        %217 = vadd.xlane.f32.xlu0 %v198
        %v218 = vpop.xlane.xlu0 %217
        %219 = vadd.xlane.f32.xlu0 %v199
        %v220 = vpop.xlane.xlu0 %219
        %221 = vadd.xlane.f32.xlu0 %v200
        %v222 = vpop.xlane.xlu0 %221
        %223 = vadd.xlane.f32.xlu0 %v201
        %v224 = vpop.xlane.xlu0 %223
        %225 = vadd.xlane.f32.xlu0 %v202
        %v226 = vpop.xlane.xlu0 %225
        %227 = vadd.xlane.f32.xlu0 %v203
        %v228 = vpop.xlane.xlu0 %227
        %229 = vadd.xlane.f32.xlu0 %v204
        %v230 = vpop.xlane.xlu0 %229
        %231 = vadd.xlane.f32.xlu0 %v205
        %v232 = vpop.xlane.xlu0 %231
        %233 = vadd.xlane.f32.xlu0 %v206
        %v234 = vpop.xlane.xlu0 %233
        %235 = vadd.xlane.f32.xlu0 %v207
        %v236 = vpop.xlane.xlu0 %235
        %237 = vadd.xlane.f32.xlu0 %v208
        %v238 = vpop.xlane.xlu0 %237
        %239 = vadd.xlane.f32.xlu0 %v209
        %v240 = vpop.xlane.xlu0 %239
        %241 = vadd.xlane.f32.xlu0 %v210
        %v242 = vpop.xlane.xlu0 %241
        %v243 = vrsqrt.pop %v212
        %v244 = vrsqrt.pop %v214
        %v245 = vrsqrt.pop %v216
        %v246 = vrsqrt.pop %v218
        %v247 = vrsqrt.pop %v220
        %v248 = vrsqrt.pop %v222
        %v249 = vrsqrt.pop %v224
        %v250 = vrsqrt.pop %v226
        %v251 = vrsqrt.pop %v228
        %v252 = vrsqrt.pop %v230
        %v253 = vrsqrt.pop %v232
        %v254 = vrsqrt.pop %v234
        %v255 = vrsqrt.pop %v236
        %v256 = vrsqrt.pop %v238
        %v257 = vrsqrt.pop %v240
        %v258 = vrsqrt.pop %v242
        %v259 = vmin.f32 %v243, 1e+12
        %v260 = vmin.f32 %v244, 1e+12
        %v261 = vmin.f32 %v245, 1e+12
        %v262 = vmin.f32 %v246, 1e+12
        %v263 = vmin.f32 %v247, 1e+12
        %v264 = vmin.f32 %v248, 1e+12
        %v265 = vmin.f32 %v249, 1e+12
        %v266 = vmin.f32 %v250, 1e+12
        %v267 = vmin.f32 %v251, 1e+12
        %v268 = vmin.f32 %v252, 1e+12
        %v269 = vmin.f32 %v253, 1e+12
        %v270 = vmin.f32 %v254, 1e+12
        %v271 = vmin.f32 %v255, 1e+12
        %v272 = vmin.f32 %v256, 1e+12
        %v273 = vmin.f32 %v257, 1e+12
        %v274 = vmin.f32 %v258, 1e+12
        %v275 = vmul.f32 %v179, %v259
        %v276 = vmul.f32 %v180, %v260
        %v277 = vmul.f32 %v181, %v261
        %v278 = vmul.f32 %v182, %v262
        %v279 = vmul.f32 %v183, %v263
        %v280 = vmul.f32 %v184, %v264
        %v281 = vmul.f32 %v185, %v265
        %v282 = vmul.f32 %v186, %v266
        %v283 = vmul.f32 %v187, %v267
        %v284 = vmul.f32 %v188, %v268
        %v285 = vmul.f32 %v189, %v269
        %v286 = vmul.f32 %v190, %v270
        %v287 = vmul.f32 %v191, %v271
        %v288 = vmul.f32 %v192, %v272
        %v289 = vmul.f32 %v193, %v273
        %v290 = vmul.f32 %v194, %v274
        %v291 = vld [vmem:[#allocation5] sm:$0xff]
        %v292 = vld [vmem:[#allocation5 + $0x8] sm:$0xff]
        %v293 = vld [vmem:[#allocation5 + $0x10] sm:$0xff]
        %v294 = vld [vmem:[#allocation5 + $0x18] sm:$0xff]
        %v295 = vld [vmem:[#allocation5 + $0x20] sm:$0xff]
        %v296 = vld [vmem:[#allocation5 + $0x28] sm:$0xff]
        %v297 = vld [vmem:[#allocation5 + $0x30] sm:$0xff]
        %v298 = vld [vmem:[#allocation5 + $0x38] sm:$0xff]
        %v299 = vld [vmem:[#allocation5 + $0x40] sm:$0xff]
        %v300 = vld [vmem:[#allocation5 + $0x48] sm:$0xff]
        %v301 = vld [vmem:[#allocation5 + $0x50] sm:$0xff]
        %v302 = vld [vmem:[#allocation5 + $0x58] sm:$0xff]
        %v303 = vld [vmem:[#allocation5 + $0x60] sm:$0xff]
        %v304 = vld [vmem:[#allocation5 + $0x68] sm:$0xff]
        %v305 = vld [vmem:[#allocation5 + $0x70] sm:$0xff]
        %v306 = vld [vmem:[#allocation5 + $0x78] sm:$0xff]
        %v307 = vld [vmem:[#allocation5 + $0x80] sm:$0xff]
        %v308 = vld [vmem:[#allocation5 + $0x88] sm:$0xff]
        %v309 = vld [vmem:[#allocation5 + $0x90] sm:$0xff]
        %v310 = vld [vmem:[#allocation5 + $0x98] sm:$0xff]
        %v311 = vld [vmem:[#allocation5 + $0xa0] sm:$0xff]
        %v312 = vld [vmem:[#allocation5 + $0xa8] sm:$0xff]
        %v313 = vld [vmem:[#allocation5 + $0xb0] sm:$0xff]
        %v314 = vld [vmem:[#allocation5 + $0xb8] sm:$0xff]
        %v315 = vld [vmem:[#allocation5 + $0xc0] sm:$0xff]
        %v316 = vld [vmem:[#allocation5 + $0xc8] sm:$0xff]
        %v317 = vld [vmem:[#allocation5 + $0xd0] sm:$0xff]
        %v318 = vld [vmem:[#allocation5 + $0xd8] sm:$0xff]
        %v319 = vld [vmem:[#allocation5 + $0xe0] sm:$0xff]
        %v320 = vld [vmem:[#allocation5 + $0xe8] sm:$0xff]
        %v321 = vld [vmem:[#allocation5 + $0xf0] sm:$0xff]
        %v322 = vld [vmem:[#allocation5 + $0xf8] sm:$0xff]
        %v323 = vld [vmem:[#allocation5 + $0x100] sm:$0xff]
        %v324 = vld [vmem:[#allocation5 + $0x108] sm:$0xff]
        %v325 = vld [vmem:[#allocation5 + $0x110] sm:$0xff]
        %v326 = vld [vmem:[#allocation5 + $0x118] sm:$0xff]
        %v327 = vld [vmem:[#allocation5 + $0x120] sm:$0xff]
        %v328 = vld [vmem:[#allocation5 + $0x128] sm:$0xff]
        %v329 = vld [vmem:[#allocation5 + $0x130] sm:$0xff]
        %v330 = vld [vmem:[#allocation5 + $0x138] sm:$0xff]
        %v331 = vld [vmem:[#allocation5 + $0x140] sm:$0xff]
        %v332 = vld [vmem:[#allocation5 + $0x148] sm:$0xff]
        %v333 = vld [vmem:[#allocation5 + $0x150] sm:$0xff]
        %v334 = vld [vmem:[#allocation5 + $0x158] sm:$0xff]
        %v335 = vld [vmem:[#allocation5 + $0x160] sm:$0xff]
        %v336 = vld [vmem:[#allocation5 + $0x168] sm:$0xff]
        %v337 = vld [vmem:[#allocation5 + $0x170] sm:$0xff]
        %v338 = vld [vmem:[#allocation5 + $0x178] sm:$0xff]
        %v339 = vld [vmem:[#allocation5 + $0x180] sm:$0xff]
        %v340 = vld [vmem:[#allocation5 + $0x188] sm:$0xff]
        %v341 = vld [vmem:[#allocation5 + $0x190] sm:$0xff]
        %v342 = vld [vmem:[#allocation5 + $0x198] sm:$0xff]
        %v343 = vld [vmem:[#allocation5 + $0x1a0] sm:$0xff]
        %v344 = vld [vmem:[#allocation5 + $0x1a8] sm:$0xff]
        %v345 = vld [vmem:[#allocation5 + $0x1b0] sm:$0xff]
        %v346 = vld [vmem:[#allocation5 + $0x1b8] sm:$0xff]
        %v347 = vld [vmem:[#allocation5 + $0x1c0] sm:$0xff]
        %v348 = vld [vmem:[#allocation5 + $0x1c8] sm:$0xff]
        %v349 = vld [vmem:[#allocation5 + $0x1d0] sm:$0xff]
        %v350 = vld [vmem:[#allocation5 + $0x1d8] sm:$0xff]
        %v351 = vld [vmem:[#allocation5 + $0x1e0] sm:$0xff]
        %v352 = vld [vmem:[#allocation5 + $0x1e8] sm:$0xff]
        %v353 = vld [vmem:[#allocation5 + $0x1f0] sm:$0xff]
        %v354 = vld [vmem:[#allocation5 + $0x1f8] sm:$0xff]
        %355 = vmatprep.subr.mxu0 %v292
        %356 = vmatpush1.msra.mxu0 %v291
        %357 = vmatprep.subr.mxu0 %v296
        %358 = vmatpush1.msra.mxu0 %v295
        %359 = vmatprep.subr.mxu0 %v300
        %360 = vmatpush1.msra.mxu0 %v299
        %361 = vmatprep.subr.mxu0 %v304
        %362 = vmatpush1.msra.mxu0 %v303
        %363 = vmatprep.subr.mxu0 %v308
        %364 = vmatpush1.msra.mxu0 %v307
        %365 = vmatprep.subr.mxu0 %v312
        %366 = vmatpush1.msra.mxu0 %v311
        %367 = vmatprep.subr.mxu0 %v316
        %368 = vmatpush1.msra.mxu0 %v315
        %369 = vmatprep.subr.mxu0 %v320
        %370 = vmatpush1.msra.mxu0 %v319
        %371 = vmatprep.subr.mxu0 %v324
        %372 = vmatpush1.msra.mxu0 %v323
        %373 = vmatprep.subr.mxu0 %v328
        %374 = vmatpush1.msra.mxu0 %v327
        %375 = vmatprep.subr.mxu0 %v332
        %376 = vmatpush1.msra.mxu0 %v331
        %377 = vmatprep.subr.mxu0 %v336
        %378 = vmatpush1.msra.mxu0 %v335
        %379 = vmatprep.subr.mxu0 %v340
        %380 = vmatpush1.msra.mxu0 %v339
        %381 = vmatprep.subr.mxu0 %v344
        %382 = vmatpush1.msra.mxu0 %v343
        %383 = vmatprep.subr.mxu0 %v348
        %384 = vmatpush1.msra.mxu0 %v347
        %385 = vmatprep.subr.mxu0 %v352
        %386 = vmatpush1.msra.mxu0 %v351
        %387 = vmatprep.subr.mxu0 0.0
        %388 = vmatpush1.msra.mxu0 0.0
        %389 = vmatprep.subr.mxu0 0.0
        %390 = vmatpush1.msra.mxu0 0.0
        %391 = vmatprep.subr.mxu0 0.0
        %392 = vmatpush1.msra.mxu0 0.0
        %393 = vmatprep.subr.mxu0 0.0
        %394 = vmatpush1.msra.mxu0 0.0
        %395 = vmatprep.subr.mxu0 0.0
        %396 = vmatpush1.msra.mxu0 0.0
        %397 = vmatprep.subr.mxu0 0.0
        %398 = vmatpush1.msra.mxu0 0.0
        %399 = vmatprep.subr.mxu0 0.0
        %400 = vmatpush1.msra.mxu0 0.0
        %401 = vmatprep.subr.mxu0 0.0
        %402 = vmatpush1.msra.mxu0 0.0
        %403 = vmatprep.subr.mxu0 0.0
        %404 = vmatpush1.msra.mxu0 0.0
        %405 = vmatprep.subr.mxu0 0.0
        %406 = vmatpush1.msra.mxu0 0.0
        %407 = vmatprep.subr.mxu0 0.0
        %408 = vmatpush1.msra.mxu0 0.0
        %409 = vmatprep.subr.mxu0 0.0
        %410 = vmatpush1.msra.mxu0 0.0
        %411 = vmatprep.subr.mxu0 0.0
        %412 = vmatpush1.msra.mxu0 0.0
        %413 = vmatprep.subr.mxu0 0.0
        %414 = vmatpush1.msra.mxu0 0.0
        %415 = vmatprep.subr.mxu0 0.0
        %416 = vmatpush1.msra.mxu0 0.0
        %417 = vmatprep.subr.mxu0 0.0
        %418 = vmatpush1.msra.mxu0 0.0
        %419 = vmatprep.mubr.f32.mxu0 0.0
        %420 = vmatmul.mubr.f32.gmra.mrb[0].mxu0 %v275
        %v421 = vpop.f32.mrb[0].mxu0
        %v422 = vadd.f32 0.0, %v421
        %v423 = vpop.f32.mrb[0].mxu0
        %v424 = vadd.f32 0.0, %v423
        %425 = vmatprep.mubr.f32.mxu0 0.0
        %426 = vmatmul.mubr.f32.gmra.mrb[0].mxu0 %v276
        %v427 = vpop.f32.mrb[0].mxu0
        %v428 = vadd.f32 0.0, %v427
        %v429 = vpop.f32.mrb[0].mxu0
        %v430 = vadd.f32 0.0, %v429
        %431 = vmatprep.mubr.f32.mxu0 0.0
        %432 = vmatmul.mubr.f32.gmra.mrb[0].mxu0 %v277
        %v433 = vpop.f32.mrb[0].mxu0
        %v434 = vadd.f32 0.0, %v433
        %v435 = vpop.f32.mrb[0].mxu0
        %v436 = vadd.f32 0.0, %v435
        %437 = vmatprep.mubr.f32.mxu0 0.0
        %438 = vmatmul.mubr.f32.gmra.mrb[0].mxu0 %v278
        %v439 = vpop.f32.mrb[0].mxu0
        %v440 = vadd.f32 0.0, %v439
        %v441 = vpop.f32.mrb[0].mxu0
        %v442 = vadd.f32 0.0, %v441
        %443 = vmatprep.mubr.f32.mxu0 0.0
        %444 = vmatmul.mubr.f32.gmra.mrb[0].mxu0 %v279
        %v445 = vpop.f32.mrb[0].mxu0
        %v446 = vadd.f32 0.0, %v445
        %v447 = vpop.f32.mrb[0].mxu0
        %v448 = vadd.f32 0.0, %v447
        %449 = vmatprep.mubr.f32.mxu0 0.0
        %450 = vmatmul.mubr.f32.gmra.mrb[0].mxu0 %v280
        %v451 = vpop.f32.mrb[0].mxu0
        %v452 = vadd.f32 0.0, %v451
        %v453 = vpop.f32.mrb[0].mxu0
        %v454 = vadd.f32 0.0, %v453
        %455 = vmatprep.mubr.f32.mxu0 0.0
        %456 = vmatmul.mubr.f32.gmra.mrb[0].mxu0 %v281
        %v457 = vpop.f32.mrb[0].mxu0
        %v458 = vadd.f32 0.0, %v457
        %v459 = vpop.f32.mrb[0].mxu0
        %v460 = vadd.f32 0.0, %v459
        %461 = vmatprep.mubr.f32.mxu0 0.0
        %462 = vmatmul.mubr.f32.gmra.mrb[0].mxu0 %v282
        %v463 = vpop.f32.mrb[0].mxu0
        %v464 = vadd.f32 0.0, %v463
        %v465 = vpop.f32.mrb[0].mxu0
        %v466 = vadd.f32 0.0, %v465
        %467 = vmatprep.mubr.f32.mxu0 0.0
        %468 = vmatmul.mubr.f32.gmra.mrb[0].mxu0 %v283
        %v469 = vpop.f32.mrb[0].mxu0
        %v470 = vadd.f32 0.0, %v469
        %v471 = vpop.f32.mrb[0].mxu0
        %v472 = vadd.f32 0.0, %v471
        %473 = vmatprep.mubr.f32.mxu0 0.0
        %474 = vmatmul.mubr.f32.gmra.mrb[0].mxu0 %v284
        %v475 = vpop.f32.mrb[0].mxu0
        %v476 = vadd.f32 0.0, %v475
        %v477 = vpop.f32.mrb[0].mxu0
        %v478 = vadd.f32 0.0, %v477
        %479 = vmatprep.mubr.f32.mxu0 0.0
        %480 = vmatmul.mubr.f32.gmra.mrb[0].mxu0 %v285
        %v481 = vpop.f32.mrb[0].mxu0
        %v482 = vadd.f32 0.0, %v481
        %v483 = vpop.f32.mrb[0].mxu0
        %v484 = vadd.f32 0.0, %v483
        %485 = vmatprep.mubr.f32.mxu0 0.0
        %486 = vmatmul.mubr.f32.gmra.mrb[0].mxu0 %v286
        %v487 = vpop.f32.mrb[0].mxu0
        %v488 = vadd.f32 0.0, %v487
        %v489 = vpop.f32.mrb[0].mxu0
        %v490 = vadd.f32 0.0, %v489
        %491 = vmatprep.mubr.f32.mxu0 0.0
        %492 = vmatmul.mubr.f32.gmra.mrb[0].mxu0 %v287
        %v493 = vpop.f32.mrb[0].mxu0
        %v494 = vadd.f32 0.0, %v493
        %v495 = vpop.f32.mrb[0].mxu0
        %v496 = vadd.f32 0.0, %v495
        %497 = vmatprep.mubr.f32.mxu0 0.0
        %498 = vmatmul.mubr.f32.gmra.mrb[0].mxu0 %v288
        %v499 = vpop.f32.mrb[0].mxu0
        %v500 = vadd.f32 0.0, %v499
        %v501 = vpop.f32.mrb[0].mxu0
        %v502 = vadd.f32 0.0, %v501
        %503 = vmatprep.mubr.f32.mxu0 0.0
        %504 = vmatmul.mubr.f32.gmra.mrb[0].mxu0 %v289
        %v505 = vpop.f32.mrb[0].mxu0
        %v506 = vadd.f32 0.0, %v505
        %v507 = vpop.f32.mrb[0].mxu0
        %v508 = vadd.f32 0.0, %v507
        %509 = vmatprep.mubr.f32.mxu0 0.0
        %510 = vmatmul.mubr.f32.gmra.mrb[0].mxu0 %v290
        %v511 = vpop.f32.mrb[0].mxu0
        %v512 = vadd.f32 0.0, %v511
        %v513 = vpop.f32.mrb[0].mxu0
        %v514 = vadd.f32 0.0, %v513
        %515 = vdwg.mxu0
        %516 = vmatprep.subr.mxu0 %v294
        %517 = vmatpush1.msra.mxu0 %v293
        %518 = vmatprep.subr.mxu0 %v298
        %519 = vmatpush1.msra.mxu0 %v297
        %520 = vmatprep.subr.mxu0 %v302
        %521 = vmatpush1.msra.mxu0 %v301
        %522 = vmatprep.subr.mxu0 %v306
        %523 = vmatpush1.msra.mxu0 %v305
        %524 = vmatprep.subr.mxu0 %v310
        %525 = vmatpush1.msra.mxu0 %v309
        %526 = vmatprep.subr.mxu0 %v314
        %527 = vmatpush1.msra.mxu0 %v313
        %528 = vmatprep.subr.mxu0 %v318
        %529 = vmatpush1.msra.mxu0 %v317
        %530 = vmatprep.subr.mxu0 %v322
        %531 = vmatpush1.msra.mxu0 %v321
        %532 = vmatprep.subr.mxu0 %v326
        %533 = vmatpush1.msra.mxu0 %v325
        %534 = vmatprep.subr.mxu0 %v330
        %535 = vmatpush1.msra.mxu0 %v329
        %536 = vmatprep.subr.mxu0 %v334
        %537 = vmatpush1.msra.mxu0 %v333
        %538 = vmatprep.subr.mxu0 %v338
        %539 = vmatpush1.msra.mxu0 %v337
        %540 = vmatprep.subr.mxu0 %v342
        %541 = vmatpush1.msra.mxu0 %v341
        %542 = vmatprep.subr.mxu0 %v346
        %543 = vmatpush1.msra.mxu0 %v345
        %544 = vmatprep.subr.mxu0 %v350
        %545 = vmatpush1.msra.mxu0 %v349
        %546 = vmatprep.subr.mxu0 %v354
        %547 = vmatpush1.msra.mxu0 %v353
        %548 = vmatprep.subr.mxu0 0.0
        %549 = vmatpush1.msra.mxu0 0.0
        %550 = vmatprep.subr.mxu0 0.0
        %551 = vmatpush1.msra.mxu0 0.0
        %552 = vmatprep.subr.mxu0 0.0
        %553 = vmatpush1.msra.mxu0 0.0
        %554 = vmatprep.subr.mxu0 0.0
        %555 = vmatpush1.msra.mxu0 0.0
        %556 = vmatprep.subr.mxu0 0.0
        %557 = vmatpush1.msra.mxu0 0.0
        %558 = vmatprep.subr.mxu0 0.0
        %559 = vmatpush1.msra.mxu0 0.0
        %560 = vmatprep.subr.mxu0 0.0
        %561 = vmatpush1.msra.mxu0 0.0
        %562 = vmatprep.subr.mxu0 0.0
        %563 = vmatpush1.msra.mxu0 0.0
        %564 = vmatprep.subr.mxu0 0.0
        %565 = vmatpush1.msra.mxu0 0.0
        %566 = vmatprep.subr.mxu0 0.0
        %567 = vmatpush1.msra.mxu0 0.0
        %568 = vmatprep.subr.mxu0 0.0
        %569 = vmatpush1.msra.mxu0 0.0
        %570 = vmatprep.subr.mxu0 0.0
        %571 = vmatpush1.msra.mxu0 0.0
        %572 = vmatprep.subr.mxu0 0.0
        %573 = vmatpush1.msra.mxu0 0.0
        %574 = vmatprep.subr.mxu0 0.0
        %575 = vmatpush1.msra.mxu0 0.0
        %576 = vmatprep.subr.mxu0 0.0
        %577 = vmatpush1.msra.mxu0 0.0
        %578 = vmatprep.subr.mxu0 0.0
        %579 = vmatpush1.msra.mxu0 0.0
        %580 = vmatprep.mubr.f32.mxu0 0.0
        %581 = vmatmul.mubr.f32.gmra.mrb[0].mxu0 %v275
        %v582 = vpop.f32.mrb[0].mxu0
        %v583 = vadd.f32 0.0, %v582
        %v584 = vpop.f32.mrb[0].mxu0
        %v585 = vadd.f32 0.0, %v584
        %586 = vmatprep.mubr.f32.mxu0 0.0
        %587 = vmatmul.mubr.f32.gmra.mrb[0].mxu0 %v276
        %v588 = vpop.f32.mrb[0].mxu0
        %v589 = vadd.f32 0.0, %v588
        %v590 = vpop.f32.mrb[0].mxu0
        %v591 = vadd.f32 0.0, %v590
        %592 = vmatprep.mubr.f32.mxu0 0.0
        %593 = vmatmul.mubr.f32.gmra.mrb[0].mxu0 %v277
        %v594 = vpop.f32.mrb[0].mxu0
        %v595 = vadd.f32 0.0, %v594
        %v596 = vpop.f32.mrb[0].mxu0
        %v597 = vadd.f32 0.0, %v596
        %598 = vmatprep.mubr.f32.mxu0 0.0
        %599 = vmatmul.mubr.f32.gmra.mrb[0].mxu0 %v278
        %v600 = vpop.f32.mrb[0].mxu0
        %v601 = vadd.f32 0.0, %v600
        %v602 = vpop.f32.mrb[0].mxu0
        %v603 = vadd.f32 0.0, %v602
        %604 = vmatprep.mubr.f32.mxu0 0.0
        %605 = vmatmul.mubr.f32.gmra.mrb[0].mxu0 %v279
        %v606 = vpop.f32.mrb[0].mxu0
        %v607 = vadd.f32 0.0, %v606
        %v608 = vpop.f32.mrb[0].mxu0
        %v609 = vadd.f32 0.0, %v608
        %610 = vmatprep.mubr.f32.mxu0 0.0
        %611 = vmatmul.mubr.f32.gmra.mrb[0].mxu0 %v280
        %v612 = vpop.f32.mrb[0].mxu0
        %v613 = vadd.f32 0.0, %v612
        %v614 = vpop.f32.mrb[0].mxu0
        %v615 = vadd.f32 0.0, %v614
        %616 = vmatprep.mubr.f32.mxu0 0.0
        %617 = vmatmul.mubr.f32.gmra.mrb[0].mxu0 %v281
        %v618 = vpop.f32.mrb[0].mxu0
        %v619 = vadd.f32 0.0, %v618
        %v620 = vpop.f32.mrb[0].mxu0
        %v621 = vadd.f32 0.0, %v620
        %622 = vmatprep.mubr.f32.mxu0 0.0
        %623 = vmatmul.mubr.f32.gmra.mrb[0].mxu0 %v282
        %v624 = vpop.f32.mrb[0].mxu0
        %v625 = vadd.f32 0.0, %v624
        %v626 = vpop.f32.mrb[0].mxu0
        %v627 = vadd.f32 0.0, %v626
        %628 = vmatprep.mubr.f32.mxu0 0.0
        %629 = vmatmul.mubr.f32.gmra.mrb[0].mxu0 %v283
        %v630 = vpop.f32.mrb[0].mxu0
        %v631 = vadd.f32 0.0, %v630
        %v632 = vpop.f32.mrb[0].mxu0
        %v633 = vadd.f32 0.0, %v632
        %634 = vmatprep.mubr.f32.mxu0 0.0
        %635 = vmatmul.mubr.f32.gmra.mrb[0].mxu0 %v284
        %v636 = vpop.f32.mrb[0].mxu0
        %v637 = vadd.f32 0.0, %v636
        %v638 = vpop.f32.mrb[0].mxu0
        %v639 = vadd.f32 0.0, %v638
        %640 = vmatprep.mubr.f32.mxu0 0.0
        %641 = vmatmul.mubr.f32.gmra.mrb[0].mxu0 %v285
        %v642 = vpop.f32.mrb[0].mxu0
        %v643 = vadd.f32 0.0, %v642
        %v644 = vpop.f32.mrb[0].mxu0
        %v645 = vadd.f32 0.0, %v644
        %646 = vmatprep.mubr.f32.mxu0 0.0
        %647 = vmatmul.mubr.f32.gmra.mrb[0].mxu0 %v286
        %v648 = vpop.f32.mrb[0].mxu0
        %v649 = vadd.f32 0.0, %v648
        %v650 = vpop.f32.mrb[0].mxu0
        %v651 = vadd.f32 0.0, %v650
        %652 = vmatprep.mubr.f32.mxu0 0.0
        %653 = vmatmul.mubr.f32.gmra.mrb[0].mxu0 %v287
        %v654 = vpop.f32.mrb[0].mxu0
        %v655 = vadd.f32 0.0, %v654
        %v656 = vpop.f32.mrb[0].mxu0
        %v657 = vadd.f32 0.0, %v656
        %658 = vmatprep.mubr.f32.mxu0 0.0
        %659 = vmatmul.mubr.f32.gmra.mrb[0].mxu0 %v288
        %v660 = vpop.f32.mrb[0].mxu0
        %v661 = vadd.f32 0.0, %v660
        %v662 = vpop.f32.mrb[0].mxu0
        %v663 = vadd.f32 0.0, %v662
        %664 = vmatprep.mubr.f32.mxu0 0.0
        %665 = vmatmul.mubr.f32.gmra.mrb[0].mxu0 %v289
        %v666 = vpop.f32.mrb[0].mxu0
        %v667 = vadd.f32 0.0, %v666
        %v668 = vpop.f32.mrb[0].mxu0
        %v669 = vadd.f32 0.0, %v668
        %670 = vmatprep.mubr.f32.mxu0 0.0
        %671 = vmatmul.mubr.f32.gmra.mrb[0].mxu0 %v290
        %v672 = vpop.f32.mrb[0].mxu0
        %v673 = vadd.f32 0.0, %v672
        %v674 = vpop.f32.mrb[0].mxu0
        %v675 = vadd.f32 0.0, %v674
        %676 = vdwg.mxu0
        %v677 = vmul.f32 %v422, 1.442695
        %v678 = vpow.pop %v677
        %v679 = vmul.f32 %v424, 1.442695
        %v680 = vpow.pop %v679
        %v681 = vmul.f32 %v583, 1.442695
        %v682 = vpow.pop %v681
        %v683 = vmul.f32 %v585, 1.442695
        %v684 = vpow.pop %v683
        %v685 = vmul.f32 %v428, 1.442695
        %v686 = vpow.pop %v685
        %v687 = vmul.f32 %v430, 1.442695
        %v688 = vpow.pop %v687
        %v689 = vmul.f32 %v589, 1.442695
        %v690 = vpow.pop %v689
        %v691 = vmul.f32 %v591, 1.442695
        %v692 = vpow.pop %v691
        %v693 = vmul.f32 %v434, 1.442695
        %v694 = vpow.pop %v693
        %v695 = vmul.f32 %v436, 1.442695
        %v696 = vpow.pop %v695
        %v697 = vmul.f32 %v595, 1.442695
        %v698 = vpow.pop %v697
        %v699 = vmul.f32 %v597, 1.442695
        %v700 = vpow.pop %v699
        %v701 = vmul.f32 %v440, 1.442695
        %v702 = vpow.pop %v701
        %v703 = vmul.f32 %v442, 1.442695
        %v704 = vpow.pop %v703
        %v705 = vmul.f32 %v601, 1.442695
        %v706 = vpow.pop %v705
        %v707 = vmul.f32 %v603, 1.442695
        %v708 = vpow.pop %v707
        %v709 = vmul.f32 %v446, 1.442695
        %v710 = vpow.pop %v709
        %v711 = vmul.f32 %v448, 1.442695
        %v712 = vpow.pop %v711
        %v713 = vmul.f32 %v607, 1.442695
        %v714 = vpow.pop %v713
        %v715 = vmul.f32 %v609, 1.442695
        %v716 = vpow.pop %v715
        %v717 = vmul.f32 %v452, 1.442695
        %v718 = vpow.pop %v717
        %v719 = vmul.f32 %v454, 1.442695
        %v720 = vpow.pop %v719
        %v721 = vmul.f32 %v613, 1.442695
        %v722 = vpow.pop %v721
        %v723 = vmul.f32 %v615, 1.442695
        %v724 = vpow.pop %v723
        %v725 = vmul.f32 %v458, 1.442695
        %v726 = vpow.pop %v725
        %v727 = vmul.f32 %v460, 1.442695
        %v728 = vpow.pop %v727
        %v729 = vmul.f32 %v619, 1.442695
        %v730 = vpow.pop %v729
        %v731 = vmul.f32 %v621, 1.442695
        %v732 = vpow.pop %v731
        %v733 = vmul.f32 %v464, 1.442695
        %v734 = vpow.pop %v733
        %v735 = vmul.f32 %v466, 1.442695
        %v736 = vpow.pop %v735
        %v737 = vmul.f32 %v625, 1.442695
        %v738 = vpow.pop %v737
        %v739 = vmul.f32 %v627, 1.442695
        %v740 = vpow.pop %v739
        %v741 = vmul.f32 %v470, 1.442695
        %v742 = vpow.pop %v741
        %v743 = vmul.f32 %v472, 1.442695
        %v744 = vpow.pop %v743
        %v745 = vmul.f32 %v631, 1.442695
        %v746 = vpow.pop %v745
        %v747 = vmul.f32 %v633, 1.442695
        %v748 = vpow.pop %v747
        %v749 = vmul.f32 %v476, 1.442695
        %v750 = vpow.pop %v749
        %v751 = vmul.f32 %v478, 1.442695
        %v752 = vpow.pop %v751
        %v753 = vmul.f32 %v637, 1.442695
        %v754 = vpow.pop %v753
        %v755 = vmul.f32 %v639, 1.442695
        %v756 = vpow.pop %v755
        %v757 = vmul.f32 %v482, 1.442695
        %v758 = vpow.pop %v757
        %v759 = vmul.f32 %v484, 1.442695
        %v760 = vpow.pop %v759
        %v761 = vmul.f32 %v643, 1.442695
        %v762 = vpow.pop %v761
        %v763 = vmul.f32 %v645, 1.442695
        %v764 = vpow.pop %v763
        %v765 = vmul.f32 %v488, 1.442695
        %v766 = vpow.pop %v765
        %v767 = vmul.f32 %v490, 1.442695
        %v768 = vpow.pop %v767
        %v769 = vmul.f32 %v649, 1.442695
        %v770 = vpow.pop %v769
        %v771 = vmul.f32 %v651, 1.442695
        %v772 = vpow.pop %v771
        %v773 = vmul.f32 %v494, 1.442695
        %v774 = vpow.pop %v773
        %v775 = vmul.f32 %v496, 1.442695
        %v776 = vpow.pop %v775
        %v777 = vmul.f32 %v655, 1.442695
        %v778 = vpow.pop %v777
        %v779 = vmul.f32 %v657, 1.442695
        %v780 = vpow.pop %v779
        %v781 = vmul.f32 %v500, 1.442695
        %v782 = vpow.pop %v781
        %v783 = vmul.f32 %v502, 1.442695
        %v784 = vpow.pop %v783
        %v785 = vmul.f32 %v661, 1.442695
        %v786 = vpow.pop %v785
        %v787 = vmul.f32 %v663, 1.442695
        %v788 = vpow.pop %v787
        %v789 = vmul.f32 %v506, 1.442695
        %v790 = vpow.pop %v789
        %v791 = vmul.f32 %v508, 1.442695
        %v792 = vpow.pop %v791
        %v793 = vmul.f32 %v667, 1.442695
        %v794 = vpow.pop %v793
        %v795 = vmul.f32 %v669, 1.442695
        %v796 = vpow.pop %v795
        %v797 = vmul.f32 %v512, 1.442695
        %v798 = vpow.pop %v797
        %v799 = vmul.f32 %v514, 1.442695
        %v800 = vpow.pop %v799
        %v801 = vmul.f32 %v673, 1.442695
        %v802 = vpow.pop %v801
        %v803 = vmul.f32 %v675, 1.442695
        %v804 = vpow.pop %v803
        %v805 = vmul.f32 %v422, 0.87758255
        %v806 = vmul.f32 %v424, 0.87758255
        %v807 = vmul.f32 %v583, 0.87758255
        %v808 = vmul.f32 %v585, 0.87758255
        %v809 = vmul.f32 %v428, 0.87758255
        %v810 = vmul.f32 %v430, 0.87758255
        %v811 = vmul.f32 %v589, 0.87758255
        %v812 = vmul.f32 %v591, 0.87758255
        %v813 = vmul.f32 %v434, 0.87758255
        %v814 = vmul.f32 %v436, 0.87758255
        %v815 = vmul.f32 %v595, 0.87758255
        %v816 = vmul.f32 %v597, 0.87758255
        %v817 = vmul.f32 %v440, 0.87758255
        %v818 = vmul.f32 %v442, 0.87758255
        %v819 = vmul.f32 %v601, 0.87758255
        %v820 = vmul.f32 %v603, 0.87758255
        %v821 = vmul.f32 %v446, 0.87758255
        %v822 = vmul.f32 %v448, 0.87758255
        %v823 = vmul.f32 %v607, 0.87758255
        %v824 = vmul.f32 %v609, 0.87758255
        %v825 = vmul.f32 %v452, 0.87758255
        %v826 = vmul.f32 %v454, 0.87758255
        %v827 = vmul.f32 %v613, 0.87758255
        %v828 = vmul.f32 %v615, 0.87758255
        %v829 = vmul.f32 %v458, 0.87758255
        %v830 = vmul.f32 %v460, 0.87758255
        %v831 = vmul.f32 %v619, 0.87758255
        %v832 = vmul.f32 %v621, 0.87758255
        %v833 = vmul.f32 %v464, 0.87758255
        %v834 = vmul.f32 %v466, 0.87758255
        %v835 = vmul.f32 %v625, 0.87758255
        %v836 = vmul.f32 %v627, 0.87758255
        %v837 = vmul.f32 %v470, 0.87758255
        %v838 = vmul.f32 %v472, 0.87758255
        %v839 = vmul.f32 %v631, 0.87758255
        %v840 = vmul.f32 %v633, 0.87758255
        %v841 = vmul.f32 %v476, 0.87758255
        %v842 = vmul.f32 %v478, 0.87758255
        %v843 = vmul.f32 %v637, 0.87758255
        %v844 = vmul.f32 %v639, 0.87758255
        %v845 = vmul.f32 %v482, 0.87758255
        %v846 = vmul.f32 %v484, 0.87758255
        %v847 = vmul.f32 %v643, 0.87758255
        %v848 = vmul.f32 %v645, 0.87758255
        %v849 = vmul.f32 %v488, 0.87758255
        %v850 = vmul.f32 %v490, 0.87758255
        %v851 = vmul.f32 %v649, 0.87758255
        %v852 = vmul.f32 %v651, 0.87758255
        %v853 = vmul.f32 %v494, 0.87758255
        %v854 = vmul.f32 %v496, 0.87758255
        %v855 = vmul.f32 %v655, 0.87758255
        %v856 = vmul.f32 %v657, 0.87758255
        %v857 = vmul.f32 %v500, 0.87758255
        %v858 = vmul.f32 %v502, 0.87758255
        %v859 = vmul.f32 %v661, 0.87758255
        %v860 = vmul.f32 %v663, 0.87758255
        %v861 = vmul.f32 %v506, 0.87758255
        %v862 = vmul.f32 %v508, 0.87758255
        %v863 = vmul.f32 %v667, 0.87758255
        %v864 = vmul.f32 %v669, 0.87758255
        %v865 = vmul.f32 %v512, 0.87758255
        %v866 = vmul.f32 %v514, 0.87758255
        %v867 = vmul.f32 %v673, 0.87758255
        %v868 = vmul.f32 %v675, 0.87758255
        %v869 = vmul.f32 %v422, 0.01
        %v870 = vmul.f32 %v424, 0.01
        %v871 = vmul.f32 %v583, 0.01
        %v872 = vmul.f32 %v585, 0.01
        %v873 = vmul.f32 %v428, 0.01
        %v874 = vmul.f32 %v430, 0.01
        %v875 = vmul.f32 %v589, 0.01
        %v876 = vmul.f32 %v591, 0.01
        %v877 = vmul.f32 %v434, 0.01
        %v878 = vmul.f32 %v436, 0.01
        %v879 = vmul.f32 %v595, 0.01
        %v880 = vmul.f32 %v597, 0.01
        %v881 = vmul.f32 %v440, 0.01
        %v882 = vmul.f32 %v442, 0.01
        %v883 = vmul.f32 %v601, 0.01
        %v884 = vmul.f32 %v603, 0.01
        %v885 = vmul.f32 %v446, 0.01
        %v886 = vmul.f32 %v448, 0.01
        %v887 = vmul.f32 %v607, 0.01
        %v888 = vmul.f32 %v609, 0.01
        %v889 = vmul.f32 %v452, 0.01
        %v890 = vmul.f32 %v454, 0.01
        %v891 = vmul.f32 %v613, 0.01
        %v892 = vmul.f32 %v615, 0.01
        %v893 = vmul.f32 %v458, 0.01
        %v894 = vmul.f32 %v460, 0.01
        %v895 = vmul.f32 %v619, 0.01
        %v896 = vmul.f32 %v621, 0.01
        %v897 = vmul.f32 %v464, 0.01
        %v898 = vmul.f32 %v466, 0.01
        %v899 = vmul.f32 %v625, 0.01
        %v900 = vmul.f32 %v627, 0.01
        %v901 = vmul.f32 %v470, 0.01
        %v902 = vmul.f32 %v472, 0.01
        %v903 = vmul.f32 %v631, 0.01
        %v904 = vmul.f32 %v633, 0.01
        %v905 = vmul.f32 %v476, 0.01
        %v906 = vmul.f32 %v478, 0.01
        %v907 = vmul.f32 %v637, 0.01
        %v908 = vmul.f32 %v639, 0.01
        %v909 = vmul.f32 %v482, 0.01
        %v910 = vmul.f32 %v484, 0.01
        %v911 = vmul.f32 %v643, 0.01
        %v912 = vmul.f32 %v645, 0.01
        %v913 = vmul.f32 %v488, 0.01
        %v914 = vmul.f32 %v490, 0.01
        %v915 = vmul.f32 %v649, 0.01
        %v916 = vmul.f32 %v651, 0.01
        %v917 = vmul.f32 %v494, 0.01
        %v918 = vmul.f32 %v496, 0.01
        %v919 = vmul.f32 %v655, 0.01
        %v920 = vmul.f32 %v657, 0.01
        %v921 = vmul.f32 %v500, 0.01
        %v922 = vmul.f32 %v502, 0.01
        %v923 = vmul.f32 %v661, 0.01
        %v924 = vmul.f32 %v663, 0.01
        %v925 = vmul.f32 %v506, 0.01
        %v926 = vmul.f32 %v508, 0.01
        %v927 = vmul.f32 %v667, 0.01
        %v928 = vmul.f32 %v669, 0.01
        %v929 = vmul.f32 %v512, 0.01
        %v930 = vmul.f32 %v514, 0.01
        %v931 = vmul.f32 %v673, 0.01
        %v932 = vmul.f32 %v675, 0.01
        %v933 = vmul.f32 %v869, %v422
        %v934 = vmul.f32 %v870, %v424
        %v935 = vmul.f32 %v871, %v583
        %v936 = vmul.f32 %v872, %v585
        %v937 = vmul.f32 %v873, %v428
        %v938 = vmul.f32 %v874, %v430
        %v939 = vmul.f32 %v875, %v589
        %v940 = vmul.f32 %v876, %v591
        %v941 = vmul.f32 %v877, %v434
        %v942 = vmul.f32 %v878, %v436
        %v943 = vmul.f32 %v879, %v595
        %v944 = vmul.f32 %v880, %v597
        %v945 = vmul.f32 %v881, %v440
        %v946 = vmul.f32 %v882, %v442
        %v947 = vmul.f32 %v883, %v601
        %v948 = vmul.f32 %v884, %v603
        %v949 = vmul.f32 %v885, %v446
        %v950 = vmul.f32 %v886, %v448
        %v951 = vmul.f32 %v887, %v607
        %v952 = vmul.f32 %v888, %v609
        %v953 = vmul.f32 %v889, %v452
        %v954 = vmul.f32 %v890, %v454
        %v955 = vmul.f32 %v891, %v613
        %v956 = vmul.f32 %v892, %v615
        %v957 = vmul.f32 %v893, %v458
        %v958 = vmul.f32 %v894, %v460
        %v959 = vmul.f32 %v895, %v619
        %v960 = vmul.f32 %v896, %v621
        %v961 = vmul.f32 %v897, %v464
        %v962 = vmul.f32 %v898, %v466
        %v963 = vmul.f32 %v899, %v625
        %v964 = vmul.f32 %v900, %v627
        %v965 = vmul.f32 %v901, %v470
        %v966 = vmul.f32 %v902, %v472
        %v967 = vmul.f32 %v903, %v631
        %v968 = vmul.f32 %v904, %v633
        %v969 = vmul.f32 %v905, %v476
        %v970 = vmul.f32 %v906, %v478
        %v971 = vmul.f32 %v907, %v637
        %v972 = vmul.f32 %v908, %v639
        %v973 = vmul.f32 %v909, %v482
        %v974 = vmul.f32 %v910, %v484
        %v975 = vmul.f32 %v911, %v643
        %v976 = vmul.f32 %v912, %v645
        %v977 = vmul.f32 %v913, %v488
        %v978 = vmul.f32 %v914, %v490
        %v979 = vmul.f32 %v915, %v649
        %v980 = vmul.f32 %v916, %v651
        %v981 = vmul.f32 %v917, %v494
        %v982 = vmul.f32 %v918, %v496
        %v983 = vmul.f32 %v919, %v655
        %v984 = vmul.f32 %v920, %v657
        %v985 = vmul.f32 %v921, %v500
        %v986 = vmul.f32 %v922, %v502
        %v987 = vmul.f32 %v923, %v661
        %v988 = vmul.f32 %v924, %v663
        %v989 = vmul.f32 %v925, %v506
        %v990 = vmul.f32 %v926, %v508
        %v991 = vmul.f32 %v927, %v667
        %v992 = vmul.f32 %v928, %v669
        %v993 = vmul.f32 %v929, %v512
        %v994 = vmul.f32 %v930, %v514
        %v995 = vmul.f32 %v931, %v673
        %v996 = vmul.f32 %v932, %v675
        %v997 = vmul.f32 %v933, 0.5
        %v998 = vmul.f32 %v934, 0.5
        %v999 = vmul.f32 %v935, 0.5
        %v1000 = vmul.f32 %v936, 0.5
        %v1001 = vmul.f32 %v937, 0.5
        %v1002 = vmul.f32 %v938, 0.5
        %v1003 = vmul.f32 %v939, 0.5
        %v1004 = vmul.f32 %v940, 0.5
        %v1005 = vmul.f32 %v941, 0.5
        %v1006 = vmul.f32 %v942, 0.5
        %v1007 = vmul.f32 %v943, 0.5
        %v1008 = vmul.f32 %v944, 0.5
        %v1009 = vmul.f32 %v945, 0.5
        %v1010 = vmul.f32 %v946, 0.5
        %v1011 = vmul.f32 %v947, 0.5
        %v1012 = vmul.f32 %v948, 0.5
        %v1013 = vmul.f32 %v949, 0.5
        %v1014 = vmul.f32 %v950, 0.5
        %v1015 = vmul.f32 %v951, 0.5
        %v1016 = vmul.f32 %v952, 0.5
        %v1017 = vmul.f32 %v953, 0.5
        %v1018 = vmul.f32 %v954, 0.5
        %v1019 = vmul.f32 %v955, 0.5
        %v1020 = vmul.f32 %v956, 0.5
        %v1021 = vmul.f32 %v957, 0.5
        %v1022 = vmul.f32 %v958, 0.5
        %v1023 = vmul.f32 %v959, 0.5
        %v1024 = vmul.f32 %v960, 0.5
        %v1025 = vmul.f32 %v961, 0.5
        %v1026 = vmul.f32 %v962, 0.5
        %v1027 = vmul.f32 %v963, 0.5
        %v1028 = vmul.f32 %v964, 0.5
        %v1029 = vmul.f32 %v965, 0.5
        %v1030 = vmul.f32 %v966, 0.5
        %v1031 = vmul.f32 %v967, 0.5
        %v1032 = vmul.f32 %v968, 0.5
        %v1033 = vmul.f32 %v969, 0.5
        %v1034 = vmul.f32 %v970, 0.5
        %v1035 = vmul.f32 %v971, 0.5
        %v1036 = vmul.f32 %v972, 0.5
        %v1037 = vmul.f32 %v973, 0.5
        %v1038 = vmul.f32 %v974, 0.5
        %v1039 = vmul.f32 %v975, 0.5
        %v1040 = vmul.f32 %v976, 0.5
        %v1041 = vmul.f32 %v977, 0.5
        %v1042 = vmul.f32 %v978, 0.5
        %v1043 = vmul.f32 %v979, 0.5
        %v1044 = vmul.f32 %v980, 0.5
        %v1045 = vmul.f32 %v981, 0.5
        %v1046 = vmul.f32 %v982, 0.5
        %v1047 = vmul.f32 %v983, 0.5
        %v1048 = vmul.f32 %v984, 0.5
        %v1049 = vmul.f32 %v985, 0.5
        %v1050 = vmul.f32 %v986, 0.5
        %v1051 = vmul.f32 %v987, 0.5
        %v1052 = vmul.f32 %v988, 0.5
        %v1053 = vmul.f32 %v989, 0.5
        %v1054 = vmul.f32 %v990, 0.5
        %v1055 = vmul.f32 %v991, 0.5
        %v1056 = vmul.f32 %v992, 0.5
        %v1057 = vmul.f32 %v993, 0.5
        %v1058 = vmul.f32 %v994, 0.5
        %v1059 = vmul.f32 %v995, 0.5
        %v1060 = vmul.f32 %v996, 0.5
        %v1061 = vsub.f32 1.0, %v997
        %v1062 = vsub.f32 1.0, %v998
        %v1063 = vsub.f32 1.0, %v999
        %v1064 = vsub.f32 1.0, %v1000
        %v1065 = vsub.f32 1.0, %v1001
        %v1066 = vsub.f32 1.0, %v1002
        %v1067 = vsub.f32 1.0, %v1003
        %v1068 = vsub.f32 1.0, %v1004
        %v1069 = vsub.f32 1.0, %v1005
        %v1070 = vsub.f32 1.0, %v1006
        %v1071 = vsub.f32 1.0, %v1007
        %v1072 = vsub.f32 1.0, %v1008
        %v1073 = vsub.f32 1.0, %v1009
        %v1074 = vsub.f32 1.0, %v1010
        %v1075 = vsub.f32 1.0, %v1011
        %v1076 = vsub.f32 1.0, %v1012
        %v1077 = vsub.f32 1.0, %v1013
        %v1078 = vsub.f32 1.0, %v1014
        %v1079 = vsub.f32 1.0, %v1015
        %v1080 = vsub.f32 1.0, %v1016
        %v1081 = vsub.f32 1.0, %v1017
        %v1082 = vsub.f32 1.0, %v1018
        %v1083 = vsub.f32 1.0, %v1019
        %v1084 = vsub.f32 1.0, %v1020
        %v1085 = vsub.f32 1.0, %v1021
        %v1086 = vsub.f32 1.0, %v1022
        %v1087 = vsub.f32 1.0, %v1023
        %v1088 = vsub.f32 1.0, %v1024
        %v1089 = vsub.f32 1.0, %v1025
        %v1090 = vsub.f32 1.0, %v1026
        %v1091 = vsub.f32 1.0, %v1027
        %v1092 = vsub.f32 1.0, %v1028
        %v1093 = vsub.f32 1.0, %v1029
        %v1094 = vsub.f32 1.0, %v1030
        %v1095 = vsub.f32 1.0, %v1031
        %v1096 = vsub.f32 1.0, %v1032
        %v1097 = vsub.f32 1.0, %v1033
        %v1098 = vsub.f32 1.0, %v1034
        %v1099 = vsub.f32 1.0, %v1035
        %v1100 = vsub.f32 1.0, %v1036
        %v1101 = vsub.f32 1.0, %v1037
        %v1102 = vsub.f32 1.0, %v1038
        %v1103 = vsub.f32 1.0, %v1039
        %v1104 = vsub.f32 1.0, %v1040
        %v1105 = vsub.f32 1.0, %v1041
        %v1106 = vsub.f32 1.0, %v1042
        %v1107 = vsub.f32 1.0, %v1043
        %v1108 = vsub.f32 1.0, %v1044
        %v1109 = vsub.f32 1.0, %v1045
        %v1110 = vsub.f32 1.0, %v1046
        %v1111 = vsub.f32 1.0, %v1047
        %v1112 = vsub.f32 1.0, %v1048
        %v1113 = vsub.f32 1.0, %v1049
        %v1114 = vsub.f32 1.0, %v1050
        %v1115 = vsub.f32 1.0, %v1051
        %v1116 = vsub.f32 1.0, %v1052
        %v1117 = vsub.f32 1.0, %v1053
        %v1118 = vsub.f32 1.0, %v1054
        %v1119 = vsub.f32 1.0, %v1055
        %v1120 = vsub.f32 1.0, %v1056
        %v1121 = vsub.f32 1.0, %v1057
        %v1122 = vsub.f32 1.0, %v1058
        %v1123 = vsub.f32 1.0, %v1059
        %v1124 = vsub.f32 1.0, %v1060
        %v1125 = vmul.f32 %v933, %v933
        %v1126 = vmul.f32 %v934, %v934
        %v1127 = vmul.f32 %v935, %v935
        %v1128 = vmul.f32 %v936, %v936
        %v1129 = vmul.f32 %v937, %v937
        %v1130 = vmul.f32 %v938, %v938
        %v1131 = vmul.f32 %v939, %v939
        %v1132 = vmul.f32 %v940, %v940
        %v1133 = vmul.f32 %v941, %v941
        %v1134 = vmul.f32 %v942, %v942
        %v1135 = vmul.f32 %v943, %v943
        %v1136 = vmul.f32 %v944, %v944
        %v1137 = vmul.f32 %v945, %v945
        %v1138 = vmul.f32 %v946, %v946
        %v1139 = vmul.f32 %v947, %v947
        %v1140 = vmul.f32 %v948, %v948
        %v1141 = vmul.f32 %v949, %v949
        %v1142 = vmul.f32 %v950, %v950
        %v1143 = vmul.f32 %v951, %v951
        %v1144 = vmul.f32 %v952, %v952
        %v1145 = vmul.f32 %v953, %v953
        %v1146 = vmul.f32 %v954, %v954
        %v1147 = vmul.f32 %v955, %v955
        %v1148 = vmul.f32 %v956, %v956
        %v1149 = vmul.f32 %v957, %v957
        %v1150 = vmul.f32 %v958, %v958
        %v1151 = vmul.f32 %v959, %v959
        %v1152 = vmul.f32 %v960, %v960
        %v1153 = vmul.f32 %v961, %v961
        %v1154 = vmul.f32 %v962, %v962
        %v1155 = vmul.f32 %v963, %v963
        %v1156 = vmul.f32 %v964, %v964
        %v1157 = vmul.f32 %v965, %v965
        %v1158 = vmul.f32 %v966, %v966
        %v1159 = vmul.f32 %v967, %v967
        %v1160 = vmul.f32 %v968, %v968
        %v1161 = vmul.f32 %v969, %v969
        %v1162 = vmul.f32 %v970, %v970
        %v1163 = vmul.f32 %v971, %v971
        %v1164 = vmul.f32 %v972, %v972
        %v1165 = vmul.f32 %v973, %v973
        %v1166 = vmul.f32 %v974, %v974
        %v1167 = vmul.f32 %v975, %v975
        %v1168 = vmul.f32 %v976, %v976
        %v1169 = vmul.f32 %v977, %v977
        %v1170 = vmul.f32 %v978, %v978
        %v1171 = vmul.f32 %v979, %v979
        %v1172 = vmul.f32 %v980, %v980
        %v1173 = vmul.f32 %v981, %v981
        %v1174 = vmul.f32 %v982, %v982
        %v1175 = vmul.f32 %v983, %v983
        %v1176 = vmul.f32 %v984, %v984
        %v1177 = vmul.f32 %v985, %v985
        %v1178 = vmul.f32 %v986, %v986
        %v1179 = vmul.f32 %v987, %v987
        %v1180 = vmul.f32 %v988, %v988
        %v1181 = vmul.f32 %v989, %v989
        %v1182 = vmul.f32 %v990, %v990
        %v1183 = vmul.f32 %v991, %v991
        %v1184 = vmul.f32 %v992, %v992
        %v1185 = vmul.f32 %v993, %v993
        %v1186 = vmul.f32 %v994, %v994
        %v1187 = vmul.f32 %v995, %v995
        %v1188 = vmul.f32 %v996, %v996
        %v1189 = vmul.f32 %v1125, 0.125
        %v1190 = vmul.f32 %v1126, 0.125
        %v1191 = vmul.f32 %v1127, 0.125
        %v1192 = vmul.f32 %v1128, 0.125
        %v1193 = vmul.f32 %v1129, 0.125
        %v1194 = vmul.f32 %v1130, 0.125
        %v1195 = vmul.f32 %v1131, 0.125
        %v1196 = vmul.f32 %v1132, 0.125
        %v1197 = vmul.f32 %v1133, 0.125
        %v1198 = vmul.f32 %v1134, 0.125
        %v1199 = vmul.f32 %v1135, 0.125
        %v1200 = vmul.f32 %v1136, 0.125
        %v1201 = vmul.f32 %v1137, 0.125
        %v1202 = vmul.f32 %v1138, 0.125
        %v1203 = vmul.f32 %v1139, 0.125
        %v1204 = vmul.f32 %v1140, 0.125
        %v1205 = vmul.f32 %v1141, 0.125
        %v1206 = vmul.f32 %v1142, 0.125
        %v1207 = vmul.f32 %v1143, 0.125
        %v1208 = vmul.f32 %v1144, 0.125
        %v1209 = vmul.f32 %v1145, 0.125
        %v1210 = vmul.f32 %v1146, 0.125
        %v1211 = vmul.f32 %v1147, 0.125
        %v1212 = vmul.f32 %v1148, 0.125
        %v1213 = vmul.f32 %v1149, 0.125
        %v1214 = vmul.f32 %v1150, 0.125
        %v1215 = vmul.f32 %v1151, 0.125
        %v1216 = vmul.f32 %v1152, 0.125
        %v1217 = vmul.f32 %v1153, 0.125
        %v1218 = vmul.f32 %v1154, 0.125
        %v1219 = vmul.f32 %v1155, 0.125
        %v1220 = vmul.f32 %v1156, 0.125
        %v1221 = vmul.f32 %v1157, 0.125
        %v1222 = vmul.f32 %v1158, 0.125
        %v1223 = vmul.f32 %v1159, 0.125
        %v1224 = vmul.f32 %v1160, 0.125
        %v1225 = vmul.f32 %v1161, 0.125
        %v1226 = vmul.f32 %v1162, 0.125
        %v1227 = vmul.f32 %v1163, 0.125
        %v1228 = vmul.f32 %v1164, 0.125
        %v1229 = vmul.f32 %v1165, 0.125
        %v1230 = vmul.f32 %v1166, 0.125
        %v1231 = vmul.f32 %v1167, 0.125
        %v1232 = vmul.f32 %v1168, 0.125
        %v1233 = vmul.f32 %v1169, 0.125
        %v1234 = vmul.f32 %v1170, 0.125
        %v1235 = vmul.f32 %v1171, 0.125
        %v1236 = vmul.f32 %v1172, 0.125
        %v1237 = vmul.f32 %v1173, 0.125
        %v1238 = vmul.f32 %v1174, 0.125
        %v1239 = vmul.f32 %v1175, 0.125
        %v1240 = vmul.f32 %v1176, 0.125
        %v1241 = vmul.f32 %v1177, 0.125
        %v1242 = vmul.f32 %v1178, 0.125
        %v1243 = vmul.f32 %v1179, 0.125
        %v1244 = vmul.f32 %v1180, 0.125
        %v1245 = vmul.f32 %v1181, 0.125
        %v1246 = vmul.f32 %v1182, 0.125
        %v1247 = vmul.f32 %v1183, 0.125
        %v1248 = vmul.f32 %v1184, 0.125
        %v1249 = vmul.f32 %v1185, 0.125
        %v1250 = vmul.f32 %v1186, 0.125
        %v1251 = vmul.f32 %v1187, 0.125
        %v1252 = vmul.f32 %v1188, 0.125
        %v1253 = vsub.f32 %v1061, %v1189
        %v1254 = vsub.f32 %v1062, %v1190
        %v1255 = vsub.f32 %v1063, %v1191
        %v1256 = vsub.f32 %v1064, %v1192
        %v1257 = vsub.f32 %v1065, %v1193
        %v1258 = vsub.f32 %v1066, %v1194
        %v1259 = vsub.f32 %v1067, %v1195
        %v1260 = vsub.f32 %v1068, %v1196
        %v1261 = vsub.f32 %v1069, %v1197
        %v1262 = vsub.f32 %v1070, %v1198
        %v1263 = vsub.f32 %v1071, %v1199
        %v1264 = vsub.f32 %v1072, %v1200
        %v1265 = vsub.f32 %v1073, %v1201
        %v1266 = vsub.f32 %v1074, %v1202
        %v1267 = vsub.f32 %v1075, %v1203
        %v1268 = vsub.f32 %v1076, %v1204
        %v1269 = vsub.f32 %v1077, %v1205
        %v1270 = vsub.f32 %v1078, %v1206
        %v1271 = vsub.f32 %v1079, %v1207
        %v1272 = vsub.f32 %v1080, %v1208
        %v1273 = vsub.f32 %v1081, %v1209
        %v1274 = vsub.f32 %v1082, %v1210
        %v1275 = vsub.f32 %v1083, %v1211
        %v1276 = vsub.f32 %v1084, %v1212
        %v1277 = vsub.f32 %v1085, %v1213
        %v1278 = vsub.f32 %v1086, %v1214
        %v1279 = vsub.f32 %v1087, %v1215
        %v1280 = vsub.f32 %v1088, %v1216
        %v1281 = vsub.f32 %v1089, %v1217
        %v1282 = vsub.f32 %v1090, %v1218
        %v1283 = vsub.f32 %v1091, %v1219
        %v1284 = vsub.f32 %v1092, %v1220
        %v1285 = vsub.f32 %v1093, %v1221
        %v1286 = vsub.f32 %v1094, %v1222
        %v1287 = vsub.f32 %v1095, %v1223
        %v1288 = vsub.f32 %v1096, %v1224
        %v1289 = vsub.f32 %v1097, %v1225
        %v1290 = vsub.f32 %v1098, %v1226
        %v1291 = vsub.f32 %v1099, %v1227
        %v1292 = vsub.f32 %v1100, %v1228
        %v1293 = vsub.f32 %v1101, %v1229
        %v1294 = vsub.f32 %v1102, %v1230
        %v1295 = vsub.f32 %v1103, %v1231
        %v1296 = vsub.f32 %v1104, %v1232
        %v1297 = vsub.f32 %v1105, %v1233
        %v1298 = vsub.f32 %v1106, %v1234
        %v1299 = vsub.f32 %v1107, %v1235
        %v1300 = vsub.f32 %v1108, %v1236
        %v1301 = vsub.f32 %v1109, %v1237
        %v1302 = vsub.f32 %v1110, %v1238
        %v1303 = vsub.f32 %v1111, %v1239
        %v1304 = vsub.f32 %v1112, %v1240
        %v1305 = vsub.f32 %v1113, %v1241
        %v1306 = vsub.f32 %v1114, %v1242
        %v1307 = vsub.f32 %v1115, %v1243
        %v1308 = vsub.f32 %v1116, %v1244
        %v1309 = vsub.f32 %v1117, %v1245
        %v1310 = vsub.f32 %v1118, %v1246
        %v1311 = vsub.f32 %v1119, %v1247
        %v1312 = vsub.f32 %v1120, %v1248
        %v1313 = vsub.f32 %v1121, %v1249
        %v1314 = vsub.f32 %v1122, %v1250
        %v1315 = vsub.f32 %v1123, %v1251
        %v1316 = vsub.f32 %v1124, %v1252
        %v1317 = vmul.f32 %v1253, 4.7942553
        %v1318 = vmul.f32 %v1254, 4.7942553
        %v1319 = vmul.f32 %v1255, 4.7942553
        %v1320 = vmul.f32 %v1256, 4.7942553
        %v1321 = vmul.f32 %v1257, 4.7942553
        %v1322 = vmul.f32 %v1258, 4.7942553
        %v1323 = vmul.f32 %v1259, 4.7942553
        %v1324 = vmul.f32 %v1260, 4.7942553
        %v1325 = vmul.f32 %v1261, 4.7942553
        %v1326 = vmul.f32 %v1262, 4.7942553
        %v1327 = vmul.f32 %v1263, 4.7942553
        %v1328 = vmul.f32 %v1264, 4.7942553
        %v1329 = vmul.f32 %v1265, 4.7942553
        %v1330 = vmul.f32 %v1266, 4.7942553
        %v1331 = vmul.f32 %v1267, 4.7942553
        %v1332 = vmul.f32 %v1268, 4.7942553
        %v1333 = vmul.f32 %v1269, 4.7942553
        %v1334 = vmul.f32 %v1270, 4.7942553
        %v1335 = vmul.f32 %v1271, 4.7942553
        %v1336 = vmul.f32 %v1272, 4.7942553
        %v1337 = vmul.f32 %v1273, 4.7942553
        %v1338 = vmul.f32 %v1274, 4.7942553
        %v1339 = vmul.f32 %v1275, 4.7942553
        %v1340 = vmul.f32 %v1276, 4.7942553
        %v1341 = vmul.f32 %v1277, 4.7942553
        %v1342 = vmul.f32 %v1278, 4.7942553
        %v1343 = vmul.f32 %v1279, 4.7942553
        %v1344 = vmul.f32 %v1280, 4.7942553
        %v1345 = vmul.f32 %v1281, 4.7942553
        %v1346 = vmul.f32 %v1282, 4.7942553
        %v1347 = vmul.f32 %v1283, 4.7942553
        %v1348 = vmul.f32 %v1284, 4.7942553
        %v1349 = vmul.f32 %v1285, 4.7942553
        %v1350 = vmul.f32 %v1286, 4.7942553
        %v1351 = vmul.f32 %v1287, 4.7942553
        %v1352 = vmul.f32 %v1288, 4.7942553
        %v1353 = vmul.f32 %v1289, 4.7942553
        %v1354 = vmul.f32 %v1290, 4.7942553
        %v1355 = vmul.f32 %v1291, 4.7942553
        %v1356 = vmul.f32 %v1292, 4.7942553
        %v1357 = vmul.f32 %v1293, 4.7942553
        %v1358 = vmul.f32 %v1294, 4.7942553
        %v1359 = vmul.f32 %v1295, 4.7942553
        %v1360 = vmul.f32 %v1296, 4.7942553
        %v1361 = vmul.f32 %v1297, 4.7942553
        %v1362 = vmul.f32 %v1298, 4.7942553
        %v1363 = vmul.f32 %v1299, 4.7942553
        %v1364 = vmul.f32 %v1300, 4.7942553
        %v1365 = vmul.f32 %v1301, 4.7942553
        %v1366 = vmul.f32 %v1302, 4.7942553
        %v1367 = vmul.f32 %v1303, 4.7942553
        %v1368 = vmul.f32 %v1304, 4.7942553
        %v1369 = vmul.f32 %v1305, 4.7942553
        %v1370 = vmul.f32 %v1306, 4.7942553
        %v1371 = vmul.f32 %v1307, 4.7942553
        %v1372 = vmul.f32 %v1308, 4.7942553
        %v1373 = vmul.f32 %v1309, 4.7942553
        %v1374 = vmul.f32 %v1310, 4.7942553
        %v1375 = vmul.f32 %v1311, 4.7942553
        %v1376 = vmul.f32 %v1312, 4.7942553
        %v1377 = vmul.f32 %v1313, 4.7942553
        %v1378 = vmul.f32 %v1314, 4.7942553
        %v1379 = vmul.f32 %v1315, 4.7942553
        %v1380 = vmul.f32 %v1316, 4.7942553
        %v1381 = vsub.f32 %v805, %v1317
        %v1382 = vsub.f32 %v806, %v1318
        %v1383 = vsub.f32 %v807, %v1319
        %v1384 = vsub.f32 %v808, %v1320
        %v1385 = vsub.f32 %v809, %v1321
        %v1386 = vsub.f32 %v810, %v1322
        %v1387 = vsub.f32 %v811, %v1323
        %v1388 = vsub.f32 %v812, %v1324
        %v1389 = vsub.f32 %v813, %v1325
        %v1390 = vsub.f32 %v814, %v1326
        %v1391 = vsub.f32 %v815, %v1327
        %v1392 = vsub.f32 %v816, %v1328
        %v1393 = vsub.f32 %v817, %v1329
        %v1394 = vsub.f32 %v818, %v1330
        %v1395 = vsub.f32 %v819, %v1331
        %v1396 = vsub.f32 %v820, %v1332
        %v1397 = vsub.f32 %v821, %v1333
        %v1398 = vsub.f32 %v822, %v1334
        %v1399 = vsub.f32 %v823, %v1335
        %v1400 = vsub.f32 %v824, %v1336
        %v1401 = vsub.f32 %v825, %v1337
        %v1402 = vsub.f32 %v826, %v1338
        %v1403 = vsub.f32 %v827, %v1339
        %v1404 = vsub.f32 %v828, %v1340
        %v1405 = vsub.f32 %v829, %v1341
        %v1406 = vsub.f32 %v830, %v1342
        %v1407 = vsub.f32 %v831, %v1343
        %v1408 = vsub.f32 %v832, %v1344
        %v1409 = vsub.f32 %v833, %v1345
        %v1410 = vsub.f32 %v834, %v1346
        %v1411 = vsub.f32 %v835, %v1347
        %v1412 = vsub.f32 %v836, %v1348
        %v1413 = vsub.f32 %v837, %v1349
        %v1414 = vsub.f32 %v838, %v1350
        %v1415 = vsub.f32 %v839, %v1351
        %v1416 = vsub.f32 %v840, %v1352
        %v1417 = vsub.f32 %v841, %v1353
        %v1418 = vsub.f32 %v842, %v1354
        %v1419 = vsub.f32 %v843, %v1355
        %v1420 = vsub.f32 %v844, %v1356
        %v1421 = vsub.f32 %v845, %v1357
        %v1422 = vsub.f32 %v846, %v1358
        %v1423 = vsub.f32 %v847, %v1359
        %v1424 = vsub.f32 %v848, %v1360
        %v1425 = vsub.f32 %v849, %v1361
        %v1426 = vsub.f32 %v850, %v1362
        %v1427 = vsub.f32 %v851, %v1363
        %v1428 = vsub.f32 %v852, %v1364
        %v1429 = vsub.f32 %v853, %v1365
        %v1430 = vsub.f32 %v854, %v1366
        %v1431 = vsub.f32 %v855, %v1367
        %v1432 = vsub.f32 %v856, %v1368
        %v1433 = vsub.f32 %v857, %v1369
        %v1434 = vsub.f32 %v858, %v1370
        %v1435 = vsub.f32 %v859, %v1371
        %v1436 = vsub.f32 %v860, %v1372
        %v1437 = vsub.f32 %v861, %v1373
        %v1438 = vsub.f32 %v862, %v1374
        %v1439 = vsub.f32 %v863, %v1375
        %v1440 = vsub.f32 %v864, %v1376
        %v1441 = vsub.f32 %v865, %v1377
        %v1442 = vsub.f32 %v866, %v1378
        %v1443 = vsub.f32 %v867, %v1379
        %v1444 = vsub.f32 %v868, %v1380
        %v1445 = vmul.f32 %v1381, 1.442695
        %v1446 = vpow.pop %v1445
        %v1447 = vmul.f32 %v1382, 1.442695
        %v1448 = vpow.pop %v1447
        %v1449 = vmul.f32 %v1383, 1.442695
        %v1450 = vpow.pop %v1449
        %v1451 = vmul.f32 %v1384, 1.442695
        %v1452 = vpow.pop %v1451
        %v1453 = vmul.f32 %v1385, 1.442695
        %v1454 = vpow.pop %v1453
        %v1455 = vmul.f32 %v1386, 1.442695
        %v1456 = vpow.pop %v1455
        %v1457 = vmul.f32 %v1387, 1.442695
        %v1458 = vpow.pop %v1457
        %v1459 = vmul.f32 %v1388, 1.442695
        %v1460 = vpow.pop %v1459
        %v1461 = vmul.f32 %v1389, 1.442695
        %v1462 = vpow.pop %v1461
        %v1463 = vmul.f32 %v1390, 1.442695
        %v1464 = vpow.pop %v1463
        %v1465 = vmul.f32 %v1391, 1.442695
        %v1466 = vpow.pop %v1465
        %v1467 = vmul.f32 %v1392, 1.442695
        %v1468 = vpow.pop %v1467
        %v1469 = vmul.f32 %v1393, 1.442695
        %v1470 = vpow.pop %v1469
        %v1471 = vmul.f32 %v1394, 1.442695
        %v1472 = vpow.pop %v1471
        %v1473 = vmul.f32 %v1395, 1.442695
        %v1474 = vpow.pop %v1473
        %v1475 = vmul.f32 %v1396, 1.442695
        %v1476 = vpow.pop %v1475
        %v1477 = vmul.f32 %v1397, 1.442695
        %v1478 = vpow.pop %v1477
        %v1479 = vmul.f32 %v1398, 1.442695
        %v1480 = vpow.pop %v1479
        %v1481 = vmul.f32 %v1399, 1.442695
        %v1482 = vpow.pop %v1481
        %v1483 = vmul.f32 %v1400, 1.442695
        %v1484 = vpow.pop %v1483
        %v1485 = vmul.f32 %v1401, 1.442695
        %v1486 = vpow.pop %v1485
        %v1487 = vmul.f32 %v1402, 1.442695
        %v1488 = vpow.pop %v1487
        %v1489 = vmul.f32 %v1403, 1.442695
        %v1490 = vpow.pop %v1489
        %v1491 = vmul.f32 %v1404, 1.442695
        %v1492 = vpow.pop %v1491
        %v1493 = vmul.f32 %v1405, 1.442695
        %v1494 = vpow.pop %v1493
        %v1495 = vmul.f32 %v1406, 1.442695
        %v1496 = vpow.pop %v1495
        %v1497 = vmul.f32 %v1407, 1.442695
        %v1498 = vpow.pop %v1497
        %v1499 = vmul.f32 %v1408, 1.442695
        %v1500 = vpow.pop %v1499
        %v1501 = vmul.f32 %v1409, 1.442695
        %v1502 = vpow.pop %v1501
        %v1503 = vmul.f32 %v1410, 1.442695
        %v1504 = vpow.pop %v1503
        %v1505 = vmul.f32 %v1411, 1.442695
        %v1506 = vpow.pop %v1505
        %v1507 = vmul.f32 %v1412, 1.442695
        %v1508 = vpow.pop %v1507
        %v1509 = vmul.f32 %v1413, 1.442695
        %v1510 = vpow.pop %v1509
        %v1511 = vmul.f32 %v1414, 1.442695
        %v1512 = vpow.pop %v1511
        %v1513 = vmul.f32 %v1415, 1.442695
        %v1514 = vpow.pop %v1513
        %v1515 = vmul.f32 %v1416, 1.442695
        %v1516 = vpow.pop %v1515
        %v1517 = vmul.f32 %v1417, 1.442695
        %v1518 = vpow.pop %v1517
        %v1519 = vmul.f32 %v1418, 1.442695
        %v1520 = vpow.pop %v1519
        %v1521 = vmul.f32 %v1419, 1.442695
        %v1522 = vpow.pop %v1521
        %v1523 = vmul.f32 %v1420, 1.442695
        %v1524 = vpow.pop %v1523
        %v1525 = vmul.f32 %v1421, 1.442695
        %v1526 = vpow.pop %v1525
        %v1527 = vmul.f32 %v1422, 1.442695
        %v1528 = vpow.pop %v1527
        %v1529 = vmul.f32 %v1423, 1.442695
        %v1530 = vpow.pop %v1529
        %v1531 = vmul.f32 %v1424, 1.442695
        %v1532 = vpow.pop %v1531
        %v1533 = vmul.f32 %v1425, 1.442695
        %v1534 = vpow.pop %v1533
        %v1535 = vmul.f32 %v1426, 1.442695
        %v1536 = vpow.pop %v1535
        %v1537 = vmul.f32 %v1427, 1.442695
        %v1538 = vpow.pop %v1537
        %v1539 = vmul.f32 %v1428, 1.442695
        %v1540 = vpow.pop %v1539
        %v1541 = vmul.f32 %v1429, 1.442695
        %v1542 = vpow.pop %v1541
        %v1543 = vmul.f32 %v1430, 1.442695
        %v1544 = vpow.pop %v1543
        %v1545 = vmul.f32 %v1431, 1.442695
        %v1546 = vpow.pop %v1545
        %v1547 = vmul.f32 %v1432, 1.442695
        %v1548 = vpow.pop %v1547
        %v1549 = vmul.f32 %v1433, 1.442695
        %v1550 = vpow.pop %v1549
        %v1551 = vmul.f32 %v1434, 1.442695
        %v1552 = vpow.pop %v1551
        %v1553 = vmul.f32 %v1435, 1.442695
        %v1554 = vpow.pop %v1553
        %v1555 = vmul.f32 %v1436, 1.442695
        %v1556 = vpow.pop %v1555
        %v1557 = vmul.f32 %v1437, 1.442695
        %v1558 = vpow.pop %v1557
        %v1559 = vmul.f32 %v1438, 1.442695
        %v1560 = vpow.pop %v1559
        %v1561 = vmul.f32 %v1439, 1.442695
        %v1562 = vpow.pop %v1561
        %v1563 = vmul.f32 %v1440, 1.442695
        %v1564 = vpow.pop %v1563
        %v1565 = vmul.f32 %v1441, 1.442695
        %v1566 = vpow.pop %v1565
        %v1567 = vmul.f32 %v1442, 1.442695
        %v1568 = vpow.pop %v1567
        %v1569 = vmul.f32 %v1443, 1.442695
        %v1570 = vpow.pop %v1569
        %v1571 = vmul.f32 %v1444, 1.442695
        %v1572 = vpow.pop %v1571
        %v1573 = vadd.f32 %v678, %v680
        %v1574 = vadd.f32 %v1573, %v682
        %v1575 = vadd.f32 %v1574, %v684
        %1576 = vadd.xlane.f32.xlu0 %v1575
        %v1577 = vpop.xlane.xlu0 %1576
        %v1578 = vadd.f32 %v686, %v688
        %v1579 = vadd.f32 %v1578, %v690
        %v1580 = vadd.f32 %v1579, %v692
        %1581 = vadd.xlane.f32.xlu0 %v1580
        %v1582 = vpop.xlane.xlu0 %1581
        %v1583 = vadd.f32 %v694, %v696
        %v1584 = vadd.f32 %v1583, %v698
        %v1585 = vadd.f32 %v1584, %v700
        %1586 = vadd.xlane.f32.xlu0 %v1585
        %v1587 = vpop.xlane.xlu0 %1586
        %v1588 = vadd.f32 %v702, %v704
        %v1589 = vadd.f32 %v1588, %v706
        %v1590 = vadd.f32 %v1589, %v708
        %1591 = vadd.xlane.f32.xlu0 %v1590
        %v1592 = vpop.xlane.xlu0 %1591
        %v1593 = vadd.f32 %v710, %v712
        %v1594 = vadd.f32 %v1593, %v714
        %v1595 = vadd.f32 %v1594, %v716
        %1596 = vadd.xlane.f32.xlu0 %v1595
        %v1597 = vpop.xlane.xlu0 %1596
        %v1598 = vadd.f32 %v718, %v720
        %v1599 = vadd.f32 %v1598, %v722
        %v1600 = vadd.f32 %v1599, %v724
        %1601 = vadd.xlane.f32.xlu0 %v1600
        %v1602 = vpop.xlane.xlu0 %1601
        %v1603 = vadd.f32 %v726, %v728
        %v1604 = vadd.f32 %v1603, %v730
        %v1605 = vadd.f32 %v1604, %v732
        %1606 = vadd.xlane.f32.xlu0 %v1605
        %v1607 = vpop.xlane.xlu0 %1606
        %v1608 = vadd.f32 %v734, %v736
        %v1609 = vadd.f32 %v1608, %v738
        %v1610 = vadd.f32 %v1609, %v740
        %1611 = vadd.xlane.f32.xlu0 %v1610
        %v1612 = vpop.xlane.xlu0 %1611
        %v1613 = vadd.f32 %v742, %v744
        %v1614 = vadd.f32 %v1613, %v746
        %v1615 = vadd.f32 %v1614, %v748
        %1616 = vadd.xlane.f32.xlu0 %v1615
        %v1617 = vpop.xlane.xlu0 %1616
        %v1618 = vadd.f32 %v750, %v752
        %v1619 = vadd.f32 %v1618, %v754
        %v1620 = vadd.f32 %v1619, %v756
        %1621 = vadd.xlane.f32.xlu0 %v1620
        %v1622 = vpop.xlane.xlu0 %1621
        %v1623 = vadd.f32 %v758, %v760
        %v1624 = vadd.f32 %v1623, %v762
        %v1625 = vadd.f32 %v1624, %v764
        %1626 = vadd.xlane.f32.xlu0 %v1625
        %v1627 = vpop.xlane.xlu0 %1626
        %v1628 = vadd.f32 %v766, %v768
        %v1629 = vadd.f32 %v1628, %v770
        %v1630 = vadd.f32 %v1629, %v772
        %1631 = vadd.xlane.f32.xlu0 %v1630
        %v1632 = vpop.xlane.xlu0 %1631
        %v1633 = vadd.f32 %v774, %v776
        %v1634 = vadd.f32 %v1633, %v778
        %v1635 = vadd.f32 %v1634, %v780
        %1636 = vadd.xlane.f32.xlu0 %v1635
        %v1637 = vpop.xlane.xlu0 %1636
        %v1638 = vadd.f32 %v782, %v784
        %v1639 = vadd.f32 %v1638, %v786
        %v1640 = vadd.f32 %v1639, %v788
        %1641 = vadd.xlane.f32.xlu0 %v1640
        %v1642 = vpop.xlane.xlu0 %1641
        %v1643 = vadd.f32 %v790, %v792
        %v1644 = vadd.f32 %v1643, %v794
        %v1645 = vadd.f32 %v1644, %v796
        %1646 = vadd.xlane.f32.xlu0 %v1645
        %v1647 = vpop.xlane.xlu0 %1646
        %v1648 = vadd.f32 %v798, %v800
        %v1649 = vadd.f32 %v1648, %v802
        %v1650 = vadd.f32 %v1649, %v804
        %1651 = vadd.xlane.f32.xlu0 %v1650
        %v1652 = vpop.xlane.xlu0 %1651
        %v1653 = vsub.f32 %v1577, %v678
        %v1654 = vsub.f32 %v1577, %v680
        %v1655 = vsub.f32 %v1577, %v682
        %v1656 = vsub.f32 %v1577, %v684
        %v1657 = vsub.f32 %v1582, %v686
        %v1658 = vsub.f32 %v1582, %v688
        %v1659 = vsub.f32 %v1582, %v690
        %v1660 = vsub.f32 %v1582, %v692
        %v1661 = vsub.f32 %v1587, %v694
        %v1662 = vsub.f32 %v1587, %v696
        %v1663 = vsub.f32 %v1587, %v698
        %v1664 = vsub.f32 %v1587, %v700
        %v1665 = vsub.f32 %v1592, %v702
        %v1666 = vsub.f32 %v1592, %v704
        %v1667 = vsub.f32 %v1592, %v706
        %v1668 = vsub.f32 %v1592, %v708
        %v1669 = vsub.f32 %v1597, %v710
        %v1670 = vsub.f32 %v1597, %v712
        %v1671 = vsub.f32 %v1597, %v714
        %v1672 = vsub.f32 %v1597, %v716
        %v1673 = vsub.f32 %v1602, %v718
        %v1674 = vsub.f32 %v1602, %v720
        %v1675 = vsub.f32 %v1602, %v722
        %v1676 = vsub.f32 %v1602, %v724
        %v1677 = vsub.f32 %v1607, %v726
        %v1678 = vsub.f32 %v1607, %v728
        %v1679 = vsub.f32 %v1607, %v730
        %v1680 = vsub.f32 %v1607, %v732
        %v1681 = vsub.f32 %v1612, %v734
        %v1682 = vsub.f32 %v1612, %v736
        %v1683 = vsub.f32 %v1612, %v738
        %v1684 = vsub.f32 %v1612, %v740
        %v1685 = vsub.f32 %v1617, %v742
        %v1686 = vsub.f32 %v1617, %v744
        %v1687 = vsub.f32 %v1617, %v746
        %v1688 = vsub.f32 %v1617, %v748
        %v1689 = vsub.f32 %v1622, %v750
        %v1690 = vsub.f32 %v1622, %v752
        %v1691 = vsub.f32 %v1622, %v754
        %v1692 = vsub.f32 %v1622, %v756
        %v1693 = vsub.f32 %v1627, %v758
        %v1694 = vsub.f32 %v1627, %v760
        %v1695 = vsub.f32 %v1627, %v762
        %v1696 = vsub.f32 %v1627, %v764
        %v1697 = vsub.f32 %v1632, %v766
        %v1698 = vsub.f32 %v1632, %v768
        %v1699 = vsub.f32 %v1632, %v770
        %v1700 = vsub.f32 %v1632, %v772
        %v1701 = vsub.f32 %v1637, %v774
        %v1702 = vsub.f32 %v1637, %v776
        %v1703 = vsub.f32 %v1637, %v778
        %v1704 = vsub.f32 %v1637, %v780
        %v1705 = vsub.f32 %v1642, %v782
        %v1706 = vsub.f32 %v1642, %v784
        %v1707 = vsub.f32 %v1642, %v786
        %v1708 = vsub.f32 %v1642, %v788
        %v1709 = vsub.f32 %v1647, %v790
        %v1710 = vsub.f32 %v1647, %v792
        %v1711 = vsub.f32 %v1647, %v794
        %v1712 = vsub.f32 %v1647, %v796
        %v1713 = vsub.f32 %v1652, %v798
        %v1714 = vsub.f32 %v1652, %v800
        %v1715 = vsub.f32 %v1652, %v802
        %v1716 = vsub.f32 %v1652, %v804
        %v1717 = vadd.f32 %v1653, %v1446
        %v1718 = vadd.f32 %v1654, %v1448
        %v1719 = vadd.f32 %v1655, %v1450
        %v1720 = vadd.f32 %v1656, %v1452
        %v1721 = vadd.f32 %v1657, %v1454
        %v1722 = vadd.f32 %v1658, %v1456
        %v1723 = vadd.f32 %v1659, %v1458
        %v1724 = vadd.f32 %v1660, %v1460
        %v1725 = vadd.f32 %v1661, %v1462
        %v1726 = vadd.f32 %v1662, %v1464
        %v1727 = vadd.f32 %v1663, %v1466
        %v1728 = vadd.f32 %v1664, %v1468
        %v1729 = vadd.f32 %v1665, %v1470
        %v1730 = vadd.f32 %v1666, %v1472
        %v1731 = vadd.f32 %v1667, %v1474
        %v1732 = vadd.f32 %v1668, %v1476
        %v1733 = vadd.f32 %v1669, %v1478
        %v1734 = vadd.f32 %v1670, %v1480
        %v1735 = vadd.f32 %v1671, %v1482
        %v1736 = vadd.f32 %v1672, %v1484
        %v1737 = vadd.f32 %v1673, %v1486
        %v1738 = vadd.f32 %v1674, %v1488
        %v1739 = vadd.f32 %v1675, %v1490
        %v1740 = vadd.f32 %v1676, %v1492
        %v1741 = vadd.f32 %v1677, %v1494
        %v1742 = vadd.f32 %v1678, %v1496
        %v1743 = vadd.f32 %v1679, %v1498
        %v1744 = vadd.f32 %v1680, %v1500
        %v1745 = vadd.f32 %v1681, %v1502
        %v1746 = vadd.f32 %v1682, %v1504
        %v1747 = vadd.f32 %v1683, %v1506
        %v1748 = vadd.f32 %v1684, %v1508
        %v1749 = vadd.f32 %v1685, %v1510
        %v1750 = vadd.f32 %v1686, %v1512
        %v1751 = vadd.f32 %v1687, %v1514
        %v1752 = vadd.f32 %v1688, %v1516
        %v1753 = vadd.f32 %v1689, %v1518
        %v1754 = vadd.f32 %v1690, %v1520
        %v1755 = vadd.f32 %v1691, %v1522
        %v1756 = vadd.f32 %v1692, %v1524
        %v1757 = vadd.f32 %v1693, %v1526
        %v1758 = vadd.f32 %v1694, %v1528
        %v1759 = vadd.f32 %v1695, %v1530
        %v1760 = vadd.f32 %v1696, %v1532
        %v1761 = vadd.f32 %v1697, %v1534
        %v1762 = vadd.f32 %v1698, %v1536
        %v1763 = vadd.f32 %v1699, %v1538
        %v1764 = vadd.f32 %v1700, %v1540
        %v1765 = vadd.f32 %v1701, %v1542
        %v1766 = vadd.f32 %v1702, %v1544
        %v1767 = vadd.f32 %v1703, %v1546
        %v1768 = vadd.f32 %v1704, %v1548
        %v1769 = vadd.f32 %v1705, %v1550
        %v1770 = vadd.f32 %v1706, %v1552
        %v1771 = vadd.f32 %v1707, %v1554
        %v1772 = vadd.f32 %v1708, %v1556
        %v1773 = vadd.f32 %v1709, %v1558
        %v1774 = vadd.f32 %v1710, %v1560
        %v1775 = vadd.f32 %v1711, %v1562
        %v1776 = vadd.f32 %v1712, %v1564
        %v1777 = vadd.f32 %v1713, %v1566
        %v1778 = vadd.f32 %v1714, %v1568
        %v1779 = vadd.f32 %v1715, %v1570
        %v1780 = vadd.f32 %v1716, %v1572
        %v1781 = vrcp.pop %v1717
        %v1782 = vrcp.pop %v1718
        %v1783 = vrcp.pop %v1719
        %v1784 = vrcp.pop %v1720
        %v1785 = vrcp.pop %v1721
        %v1786 = vrcp.pop %v1722
        %v1787 = vrcp.pop %v1723
        %v1788 = vrcp.pop %v1724
        %v1789 = vrcp.pop %v1725
        %v1790 = vrcp.pop %v1726
        %v1791 = vrcp.pop %v1727
        %v1792 = vrcp.pop %v1728
        %v1793 = vrcp.pop %v1729
        %v1794 = vrcp.pop %v1730
        %v1795 = vrcp.pop %v1731
        %v1796 = vrcp.pop %v1732
        %v1797 = vrcp.pop %v1733
        %v1798 = vrcp.pop %v1734
        %v1799 = vrcp.pop %v1735
        %v1800 = vrcp.pop %v1736
        %v1801 = vrcp.pop %v1737
        %v1802 = vrcp.pop %v1738
        %v1803 = vrcp.pop %v1739
        %v1804 = vrcp.pop %v1740
        %v1805 = vrcp.pop %v1741
        %v1806 = vrcp.pop %v1742
        %v1807 = vrcp.pop %v1743
        %v1808 = vrcp.pop %v1744
        %v1809 = vrcp.pop %v1745
        %v1810 = vrcp.pop %v1746
        %v1811 = vrcp.pop %v1747
        %v1812 = vrcp.pop %v1748
        %v1813 = vrcp.pop %v1749
        %v1814 = vrcp.pop %v1750
        %v1815 = vrcp.pop %v1751
        %v1816 = vrcp.pop %v1752
        %v1817 = vrcp.pop %v1753
        %v1818 = vrcp.pop %v1754
        %v1819 = vrcp.pop %v1755
        %v1820 = vrcp.pop %v1756
        %v1821 = vrcp.pop %v1757
        %v1822 = vrcp.pop %v1758
        %v1823 = vrcp.pop %v1759
        %v1824 = vrcp.pop %v1760
        %v1825 = vrcp.pop %v1761
        %v1826 = vrcp.pop %v1762
        %v1827 = vrcp.pop %v1763
        %v1828 = vrcp.pop %v1764
        %v1829 = vrcp.pop %v1765
        %v1830 = vrcp.pop %v1766
        %v1831 = vrcp.pop %v1767
        %v1832 = vrcp.pop %v1768
        %v1833 = vrcp.pop %v1769
        %v1834 = vrcp.pop %v1770
        %v1835 = vrcp.pop %v1771
        %v1836 = vrcp.pop %v1772
        %v1837 = vrcp.pop %v1773
        %v1838 = vrcp.pop %v1774
        %v1839 = vrcp.pop %v1775
        %v1840 = vrcp.pop %v1776
        %v1841 = vrcp.pop %v1777
        %v1842 = vrcp.pop %v1778
        %v1843 = vrcp.pop %v1779
        %v1844 = vrcp.pop %v1780
        %v1845 = vmul.f32 %v1717, %v1781
        %v1846 = vmul.f32 %v1718, %v1782
        %v1847 = vmul.f32 %v1719, %v1783
        %v1848 = vmul.f32 %v1720, %v1784
        %v1849 = vmul.f32 %v1721, %v1785
        %v1850 = vmul.f32 %v1722, %v1786
        %v1851 = vmul.f32 %v1723, %v1787
        %v1852 = vmul.f32 %v1724, %v1788
        %v1853 = vmul.f32 %v1725, %v1789
        %v1854 = vmul.f32 %v1726, %v1790
        %v1855 = vmul.f32 %v1727, %v1791
        %v1856 = vmul.f32 %v1728, %v1792
        %v1857 = vmul.f32 %v1729, %v1793
        %v1858 = vmul.f32 %v1730, %v1794
        %v1859 = vmul.f32 %v1731, %v1795
        %v1860 = vmul.f32 %v1732, %v1796
        %v1861 = vmul.f32 %v1733, %v1797
        %v1862 = vmul.f32 %v1734, %v1798
        %v1863 = vmul.f32 %v1735, %v1799
        %v1864 = vmul.f32 %v1736, %v1800
        %v1865 = vmul.f32 %v1737, %v1801
        %v1866 = vmul.f32 %v1738, %v1802
        %v1867 = vmul.f32 %v1739, %v1803
        %v1868 = vmul.f32 %v1740, %v1804
        %v1869 = vmul.f32 %v1741, %v1805
        %v1870 = vmul.f32 %v1742, %v1806
        %v1871 = vmul.f32 %v1743, %v1807
        %v1872 = vmul.f32 %v1744, %v1808
        %v1873 = vmul.f32 %v1745, %v1809
        %v1874 = vmul.f32 %v1746, %v1810
        %v1875 = vmul.f32 %v1747, %v1811
        %v1876 = vmul.f32 %v1748, %v1812
        %v1877 = vmul.f32 %v1749, %v1813
        %v1878 = vmul.f32 %v1750, %v1814
        %v1879 = vmul.f32 %v1751, %v1815
        %v1880 = vmul.f32 %v1752, %v1816
        %v1881 = vmul.f32 %v1753, %v1817
        %v1882 = vmul.f32 %v1754, %v1818
        %v1883 = vmul.f32 %v1755, %v1819
        %v1884 = vmul.f32 %v1756, %v1820
        %v1885 = vmul.f32 %v1757, %v1821
        %v1886 = vmul.f32 %v1758, %v1822
        %v1887 = vmul.f32 %v1759, %v1823
        %v1888 = vmul.f32 %v1760, %v1824
        %v1889 = vmul.f32 %v1761, %v1825
        %v1890 = vmul.f32 %v1762, %v1826
        %v1891 = vmul.f32 %v1763, %v1827
        %v1892 = vmul.f32 %v1764, %v1828
        %v1893 = vmul.f32 %v1765, %v1829
        %v1894 = vmul.f32 %v1766, %v1830
        %v1895 = vmul.f32 %v1767, %v1831
        %v1896 = vmul.f32 %v1768, %v1832
        %v1897 = vmul.f32 %v1769, %v1833
        %v1898 = vmul.f32 %v1770, %v1834
        %v1899 = vmul.f32 %v1771, %v1835
        %v1900 = vmul.f32 %v1772, %v1836
        %v1901 = vmul.f32 %v1773, %v1837
        %v1902 = vmul.f32 %v1774, %v1838
        %v1903 = vmul.f32 %v1775, %v1839
        %v1904 = vmul.f32 %v1776, %v1840
        %v1905 = vmul.f32 %v1777, %v1841
        %v1906 = vmul.f32 %v1778, %v1842
        %v1907 = vmul.f32 %v1779, %v1843
        %v1908 = vmul.f32 %v1780, %v1844
        %v1909 = vsub.f32 2.0, %v1845
        %v1910 = vsub.f32 2.0, %v1846
        %v1911 = vsub.f32 2.0, %v1847
        %v1912 = vsub.f32 2.0, %v1848
        %v1913 = vsub.f32 2.0, %v1849
        %v1914 = vsub.f32 2.0, %v1850
        %v1915 = vsub.f32 2.0, %v1851
        %v1916 = vsub.f32 2.0, %v1852
        %v1917 = vsub.f32 2.0, %v1853
        %v1918 = vsub.f32 2.0, %v1854
        %v1919 = vsub.f32 2.0, %v1855
        %v1920 = vsub.f32 2.0, %v1856
        %v1921 = vsub.f32 2.0, %v1857
        %v1922 = vsub.f32 2.0, %v1858
        %v1923 = vsub.f32 2.0, %v1859
        %v1924 = vsub.f32 2.0, %v1860
        %v1925 = vsub.f32 2.0, %v1861
        %v1926 = vsub.f32 2.0, %v1862
        %v1927 = vsub.f32 2.0, %v1863
        %v1928 = vsub.f32 2.0, %v1864
        %v1929 = vsub.f32 2.0, %v1865
        %v1930 = vsub.f32 2.0, %v1866
        %v1931 = vsub.f32 2.0, %v1867
        %v1932 = vsub.f32 2.0, %v1868
        %v1933 = vsub.f32 2.0, %v1869
        %v1934 = vsub.f32 2.0, %v1870
        %v1935 = vsub.f32 2.0, %v1871
        %v1936 = vsub.f32 2.0, %v1872
        %v1937 = vsub.f32 2.0, %v1873
        %v1938 = vsub.f32 2.0, %v1874
        %v1939 = vsub.f32 2.0, %v1875
        %v1940 = vsub.f32 2.0, %v1876
        %v1941 = vsub.f32 2.0, %v1877
        %v1942 = vsub.f32 2.0, %v1878
        %v1943 = vsub.f32 2.0, %v1879
        %v1944 = vsub.f32 2.0, %v1880
        %v1945 = vsub.f32 2.0, %v1881
        %v1946 = vsub.f32 2.0, %v1882
        %v1947 = vsub.f32 2.0, %v1883
        %v1948 = vsub.f32 2.0, %v1884
        %v1949 = vsub.f32 2.0, %v1885
        %v1950 = vsub.f32 2.0, %v1886
        %v1951 = vsub.f32 2.0, %v1887
        %v1952 = vsub.f32 2.0, %v1888
        %v1953 = vsub.f32 2.0, %v1889
        %v1954 = vsub.f32 2.0, %v1890
        %v1955 = vsub.f32 2.0, %v1891
        %v1956 = vsub.f32 2.0, %v1892
        %v1957 = vsub.f32 2.0, %v1893
        %v1958 = vsub.f32 2.0, %v1894
        %v1959 = vsub.f32 2.0, %v1895
        %v1960 = vsub.f32 2.0, %v1896
        %v1961 = vsub.f32 2.0, %v1897
        %v1962 = vsub.f32 2.0, %v1898
        %v1963 = vsub.f32 2.0, %v1899
        %v1964 = vsub.f32 2.0, %v1900
        %v1965 = vsub.f32 2.0, %v1901
        %v1966 = vsub.f32 2.0, %v1902
        %v1967 = vsub.f32 2.0, %v1903
        %v1968 = vsub.f32 2.0, %v1904
        %v1969 = vsub.f32 2.0, %v1905
        %v1970 = vsub.f32 2.0, %v1906
        %v1971 = vsub.f32 2.0, %v1907
        %v1972 = vsub.f32 2.0, %v1908
        %v1973 = vmul.f32 %v1781, %v1909
        %v1974 = vmul.f32 %v1782, %v1910
        %v1975 = vmul.f32 %v1783, %v1911
        %v1976 = vmul.f32 %v1784, %v1912
        %v1977 = vmul.f32 %v1785, %v1913
        %v1978 = vmul.f32 %v1786, %v1914
        %v1979 = vmul.f32 %v1787, %v1915
        %v1980 = vmul.f32 %v1788, %v1916
        %v1981 = vmul.f32 %v1789, %v1917
        %v1982 = vmul.f32 %v1790, %v1918
        %v1983 = vmul.f32 %v1791, %v1919
        %v1984 = vmul.f32 %v1792, %v1920
        %v1985 = vmul.f32 %v1793, %v1921
        %v1986 = vmul.f32 %v1794, %v1922
        %v1987 = vmul.f32 %v1795, %v1923
        %v1988 = vmul.f32 %v1796, %v1924
        %v1989 = vmul.f32 %v1797, %v1925
        %v1990 = vmul.f32 %v1798, %v1926
        %v1991 = vmul.f32 %v1799, %v1927
        %v1992 = vmul.f32 %v1800, %v1928
        %v1993 = vmul.f32 %v1801, %v1929
        %v1994 = vmul.f32 %v1802, %v1930
        %v1995 = vmul.f32 %v1803, %v1931
        %v1996 = vmul.f32 %v1804, %v1932
        %v1997 = vmul.f32 %v1805, %v1933
        %v1998 = vmul.f32 %v1806, %v1934
        %v1999 = vmul.f32 %v1807, %v1935
        %v2000 = vmul.f32 %v1808, %v1936
        %v2001 = vmul.f32 %v1809, %v1937
        %v2002 = vmul.f32 %v1810, %v1938
        %v2003 = vmul.f32 %v1811, %v1939
        %v2004 = vmul.f32 %v1812, %v1940
        %v2005 = vmul.f32 %v1813, %v1941
        %v2006 = vmul.f32 %v1814, %v1942
        %v2007 = vmul.f32 %v1815, %v1943
        %v2008 = vmul.f32 %v1816, %v1944
        %v2009 = vmul.f32 %v1817, %v1945
        %v2010 = vmul.f32 %v1818, %v1946
        %v2011 = vmul.f32 %v1819, %v1947
        %v2012 = vmul.f32 %v1820, %v1948
        %v2013 = vmul.f32 %v1821, %v1949
        %v2014 = vmul.f32 %v1822, %v1950
        %v2015 = vmul.f32 %v1823, %v1951
        %v2016 = vmul.f32 %v1824, %v1952
        %v2017 = vmul.f32 %v1825, %v1953
        %v2018 = vmul.f32 %v1826, %v1954
        %v2019 = vmul.f32 %v1827, %v1955
        %v2020 = vmul.f32 %v1828, %v1956
        %v2021 = vmul.f32 %v1829, %v1957
        %v2022 = vmul.f32 %v1830, %v1958
        %v2023 = vmul.f32 %v1831, %v1959
        %v2024 = vmul.f32 %v1832, %v1960
        %v2025 = vmul.f32 %v1833, %v1961
        %v2026 = vmul.f32 %v1834, %v1962
        %v2027 = vmul.f32 %v1835, %v1963
        %v2028 = vmul.f32 %v1836, %v1964
        %v2029 = vmul.f32 %v1837, %v1965
        %v2030 = vmul.f32 %v1838, %v1966
        %v2031 = vmul.f32 %v1839, %v1967
        %v2032 = vmul.f32 %v1840, %v1968
        %v2033 = vmul.f32 %v1841, %v1969
        %v2034 = vmul.f32 %v1842, %v1970
        %v2035 = vmul.f32 %v1843, %v1971
        %v2036 = vmul.f32 %v1844, %v1972
        %v2037 = vmul.f32 %v1446, %v1973
        %v2038 = vmul.f32 %v1448, %v1974
        %v2039 = vmul.f32 %v1450, %v1975
        %v2040 = vmul.f32 %v1452, %v1976
        %v2041 = vmul.f32 %v1454, %v1977
        %v2042 = vmul.f32 %v1456, %v1978
        %v2043 = vmul.f32 %v1458, %v1979
        %v2044 = vmul.f32 %v1460, %v1980
        %v2045 = vmul.f32 %v1462, %v1981
        %v2046 = vmul.f32 %v1464, %v1982
        %v2047 = vmul.f32 %v1466, %v1983
        %v2048 = vmul.f32 %v1468, %v1984
        %v2049 = vmul.f32 %v1470, %v1985
        %v2050 = vmul.f32 %v1472, %v1986
        %v2051 = vmul.f32 %v1474, %v1987
        %v2052 = vmul.f32 %v1476, %v1988
        %v2053 = vmul.f32 %v1478, %v1989
        %v2054 = vmul.f32 %v1480, %v1990
        %v2055 = vmul.f32 %v1482, %v1991
        %v2056 = vmul.f32 %v1484, %v1992
        %v2057 = vmul.f32 %v1486, %v1993
        %v2058 = vmul.f32 %v1488, %v1994
        %v2059 = vmul.f32 %v1490, %v1995
        %v2060 = vmul.f32 %v1492, %v1996
        %v2061 = vmul.f32 %v1494, %v1997
        %v2062 = vmul.f32 %v1496, %v1998
        %v2063 = vmul.f32 %v1498, %v1999
        %v2064 = vmul.f32 %v1500, %v2000
        %v2065 = vmul.f32 %v1502, %v2001
        %v2066 = vmul.f32 %v1504, %v2002
        %v2067 = vmul.f32 %v1506, %v2003
        %v2068 = vmul.f32 %v1508, %v2004
        %v2069 = vmul.f32 %v1510, %v2005
        %v2070 = vmul.f32 %v1512, %v2006
        %v2071 = vmul.f32 %v1514, %v2007
        %v2072 = vmul.f32 %v1516, %v2008
        %v2073 = vmul.f32 %v1518, %v2009
        %v2074 = vmul.f32 %v1520, %v2010
        %v2075 = vmul.f32 %v1522, %v2011
        %v2076 = vmul.f32 %v1524, %v2012
        %v2077 = vmul.f32 %v1526, %v2013
        %v2078 = vmul.f32 %v1528, %v2014
        %v2079 = vmul.f32 %v1530, %v2015
        %v2080 = vmul.f32 %v1532, %v2016
        %v2081 = vmul.f32 %v1534, %v2017
        %v2082 = vmul.f32 %v1536, %v2018
        %v2083 = vmul.f32 %v1538, %v2019
        %v2084 = vmul.f32 %v1540, %v2020
        %v2085 = vmul.f32 %v1542, %v2021
        %v2086 = vmul.f32 %v1544, %v2022
        %v2087 = vmul.f32 %v1546, %v2023
        %v2088 = vmul.f32 %v1548, %v2024
        %v2089 = vmul.f32 %v1550, %v2025
        %v2090 = vmul.f32 %v1552, %v2026
        %v2091 = vmul.f32 %v1554, %v2027
        %v2092 = vmul.f32 %v1556, %v2028
        %v2093 = vmul.f32 %v1558, %v2029
        %v2094 = vmul.f32 %v1560, %v2030
        %v2095 = vmul.f32 %v1562, %v2031
        %v2096 = vmul.f32 %v1564, %v2032
        %v2097 = vmul.f32 %v1566, %v2033
        %v2098 = vmul.f32 %v1568, %v2034
        %v2099 = vmul.f32 %v1570, %v2035
        %v2100 = vmul.f32 %v1572, %v2036
        %2101 = vst [vmem:[%s176] sm:$0xff] %v2037
        %2102 = vst [vmem:[%s176 + $0x8] sm:$0xff] %v2038
        %2103 = vst [vmem:[%s176 + $0x10] sm:$0xff] %v2039
        %2104 = vst [vmem:[%s176 + $0x18] sm:$0xff] %v2040
        %2105 = vst [vmem:[%s176 + $0x20] sm:$0xff] %v2041
        %2106 = vst [vmem:[%s176 + $0x28] sm:$0xff] %v2042
        %2107 = vst [vmem:[%s176 + $0x30] sm:$0xff] %v2043
        %2108 = vst [vmem:[%s176 + $0x38] sm:$0xff] %v2044
        %2109 = vst [vmem:[%s176 + $0x40] sm:$0xff] %v2045
        %2110 = vst [vmem:[%s176 + $0x48] sm:$0xff] %v2046
        %2111 = vst [vmem:[%s176 + $0x50] sm:$0xff] %v2047
        %2112 = vst [vmem:[%s176 + $0x58] sm:$0xff] %v2048
        %2113 = vst [vmem:[%s176 + $0x60] sm:$0xff] %v2049
        %2114 = vst [vmem:[%s176 + $0x68] sm:$0xff] %v2050
        %2115 = vst [vmem:[%s176 + $0x70] sm:$0xff] %v2051
        %2116 = vst [vmem:[%s176 + $0x78] sm:$0xff] %v2052
        %2117 = vst [vmem:[%s176 + $0x80] sm:$0xff] %v2053
        %2118 = vst [vmem:[%s176 + $0x88] sm:$0xff] %v2054
        %2119 = vst [vmem:[%s176 + $0x90] sm:$0xff] %v2055
        %2120 = vst [vmem:[%s176 + $0x98] sm:$0xff] %v2056
        %2121 = vst [vmem:[%s176 + $0xa0] sm:$0xff] %v2057
        %2122 = vst [vmem:[%s176 + $0xa8] sm:$0xff] %v2058
        %2123 = vst [vmem:[%s176 + $0xb0] sm:$0xff] %v2059
        %2124 = vst [vmem:[%s176 + $0xb8] sm:$0xff] %v2060
        %2125 = vst [vmem:[%s176 + $0xc0] sm:$0xff] %v2061
        %2126 = vst [vmem:[%s176 + $0xc8] sm:$0xff] %v2062
        %2127 = vst [vmem:[%s176 + $0xd0] sm:$0xff] %v2063
        %2128 = vst [vmem:[%s176 + $0xd8] sm:$0xff] %v2064
        %2129 = vst [vmem:[%s176 + $0xe0] sm:$0xff] %v2065
        %2130 = vst [vmem:[%s176 + $0xe8] sm:$0xff] %v2066
        %2131 = vst [vmem:[%s176 + $0xf0] sm:$0xff] %v2067
        %2132 = vst [vmem:[%s176 + $0xf8] sm:$0xff] %v2068
        %2133 = vst [vmem:[%s176 + $0x100] sm:$0xff] %v2069
        %2134 = vst [vmem:[%s176 + $0x108] sm:$0xff] %v2070
        %2135 = vst [vmem:[%s176 + $0x110] sm:$0xff] %v2071
        %2136 = vst [vmem:[%s176 + $0x118] sm:$0xff] %v2072
        %2137 = vst [vmem:[%s176 + $0x120] sm:$0xff] %v2073
        %2138 = vst [vmem:[%s176 + $0x128] sm:$0xff] %v2074
        %2139 = vst [vmem:[%s176 + $0x130] sm:$0xff] %v2075
        %2140 = vst [vmem:[%s176 + $0x138] sm:$0xff] %v2076
        %2141 = vst [vmem:[%s176 + $0x140] sm:$0xff] %v2077
        %2142 = vst [vmem:[%s176 + $0x148] sm:$0xff] %v2078
        %2143 = vst [vmem:[%s176 + $0x150] sm:$0xff] %v2079
        %2144 = vst [vmem:[%s176 + $0x158] sm:$0xff] %v2080
        %2145 = vst [vmem:[%s176 + $0x160] sm:$0xff] %v2081
        %2146 = vst [vmem:[%s176 + $0x168] sm:$0xff] %v2082
        %2147 = vst [vmem:[%s176 + $0x170] sm:$0xff] %v2083
        %2148 = vst [vmem:[%s176 + $0x178] sm:$0xff] %v2084
        %2149 = vst [vmem:[%s176 + $0x180] sm:$0xff] %v2085
        %2150 = vst [vmem:[%s176 + $0x188] sm:$0xff] %v2086
        %2151 = vst [vmem:[%s176 + $0x190] sm:$0xff] %v2087
        %2152 = vst [vmem:[%s176 + $0x198] sm:$0xff] %v2088
        %2153 = vst [vmem:[%s176 + $0x1a0] sm:$0xff] %v2089
        %2154 = vst [vmem:[%s176 + $0x1a8] sm:$0xff] %v2090
        %2155 = vst [vmem:[%s176 + $0x1b0] sm:$0xff] %v2091
        %2156 = vst [vmem:[%s176 + $0x1b8] sm:$0xff] %v2092
        %2157 = vst [vmem:[%s176 + $0x1c0] sm:$0xff] %v2093
        %2158 = vst [vmem:[%s176 + $0x1c8] sm:$0xff] %v2094
        %2159 = vst [vmem:[%s176 + $0x1d0] sm:$0xff] %v2095
        %2160 = vst [vmem:[%s176 + $0x1d8] sm:$0xff] %v2096
        %2161 = vst [vmem:[%s176 + $0x1e0] sm:$0xff] %v2097
        %2162 = vst [vmem:[%s176 + $0x1e8] sm:$0xff] %v2098
        %2163 = vst [vmem:[%s176 + $0x1f0] sm:$0xff] %v2099
        %2164 = vst [vmem:[%s176 + $0x1f8] sm:$0xff] %v2100
        %s2165 = sand.u32 %s75, 1
        %s2166 = scalar_lea.sflag [#allocation4], %s2165
        %s2167 = sand.u32 %s75, 1
        %s2168 = smul.addr %s2167, 512
        %s2169 = scalar_lea.vmem [#allocation7], %s2168
        // Predicated region
        $region37: #{tpu_custom_call.1} parent=27 // pred_check
          %p2170 = pneg %p85
        $region38: #{tpu_custom_call.1} parent=27 // pred_check_branch
          %2172 = sbr.rel (%p2170) target = $region40
        $region39: #{tpu_custom_call.1} parent=27 // pred_region
          %s2173 = smul.u32 16, %s20
          %s2175 = ssub.s32 8192, 8192
          %2176 = vsyncadd %s2166, %s2175
          %s2177 = smul.addr %s2173, 4
          %s2178 = smul.addr %s2177, 128
          %s2179 = scalar_lea.hbm %s2, %s2178
          %s2180 = sshll.u32 %s2169, 4
          %s2181 = int_to_ptr.vmem [resolvable:$true] %s2180
          %2186 = dma.vmem_to_hbm [thread:$0]  %s2181, 8192, %s2179, %s2166, 512, 512, 32
        $region40: #{tpu_custom_call.1} parent=27 // pred_fallthru
          _
      $region28: #{tpu_custom_call.1} parent=5 // pred_fallthru
        _
      %p2187 = scmp.le.s32.totalorder 2, %s15
      // Predicated region
      $region41: #{tpu_custom_call.1} parent=5 // pred_check
        %p2188 = pneg %p2187
      $region42: #{tpu_custom_call.1} parent=5 // pred_check_branch
        %2190 = sbr.rel (%p2188) target = $region44
      $region43: #{tpu_custom_call.1} parent=5 // pred_region
        %s2191 = ssub.s32 %s15, 2
        // Predicated region
        $region45: #{tpu_custom_call.1} parent=43 // pred_check
          %p2192 = pneg %p91
        $region46: #{tpu_custom_call.1} parent=43 // pred_check_branch
          %2194 = sbr.rel (%p2192) target = $region48
        $region47: #{tpu_custom_call.1} parent=43 // pred_region
          %s2195 = sand.u32 %s76, 1
          %s2196 = scalar_lea.sflag [#allocation4], %s2195
          %s2197 = sand.u32 %s76, 1
          %s2198 = smul.addr %s2197, 512
          %s2199 = scalar_lea.vmem [#allocation7], %s2198
          %2200 = dma.done %s2196, 8192
        $region48: #{tpu_custom_call.1} parent=43 // pred_fallthru
          _
      $region44: #{tpu_custom_call.1} parent=5 // pred_fallthru
        _
    $region6: #{tpu_custom_call.1} parent=1 // loop_footer
      %s19 = sadd.s32 1, %s15
    $region7: #{tpu_custom_call.1} parent=1 // loop_footer_branch
      %14 = sbr.rel target = $region3
    $region8: #{tpu_custom_call.1} parent=1 // loop_exit
      _
    %2201 = vsyncpa [#allocation3], 1
    %s2202 = scalar_lea.sflag [#allocation3], 1
    %2203 = vsyncpa %s2202, 1
    %2204 = vsyncpa [#allocation6], 1
    %2205 = vsyncpa [#allocation4], 1
    %s2206 = scalar_lea.sflag [#allocation4], 1
    %2207 = vsyncpa %s2206, 1

// kernel: tpu_custom_call.1
$region0: #{tpu_custom_call.1}
  #allocation0 [shape = 'u32[]', space=smem, size = 0x4, offset = 0x4, fixed_abs, tag = 'smem constant byte address 0x4 - core index']
  #allocation1 [shape = 'u32[144,128]{1,0:T(1,128)}', space=vmem, size = 0x12000, scoped, tag = 'internal scratch']
  %s0 = inlined_call_operand.hbm [shape: f32[256,128], index: 0, kind: input, shape index: {}]
  %s1 = inlined_call_operand.hbm [shape: f32[128,512], index: 1, kind: input, shape index: {}]
  %s2 = inlined_call_operand.hbm [shape: f32[256,512], index: 2, kind: output, shape index: {}]
  %s3 = sld [smem:[#allocation0]]
  $region49: #{tpu_custom_call.1} parent=0
    _
  %s5 = ssub.s32 1, %s3
  %s6 = scalar_select 0, %s5, %s3
  $region1: #{tpu_custom_call.1} parent=0
    #allocation2 [shape = 'u8[131072]{0}', space=vmem, size = 0x20000, scoped, tag = 'input window, operand 0']
    #allocation3 [shape = 's32[2]{0}', space=sflag, size = 0x8, scoped, tag = 'scoped memory for tpu_custom_call.1']
    #allocation4 [shape = 's32[2]{0}', space=sflag, size = 0x8, scoped, tag = 'scoped memory for tpu_custom_call.1']
    #allocation5 [shape = 'u8[262144]{0}', space=vmem, size = 0x40000, scoped, tag = 'input window, operand 1, single buffered']
    #allocation6 [shape = 's32[1]{0}', space=sflag, size = 0x4, scoped, tag = 'scoped memory for tpu_custom_call.1']
    #allocation7 [shape = 'u8[524288]{0}', space=vmem, size = 0x80000, scoped, tag = 'output window, operand 0']
    %7 = vsyncpa [#allocation3], 0
    %s8 = scalar_lea.sflag [#allocation3], 1
    %9 = vsyncpa %s8, 0
    %10 = vsyncpa [#allocation6], 0
    %11 = vsyncpa [#allocation4], 0
    %s12 = scalar_lea.sflag [#allocation4], 1
    %13 = vsyncpa %s12, 0
    loop: start=0, step=1, limit=4
    $region2: #{tpu_custom_call.1} parent=1 // loop_pre_header
      _
    $region3: #{tpu_custom_call.1} parent=1 // loop_header
      %s15 = sphi 0, %s19
      %p16 = scmp.ge.s32.totalorder %s15, 4
      %s25 = sphi 0, %s27
      %s28 = sphi 0, %s25
      %s29 = sphi 0, %s28
      %s45 = sphi 0, %s29
      %s49 = sphi 0, %s49
      %s51 = sphi 0, %s49
      %s52 = sphi 0, %s51
      %s66 = sphi 0, %s52
      %s72 = sphi 0, %s74
      %s75 = sphi 0, %s72
      %s76 = sphi 0, %s75
      %s92 = sphi 0, %s76
    $region4: #{tpu_custom_call.1} parent=1 // loop_header_branch
      %18 = sbr.rel (%p16) target = $region8
    $region5: #{tpu_custom_call.1} parent=1 // loop_body
      %s20 = ssub.s32 %s15, 1
      %s21 = ssub.s32 %s15, 2
      %s22 = sadd.s32 %s15, 1
      %s23 = ssub.s32 %s15, %s22
      %p24 = scmp.eq.s32.totalorder %s23, 0
      %s26 = sadd.s32 %s25, 1
      %s27 = scalar_select %p24, %s25, %s26
      %p30 = pneg %p24
      %p31 = scmp.eq.s32.totalorder %s15, 1
      %p32 = por %p30, %p31
      %p33 = scmp.ne.s32.totalorder %s25, %s28
      %p34 = scmp.eq.s32.totalorder %s15, 0
      %p35 = por %p33, %p34
      %p36 = scmp.ne.s32.totalorder %s25, %s28
      %p37 = scmp.eq.s32.totalorder %s20, 1
      %p38 = por %p36, %p37
      %p39 = scmp.ne.s32.totalorder %s28, %s29
      %p40 = scmp.eq.s32.totalorder %s20, 0
      %p41 = por %p39, %p40
      %p42 = scmp.ne.s32.totalorder %s28, %s29
      %p43 = scmp.eq.s32.totalorder %s21, 1
      %p44 = por %p42, %p43
      %p46 = scmp.ne.s32.totalorder %s29, %s45
      %p47 = scmp.eq.s32.totalorder %s21, 0
      %p48 = por %p46, %p47
      %s50 = sadd.s32 %s49, 1
      %p53 = scmp.eq.s32.totalorder %s15, 1
      %p54 = scmp.ne.s32.totalorder %s49, %s51
      %p55 = scmp.eq.s32.totalorder %s15, 0
      %p56 = por %p54, %p55
      %p57 = scmp.ne.s32.totalorder %s49, %s51
      %p58 = scmp.eq.s32.totalorder %s20, 1
      %p59 = por %p57, %p58
      %p60 = scmp.ne.s32.totalorder %s51, %s52
      %p61 = scmp.eq.s32.totalorder %s20, 0
      %p62 = por %p60, %p61
      %p63 = scmp.ne.s32.totalorder %s51, %s52
      %p64 = scmp.eq.s32.totalorder %s21, 1
      %p65 = por %p63, %p64
      %p67 = scmp.ne.s32.totalorder %s52, %s66
      %p68 = scmp.eq.s32.totalorder %s21, 0
      %p69 = por %p67, %p68
      %s70 = ssub.s32 %s15, %s22
      %p71 = scmp.eq.s32.totalorder %s70, 0
      %s73 = sadd.s32 %s72, 1
      %s74 = scalar_select %p71, %s72, %s73
      %p77 = pneg %p71
      %p78 = scmp.eq.s32.totalorder %s15, 1
      %p79 = por %p77, %p78
      %p80 = scmp.ne.s32.totalorder %s72, %s75
      %p81 = scmp.eq.s32.totalorder %s15, 0
      %p82 = por %p80, %p81
      %p83 = scmp.ne.s32.totalorder %s72, %s75
      %p84 = scmp.eq.s32.totalorder %s20, 1
      %p85 = por %p83, %p84
      %p86 = scmp.ne.s32.totalorder %s75, %s76
      %p87 = scmp.eq.s32.totalorder %s20, 0
      %p88 = por %p86, %p87
      %p89 = scmp.ne.s32.totalorder %s75, %s76
      %p90 = scmp.eq.s32.totalorder %s21, 1
      %p91 = por %p89, %p90
      %p93 = scmp.ne.s32.totalorder %s76, %s92
      %p94 = scmp.eq.s32.totalorder %s21, 0
      %p95 = por %p93, %p94
      %p96 = scmp.le.s32.totalorder 1, %s15
      %p97 = scmp.lt.s32.totalorder %s15, 3
      %p98 = pnand %p96, %p97
      %p99 = pneg %p98
      // Predicated region
      $region9: #{tpu_custom_call.1} parent=5 // pred_check
        _
      $region10: #{tpu_custom_call.1} parent=5 // pred_check_branch
        %101 = sbr.rel (%p98) target = $region12
      $region11: #{tpu_custom_call.1} parent=5 // pred_region
        %s102 = ssub.s32 %s15, 1
        // Predicated region
        $region13: #{tpu_custom_call.1} parent=11 // pred_check
          %p103 = pneg %p62
        $region14: #{tpu_custom_call.1} parent=11 // pred_check_branch
          %105 = sbr.rel (%p103) target = $region16
        $region15: #{tpu_custom_call.1} parent=11 // pred_region
          %s107 = ssub.s32 8192, 8192
          %108 = vsyncadd [#allocation6], %s107
          %s109 = sshll.u32 [#allocation5], 4
          %s110 = int_to_ptr.vmem [resolvable:$true] %s109
          %115 = dma.hbm_to_vmem [thread:$0]  %s1, 8192, %s110, [#allocation6], 512, 512, 32
        $region16: #{tpu_custom_call.1} parent=11 // pred_fallthru
          _
      $region12: #{tpu_custom_call.1} parent=5 // pred_fallthru
        _
      %p116 = scmp.lt.s32.totalorder %s15, 2
      // Predicated region
      $region17: #{tpu_custom_call.1} parent=5 // pred_check
        %p117 = pneg %p116
      $region18: #{tpu_custom_call.1} parent=5 // pred_check_branch
        %119 = sbr.rel (%p117) target = $region20
      $region19: #{tpu_custom_call.1} parent=5 // pred_region
        // Predicated region
        $region21: #{tpu_custom_call.1} parent=19 // pred_check
          %p120 = pneg %p35
        $region22: #{tpu_custom_call.1} parent=19 // pred_check_branch
          %122 = sbr.rel (%p120) target = $region24
        $region23: #{tpu_custom_call.1} parent=19 // pred_region
          %s123 = sand.u32 %s25, 1
          %s124 = scalar_lea.sflag [#allocation3], %s123
          %s125 = sand.u32 %s25, 1
          %s126 = smul.addr %s125, 128
          %s127 = scalar_lea.vmem [#allocation2], %s126
          %s128 = smul.u32 16, %s15
          %s130 = ssub.s32 2048, 2048
          %131 = vsyncadd %s124, %s130
          %s132 = smul.addr %s128, 128
          %s133 = scalar_lea.hbm %s0, %s132
          %s134 = sshll.u32 %s127, 4
          %s135 = int_to_ptr.vmem [resolvable:$true] %s134
          %140 = dma.hbm_to_vmem [thread:$0]  %s133, 2048, %s135, %s124, 128, 128, 8
        $region24: #{tpu_custom_call.1} parent=19 // pred_fallthru
          _
      $region20: #{tpu_custom_call.1} parent=5 // pred_fallthru
        _
      %p141 = scmp.le.s32.totalorder 1, %s15
      %p142 = scmp.lt.s32.totalorder %s15, 3
      %p143 = pnand %p141, %p142
      %p144 = pneg %p143
      // Predicated region
      $region25: #{tpu_custom_call.1} parent=5 // pred_check
        _
      $region26: #{tpu_custom_call.1} parent=5 // pred_check_branch
        %146 = sbr.rel (%p143) target = $region28
      $region27: #{tpu_custom_call.1} parent=5 // pred_region
        %s147 = ssub.s32 %s15, 1
        %s148 = sand.u32 %s28, 1
        %s149 = scalar_lea.sflag [#allocation3], %s148
        %s150 = sand.u32 %s28, 1
        %s151 = smul.addr %s150, 128
        %s152 = scalar_lea.vmem [#allocation2], %s151
        // Predicated region
        $region29: #{tpu_custom_call.1} parent=27 // pred_check
          %p153 = pneg %p41
        $region30: #{tpu_custom_call.1} parent=27 // pred_check_branch
          %155 = sbr.rel (%p153) target = $region32
        $region31: #{tpu_custom_call.1} parent=27 // pred_region
          %156 = dma.done %s149, 2048
        $region32: #{tpu_custom_call.1} parent=27 // pred_fallthru
          _
        // Predicated region
        $region33: #{tpu_custom_call.1} parent=27 // pred_check
          %p157 = pneg %p62
        $region34: #{tpu_custom_call.1} parent=27 // pred_check_branch
          %159 = sbr.rel (%p157) target = $region36
        $region35: #{tpu_custom_call.1} parent=27 // pred_region
          %160 = dma.done [#allocation6], 8192
        $region36: #{tpu_custom_call.1} parent=27 // pred_fallthru
          _
        %s161 = sand.u32 %s28, 1
        %s162 = scalar_lea.sflag [#allocation3], %s161
        %s163 = sand.u32 %s28, 1
        %s164 = smul.addr %s163, 128
        %s165 = scalar_lea.vmem [#allocation2], %s164
        %p166 = pneg %p41
        %p167 = pneg %p38
        %p168 = pneg %p62
        %p169 = pneg %p59
        %p170 = pneg %p88
        %p171 = pneg %p85
        %s172 = sand.u32 %s75, 1
        %s173 = scalar_lea.sflag [#allocation4], %s172
        %s174 = sand.u32 %s75, 1
        %s175 = smul.addr %s174, 512
        %s176 = scalar_lea.vmem [#allocation7], %s175
        %s177 = smul.u32 16, %s20
        %s178 = smul.u32 16, %s20
        %v179 = vld [vmem:[%s152] sm:$0xff]
        %v180 = vld [vmem:[%s152 + $0x8] sm:$0xff]
        %v181 = vld [vmem:[%s152 + $0x10] sm:$0xff]
        %v182 = vld [vmem:[%s152 + $0x18] sm:$0xff]
        %v183 = vld [vmem:[%s152 + $0x20] sm:$0xff]
        %v184 = vld [vmem:[%s152 + $0x28] sm:$0xff]
        %v185 = vld [vmem:[%s152 + $0x30] sm:$0xff]
        %v186 = vld [vmem:[%s152 + $0x38] sm:$0xff]
        %v187 = vld [vmem:[%s152 + $0x40] sm:$0xff]
        %v188 = vld [vmem:[%s152 + $0x48] sm:$0xff]
        %v189 = vld [vmem:[%s152 + $0x50] sm:$0xff]
        %v190 = vld [vmem:[%s152 + $0x58] sm:$0xff]
        %v191 = vld [vmem:[%s152 + $0x60] sm:$0xff]
        %v192 = vld [vmem:[%s152 + $0x68] sm:$0xff]
        %v193 = vld [vmem:[%s152 + $0x70] sm:$0xff]
        %v194 = vld [vmem:[%s152 + $0x78] sm:$0xff]
        %v195 = vmul.f32 %v179, %v179
        %v196 = vmul.f32 %v180, %v180
        %v197 = vmul.f32 %v181, %v181
        %v198 = vmul.f32 %v182, %v182
        %v199 = vmul.f32 %v183, %v183
        %v200 = vmul.f32 %v184, %v184
        %v201 = vmul.f32 %v185, %v185
        %v202 = vmul.f32 %v186, %v186
        %v203 = vmul.f32 %v187, %v187
        %v204 = vmul.f32 %v188, %v188
        %v205 = vmul.f32 %v189, %v189
        %v206 = vmul.f32 %v190, %v190
        %v207 = vmul.f32 %v191, %v191
        %v208 = vmul.f32 %v192, %v192
        %v209 = vmul.f32 %v193, %v193
        %v210 = vmul.f32 %v194, %v194
        %211 = vadd.xlane.f32.xlu0 %v195
        %v212 = vpop.xlane.xlu0 %211
        %213 = vadd.xlane.f32.xlu0 %v196
        %v214 = vpop.xlane.xlu0 %213
        %215 = vadd.xlane.f32.xlu0 %v197
        %v216 = vpop.xlane.xlu0 %215
        %217 = vadd.xlane.f32.xlu0 %v198
        %v218 = vpop.xlane.xlu0 %217
        %219 = vadd.xlane.f32.xlu0 %v199
        %v220 = vpop.xlane.xlu0 %219
        %221 = vadd.xlane.f32.xlu0 %v200
        %v222 = vpop.xlane.xlu0 %221
        %223 = vadd.xlane.f32.xlu0 %v201
        %v224 = vpop.xlane.xlu0 %223
        %225 = vadd.xlane.f32.xlu0 %v202
        %v226 = vpop.xlane.xlu0 %225
        %227 = vadd.xlane.f32.xlu0 %v203
        %v228 = vpop.xlane.xlu0 %227
        %229 = vadd.xlane.f32.xlu0 %v204
        %v230 = vpop.xlane.xlu0 %229
        %231 = vadd.xlane.f32.xlu0 %v205
        %v232 = vpop.xlane.xlu0 %231
        %233 = vadd.xlane.f32.xlu0 %v206
        %v234 = vpop.xlane.xlu0 %233
        %235 = vadd.xlane.f32.xlu0 %v207
        %v236 = vpop.xlane.xlu0 %235
        %237 = vadd.xlane.f32.xlu0 %v208
        %v238 = vpop.xlane.xlu0 %237
        %239 = vadd.xlane.f32.xlu0 %v209
        %v240 = vpop.xlane.xlu0 %239
        %241 = vadd.xlane.f32.xlu0 %v210
        %v242 = vpop.xlane.xlu0 %241
        %v243 = vrsqrt.pop %v212
        %v244 = vrsqrt.pop %v214
        %v245 = vrsqrt.pop %v216
        %v246 = vrsqrt.pop %v218
        %v247 = vrsqrt.pop %v220
        %v248 = vrsqrt.pop %v222
        %v249 = vrsqrt.pop %v224
        %v250 = vrsqrt.pop %v226
        %v251 = vrsqrt.pop %v228
        %v252 = vrsqrt.pop %v230
        %v253 = vrsqrt.pop %v232
        %v254 = vrsqrt.pop %v234
        %v255 = vrsqrt.pop %v236
        %v256 = vrsqrt.pop %v238
        %v257 = vrsqrt.pop %v240
        %v258 = vrsqrt.pop %v242
        %v259 = vmin.f32 %v243, 1e+12
        %v260 = vmin.f32 %v244, 1e+12
        %v261 = vmin.f32 %v245, 1e+12
        %v262 = vmin.f32 %v246, 1e+12
        %v263 = vmin.f32 %v247, 1e+12
        %v264 = vmin.f32 %v248, 1e+12
        %v265 = vmin.f32 %v249, 1e+12
        %v266 = vmin.f32 %v250, 1e+12
        %v267 = vmin.f32 %v251, 1e+12
        %v268 = vmin.f32 %v252, 1e+12
        %v269 = vmin.f32 %v253, 1e+12
        %v270 = vmin.f32 %v254, 1e+12
        %v271 = vmin.f32 %v255, 1e+12
        %v272 = vmin.f32 %v256, 1e+12
        %v273 = vmin.f32 %v257, 1e+12
        %v274 = vmin.f32 %v258, 1e+12
        %v275 = vmul.f32 %v179, %v259
        %v276 = vmul.f32 %v180, %v260
        %v277 = vmul.f32 %v181, %v261
        %v278 = vmul.f32 %v182, %v262
        %v279 = vmul.f32 %v183, %v263
        %v280 = vmul.f32 %v184, %v264
        %v281 = vmul.f32 %v185, %v265
        %v282 = vmul.f32 %v186, %v266
        %v283 = vmul.f32 %v187, %v267
        %v284 = vmul.f32 %v188, %v268
        %v285 = vmul.f32 %v189, %v269
        %v286 = vmul.f32 %v190, %v270
        %v287 = vmul.f32 %v191, %v271
        %v288 = vmul.f32 %v192, %v272
        %v289 = vmul.f32 %v193, %v273
        %v290 = vmul.f32 %v194, %v274
        %v291 = vld [vmem:[#allocation5] sm:$0xff]
        %v292 = vld [vmem:[#allocation5 + $0x8] sm:$0xff]
        %v293 = vld [vmem:[#allocation5 + $0x10] sm:$0xff]
        %v294 = vld [vmem:[#allocation5 + $0x18] sm:$0xff]
        %v295 = vld [vmem:[#allocation5 + $0x20] sm:$0xff]
        %v296 = vld [vmem:[#allocation5 + $0x28] sm:$0xff]
        %v297 = vld [vmem:[#allocation5 + $0x30] sm:$0xff]
        %v298 = vld [vmem:[#allocation5 + $0x38] sm:$0xff]
        %v299 = vld [vmem:[#allocation5 + $0x40] sm:$0xff]
        %v300 = vld [vmem:[#allocation5 + $0x48] sm:$0xff]
        %v301 = vld [vmem:[#allocation5 + $0x50] sm:$0xff]
        %v302 = vld [vmem:[#allocation5 + $0x58] sm:$0xff]
        %v303 = vld [vmem:[#allocation5 + $0x60] sm:$0xff]
        %v304 = vld [vmem:[#allocation5 + $0x68] sm:$0xff]
        %v305 = vld [vmem:[#allocation5 + $0x70] sm:$0xff]
        %v306 = vld [vmem:[#allocation5 + $0x78] sm:$0xff]
        %v307 = vld [vmem:[#allocation5 + $0x80] sm:$0xff]
        %v308 = vld [vmem:[#allocation5 + $0x88] sm:$0xff]
        %v309 = vld [vmem:[#allocation5 + $0x90] sm:$0xff]
        %v310 = vld [vmem:[#allocation5 + $0x98] sm:$0xff]
        %v311 = vld [vmem:[#allocation5 + $0xa0] sm:$0xff]
        %v312 = vld [vmem:[#allocation5 + $0xa8] sm:$0xff]
        %v313 = vld [vmem:[#allocation5 + $0xb0] sm:$0xff]
        %v314 = vld [vmem:[#allocation5 + $0xb8] sm:$0xff]
        %v315 = vld [vmem:[#allocation5 + $0xc0] sm:$0xff]
        %v316 = vld [vmem:[#allocation5 + $0xc8] sm:$0xff]
        %v317 = vld [vmem:[#allocation5 + $0xd0] sm:$0xff]
        %v318 = vld [vmem:[#allocation5 + $0xd8] sm:$0xff]
        %v319 = vld [vmem:[#allocation5 + $0xe0] sm:$0xff]
        %v320 = vld [vmem:[#allocation5 + $0xe8] sm:$0xff]
        %v321 = vld [vmem:[#allocation5 + $0xf0] sm:$0xff]
        %v322 = vld [vmem:[#allocation5 + $0xf8] sm:$0xff]
        %v323 = vld [vmem:[#allocation5 + $0x100] sm:$0xff]
        %v324 = vld [vmem:[#allocation5 + $0x108] sm:$0xff]
        %v325 = vld [vmem:[#allocation5 + $0x110] sm:$0xff]
        %v326 = vld [vmem:[#allocation5 + $0x118] sm:$0xff]
        %v327 = vld [vmem:[#allocation5 + $0x120] sm:$0xff]
        %v328 = vld [vmem:[#allocation5 + $0x128] sm:$0xff]
        %v329 = vld [vmem:[#allocation5 + $0x130] sm:$0xff]
        %v330 = vld [vmem:[#allocation5 + $0x138] sm:$0xff]
        %v331 = vld [vmem:[#allocation5 + $0x140] sm:$0xff]
        %v332 = vld [vmem:[#allocation5 + $0x148] sm:$0xff]
        %v333 = vld [vmem:[#allocation5 + $0x150] sm:$0xff]
        %v334 = vld [vmem:[#allocation5 + $0x158] sm:$0xff]
        %v335 = vld [vmem:[#allocation5 + $0x160] sm:$0xff]
        %v336 = vld [vmem:[#allocation5 + $0x168] sm:$0xff]
        %v337 = vld [vmem:[#allocation5 + $0x170] sm:$0xff]
        %v338 = vld [vmem:[#allocation5 + $0x178] sm:$0xff]
        %v339 = vld [vmem:[#allocation5 + $0x180] sm:$0xff]
        %v340 = vld [vmem:[#allocation5 + $0x188] sm:$0xff]
        %v341 = vld [vmem:[#allocation5 + $0x190] sm:$0xff]
        %v342 = vld [vmem:[#allocation5 + $0x198] sm:$0xff]
        %v343 = vld [vmem:[#allocation5 + $0x1a0] sm:$0xff]
        %v344 = vld [vmem:[#allocation5 + $0x1a8] sm:$0xff]
        %v345 = vld [vmem:[#allocation5 + $0x1b0] sm:$0xff]
        %v346 = vld [vmem:[#allocation5 + $0x1b8] sm:$0xff]
        %v347 = vld [vmem:[#allocation5 + $0x1c0] sm:$0xff]
        %v348 = vld [vmem:[#allocation5 + $0x1c8] sm:$0xff]
        %v349 = vld [vmem:[#allocation5 + $0x1d0] sm:$0xff]
        %v350 = vld [vmem:[#allocation5 + $0x1d8] sm:$0xff]
        %v351 = vld [vmem:[#allocation5 + $0x1e0] sm:$0xff]
        %v352 = vld [vmem:[#allocation5 + $0x1e8] sm:$0xff]
        %v353 = vld [vmem:[#allocation5 + $0x1f0] sm:$0xff]
        %v354 = vld [vmem:[#allocation5 + $0x1f8] sm:$0xff]
        %355 = vmatprep.subr.mxu0 %v292
        %356 = vmatpush1.msra.mxu0 %v291
        %357 = vmatprep.subr.mxu0 %v296
        %358 = vmatpush1.msra.mxu0 %v295
        %359 = vmatprep.subr.mxu0 %v300
        %360 = vmatpush1.msra.mxu0 %v299
        %361 = vmatprep.subr.mxu0 %v304
        %362 = vmatpush1.msra.mxu0 %v303
        %363 = vmatprep.subr.mxu0 %v308
        %364 = vmatpush1.msra.mxu0 %v307
        %365 = vmatprep.subr.mxu0 %v312
        %366 = vmatpush1.msra.mxu0 %v311
        %367 = vmatprep.subr.mxu0 %v316
        %368 = vmatpush1.msra.mxu0 %v315
        %369 = vmatprep.subr.mxu0 %v320
        %370 = vmatpush1.msra.mxu0 %v319
        %371 = vmatprep.subr.mxu0 %v324
        %372 = vmatpush1.msra.mxu0 %v323
        %373 = vmatprep.subr.mxu0 %v328
        %374 = vmatpush1.msra.mxu0 %v327
        %375 = vmatprep.subr.mxu0 %v332
        %376 = vmatpush1.msra.mxu0 %v331
        %377 = vmatprep.subr.mxu0 %v336
        %378 = vmatpush1.msra.mxu0 %v335
        %379 = vmatprep.subr.mxu0 %v340
        %380 = vmatpush1.msra.mxu0 %v339
        %381 = vmatprep.subr.mxu0 %v344
        %382 = vmatpush1.msra.mxu0 %v343
        %383 = vmatprep.subr.mxu0 %v348
        %384 = vmatpush1.msra.mxu0 %v347
        %385 = vmatprep.subr.mxu0 %v352
        %386 = vmatpush1.msra.mxu0 %v351
        %387 = vmatprep.subr.mxu0 0.0
        %388 = vmatpush1.msra.mxu0 0.0
        %389 = vmatprep.subr.mxu0 0.0
        %390 = vmatpush1.msra.mxu0 0.0
        %391 = vmatprep.subr.mxu0 0.0
        %392 = vmatpush1.msra.mxu0 0.0
        %393 = vmatprep.subr.mxu0 0.0
        %394 = vmatpush1.msra.mxu0 0.0
        %395 = vmatprep.subr.mxu0 0.0
        %396 = vmatpush1.msra.mxu0 0.0
        %397 = vmatprep.subr.mxu0 0.0
        %398 = vmatpush1.msra.mxu0 0.0
        %399 = vmatprep.subr.mxu0 0.0
        %400 = vmatpush1.msra.mxu0 0.0
        %401 = vmatprep.subr.mxu0 0.0
        %402 = vmatpush1.msra.mxu0 0.0
        %403 = vmatprep.subr.mxu0 0.0
        %404 = vmatpush1.msra.mxu0 0.0
        %405 = vmatprep.subr.mxu0 0.0
        %406 = vmatpush1.msra.mxu0 0.0
        %407 = vmatprep.subr.mxu0 0.0
        %408 = vmatpush1.msra.mxu0 0.0
        %409 = vmatprep.subr.mxu0 0.0
        %410 = vmatpush1.msra.mxu0 0.0
        %411 = vmatprep.subr.mxu0 0.0
        %412 = vmatpush1.msra.mxu0 0.0
        %413 = vmatprep.subr.mxu0 0.0
        %414 = vmatpush1.msra.mxu0 0.0
        %415 = vmatprep.subr.mxu0 0.0
        %416 = vmatpush1.msra.mxu0 0.0
        %417 = vmatprep.subr.mxu0 0.0
        %418 = vmatpush1.msra.mxu0 0.0
        %419 = vmatprep.mubr.f32.mxu0 0.0
        %420 = vmatmul.mubr.f32.gmra.mrb[0].mxu0 %v275
        %v421 = vpop.f32.mrb[0].mxu0
        %v422 = vadd.f32 0.0, %v421
        %v423 = vpop.f32.mrb[0].mxu0
        %v424 = vadd.f32 0.0, %v423
        %425 = vmatprep.mubr.f32.mxu0 0.0
        %426 = vmatmul.mubr.f32.gmra.mrb[0].mxu0 %v276
        %v427 = vpop.f32.mrb[0].mxu0
        %v428 = vadd.f32 0.0, %v427
        %v429 = vpop.f32.mrb[0].mxu0
        %v430 = vadd.f32 0.0, %v429
        %431 = vmatprep.mubr.f32.mxu0 0.0
        %432 = vmatmul.mubr.f32.gmra.mrb[0].mxu0 %v277
        %v433 = vpop.f32.mrb[0].mxu0
        %v434 = vadd.f32 0.0, %v433
        %v435 = vpop.f32.mrb[0].mxu0
        %v436 = vadd.f32 0.0, %v435
        %437 = vmatprep.mubr.f32.mxu0 0.0
        %438 = vmatmul.mubr.f32.gmra.mrb[0].mxu0 %v278
        %v439 = vpop.f32.mrb[0].mxu0
        %v440 = vadd.f32 0.0, %v439
        %v441 = vpop.f32.mrb[0].mxu0
        %v442 = vadd.f32 0.0, %v441
        %443 = vmatprep.mubr.f32.mxu0 0.0
        %444 = vmatmul.mubr.f32.gmra.mrb[0].mxu0 %v279
        %v445 = vpop.f32.mrb[0].mxu0
        %v446 = vadd.f32 0.0, %v445
        %v447 = vpop.f32.mrb[0].mxu0
        %v448 = vadd.f32 0.0, %v447
        %449 = vmatprep.mubr.f32.mxu0 0.0
        %450 = vmatmul.mubr.f32.gmra.mrb[0].mxu0 %v280
        %v451 = vpop.f32.mrb[0].mxu0
        %v452 = vadd.f32 0.0, %v451
        %v453 = vpop.f32.mrb[0].mxu0
        %v454 = vadd.f32 0.0, %v453
        %455 = vmatprep.mubr.f32.mxu0 0.0
        %456 = vmatmul.mubr.f32.gmra.mrb[0].mxu0 %v281
        %v457 = vpop.f32.mrb[0].mxu0
        %v458 = vadd.f32 0.0, %v457
        %v459 = vpop.f32.mrb[0].mxu0
        %v460 = vadd.f32 0.0, %v459
        %461 = vmatprep.mubr.f32.mxu0 0.0
        %462 = vmatmul.mubr.f32.gmra.mrb[0].mxu0 %v282
        %v463 = vpop.f32.mrb[0].mxu0
        %v464 = vadd.f32 0.0, %v463
        %v465 = vpop.f32.mrb[0].mxu0
        %v466 = vadd.f32 0.0, %v465
        %467 = vmatprep.mubr.f32.mxu0 0.0
        %468 = vmatmul.mubr.f32.gmra.mrb[0].mxu0 %v283
        %v469 = vpop.f32.mrb[0].mxu0
        %v470 = vadd.f32 0.0, %v469
        %v471 = vpop.f32.mrb[0].mxu0
        %v472 = vadd.f32 0.0, %v471
        %473 = vmatprep.mubr.f32.mxu0 0.0
        %474 = vmatmul.mubr.f32.gmra.mrb[0].mxu0 %v284
        %v475 = vpop.f32.mrb[0].mxu0
        %v476 = vadd.f32 0.0, %v475
        %v477 = vpop.f32.mrb[0].mxu0
        %v478 = vadd.f32 0.0, %v477
        %479 = vmatprep.mubr.f32.mxu0 0.0
        %480 = vmatmul.mubr.f32.gmra.mrb[0].mxu0 %v285
        %v481 = vpop.f32.mrb[0].mxu0
        %v482 = vadd.f32 0.0, %v481
        %v483 = vpop.f32.mrb[0].mxu0
        %v484 = vadd.f32 0.0, %v483
        %485 = vmatprep.mubr.f32.mxu0 0.0
        %486 = vmatmul.mubr.f32.gmra.mrb[0].mxu0 %v286
        %v487 = vpop.f32.mrb[0].mxu0
        %v488 = vadd.f32 0.0, %v487
        %v489 = vpop.f32.mrb[0].mxu0
        %v490 = vadd.f32 0.0, %v489
        %491 = vmatprep.mubr.f32.mxu0 0.0
        %492 = vmatmul.mubr.f32.gmra.mrb[0].mxu0 %v287
        %v493 = vpop.f32.mrb[0].mxu0
        %v494 = vadd.f32 0.0, %v493
        %v495 = vpop.f32.mrb[0].mxu0
        %v496 = vadd.f32 0.0, %v495
        %497 = vmatprep.mubr.f32.mxu0 0.0
        %498 = vmatmul.mubr.f32.gmra.mrb[0].mxu0 %v288
        %v499 = vpop.f32.mrb[0].mxu0
        %v500 = vadd.f32 0.0, %v499
        %v501 = vpop.f32.mrb[0].mxu0
        %v502 = vadd.f32 0.0, %v501
        %503 = vmatprep.mubr.f32.mxu0 0.0
        %504 = vmatmul.mubr.f32.gmra.mrb[0].mxu0 %v289
        %v505 = vpop.f32.mrb[0].mxu0
        %v506 = vadd.f32 0.0, %v505
        %v507 = vpop.f32.mrb[0].mxu0
        %v508 = vadd.f32 0.0, %v507
        %509 = vmatprep.mubr.f32.mxu0 0.0
        %510 = vmatmul.mubr.f32.gmra.mrb[0].mxu0 %v290
        %v511 = vpop.f32.mrb[0].mxu0
        %v512 = vadd.f32 0.0, %v511
        %v513 = vpop.f32.mrb[0].mxu0
        %v514 = vadd.f32 0.0, %v513
        %515 = vdwg.mxu0
        %516 = vmatprep.subr.mxu0 %v294
        %517 = vmatpush1.msra.mxu0 %v293
        %518 = vmatprep.subr.mxu0 %v298
        %519 = vmatpush1.msra.mxu0 %v297
        %520 = vmatprep.subr.mxu0 %v302
        %521 = vmatpush1.msra.mxu0 %v301
        %522 = vmatprep.subr.mxu0 %v306
        %523 = vmatpush1.msra.mxu0 %v305
        %524 = vmatprep.subr.mxu0 %v310
        %525 = vmatpush1.msra.mxu0 %v309
        %526 = vmatprep.subr.mxu0 %v314
        %527 = vmatpush1.msra.mxu0 %v313
        %528 = vmatprep.subr.mxu0 %v318
        %529 = vmatpush1.msra.mxu0 %v317
        %530 = vmatprep.subr.mxu0 %v322
        %531 = vmatpush1.msra.mxu0 %v321
        %532 = vmatprep.subr.mxu0 %v326
        %533 = vmatpush1.msra.mxu0 %v325
        %534 = vmatprep.subr.mxu0 %v330
        %535 = vmatpush1.msra.mxu0 %v329
        %536 = vmatprep.subr.mxu0 %v334
        %537 = vmatpush1.msra.mxu0 %v333
        %538 = vmatprep.subr.mxu0 %v338
        %539 = vmatpush1.msra.mxu0 %v337
        %540 = vmatprep.subr.mxu0 %v342
        %541 = vmatpush1.msra.mxu0 %v341
        %542 = vmatprep.subr.mxu0 %v346
        %543 = vmatpush1.msra.mxu0 %v345
        %544 = vmatprep.subr.mxu0 %v350
        %545 = vmatpush1.msra.mxu0 %v349
        %546 = vmatprep.subr.mxu0 %v354
        %547 = vmatpush1.msra.mxu0 %v353
        %548 = vmatprep.subr.mxu0 0.0
        %549 = vmatpush1.msra.mxu0 0.0
        %550 = vmatprep.subr.mxu0 0.0
        %551 = vmatpush1.msra.mxu0 0.0
        %552 = vmatprep.subr.mxu0 0.0
        %553 = vmatpush1.msra.mxu0 0.0
        %554 = vmatprep.subr.mxu0 0.0
        %555 = vmatpush1.msra.mxu0 0.0
        %556 = vmatprep.subr.mxu0 0.0
        %557 = vmatpush1.msra.mxu0 0.0
        %558 = vmatprep.subr.mxu0 0.0
        %559 = vmatpush1.msra.mxu0 0.0
        %560 = vmatprep.subr.mxu0 0.0
        %561 = vmatpush1.msra.mxu0 0.0
        %562 = vmatprep.subr.mxu0 0.0
        %563 = vmatpush1.msra.mxu0 0.0
        %564 = vmatprep.subr.mxu0 0.0
        %565 = vmatpush1.msra.mxu0 0.0
        %566 = vmatprep.subr.mxu0 0.0
        %567 = vmatpush1.msra.mxu0 0.0
        %568 = vmatprep.subr.mxu0 0.0
        %569 = vmatpush1.msra.mxu0 0.0
        %570 = vmatprep.subr.mxu0 0.0
        %571 = vmatpush1.msra.mxu0 0.0
        %572 = vmatprep.subr.mxu0 0.0
        %573 = vmatpush1.msra.mxu0 0.0
        %574 = vmatprep.subr.mxu0 0.0
        %575 = vmatpush1.msra.mxu0 0.0
        %576 = vmatprep.subr.mxu0 0.0
        %577 = vmatpush1.msra.mxu0 0.0
        %578 = vmatprep.subr.mxu0 0.0
        %579 = vmatpush1.msra.mxu0 0.0
        %580 = vmatprep.mubr.f32.mxu0 0.0
        %581 = vmatmul.mubr.f32.gmra.mrb[0].mxu0 %v275
        %v582 = vpop.f32.mrb[0].mxu0
        %v583 = vadd.f32 0.0, %v582
        %v584 = vpop.f32.mrb[0].mxu0
        %v585 = vadd.f32 0.0, %v584
        %586 = vmatprep.mubr.f32.mxu0 0.0
        %587 = vmatmul.mubr.f32.gmra.mrb[0].mxu0 %v276
        %v588 = vpop.f32.mrb[0].mxu0
        %v589 = vadd.f32 0.0, %v588
        %v590 = vpop.f32.mrb[0].mxu0
        %v591 = vadd.f32 0.0, %v590
        %592 = vmatprep.mubr.f32.mxu0 0.0
        %593 = vmatmul.mubr.f32.gmra.mrb[0].mxu0 %v277
        %v594 = vpop.f32.mrb[0].mxu0
        %v595 = vadd.f32 0.0, %v594
        %v596 = vpop.f32.mrb[0].mxu0
        %v597 = vadd.f32 0.0, %v596
        %598 = vmatprep.mubr.f32.mxu0 0.0
        %599 = vmatmul.mubr.f32.gmra.mrb[0].mxu0 %v278
        %v600 = vpop.f32.mrb[0].mxu0
        %v601 = vadd.f32 0.0, %v600
        %v602 = vpop.f32.mrb[0].mxu0
        %v603 = vadd.f32 0.0, %v602
        %604 = vmatprep.mubr.f32.mxu0 0.0
        %605 = vmatmul.mubr.f32.gmra.mrb[0].mxu0 %v279
        %v606 = vpop.f32.mrb[0].mxu0
        %v607 = vadd.f32 0.0, %v606
        %v608 = vpop.f32.mrb[0].mxu0
        %v609 = vadd.f32 0.0, %v608
        %610 = vmatprep.mubr.f32.mxu0 0.0
        %611 = vmatmul.mubr.f32.gmra.mrb[0].mxu0 %v280
        %v612 = vpop.f32.mrb[0].mxu0
        %v613 = vadd.f32 0.0, %v612
        %v614 = vpop.f32.mrb[0].mxu0
        %v615 = vadd.f32 0.0, %v614
        %616 = vmatprep.mubr.f32.mxu0 0.0
        %617 = vmatmul.mubr.f32.gmra.mrb[0].mxu0 %v281
        %v618 = vpop.f32.mrb[0].mxu0
        %v619 = vadd.f32 0.0, %v618
        %v620 = vpop.f32.mrb[0].mxu0
        %v621 = vadd.f32 0.0, %v620
        %622 = vmatprep.mubr.f32.mxu0 0.0
        %623 = vmatmul.mubr.f32.gmra.mrb[0].mxu0 %v282
        %v624 = vpop.f32.mrb[0].mxu0
        %v625 = vadd.f32 0.0, %v624
        %v626 = vpop.f32.mrb[0].mxu0
        %v627 = vadd.f32 0.0, %v626
        %628 = vmatprep.mubr.f32.mxu0 0.0
        %629 = vmatmul.mubr.f32.gmra.mrb[0].mxu0 %v283
        %v630 = vpop.f32.mrb[0].mxu0
        %v631 = vadd.f32 0.0, %v630
        %v632 = vpop.f32.mrb[0].mxu0
        %v633 = vadd.f32 0.0, %v632
        %634 = vmatprep.mubr.f32.mxu0 0.0
        %635 = vmatmul.mubr.f32.gmra.mrb[0].mxu0 %v284
        %v636 = vpop.f32.mrb[0].mxu0
        %v637 = vadd.f32 0.0, %v636
        %v638 = vpop.f32.mrb[0].mxu0
        %v639 = vadd.f32 0.0, %v638
        %640 = vmatprep.mubr.f32.mxu0 0.0
        %641 = vmatmul.mubr.f32.gmra.mrb[0].mxu0 %v285
        %v642 = vpop.f32.mrb[0].mxu0
        %v643 = vadd.f32 0.0, %v642
        %v644 = vpop.f32.mrb[0].mxu0
        %v645 = vadd.f32 0.0, %v644
        %646 = vmatprep.mubr.f32.mxu0 0.0
        %647 = vmatmul.mubr.f32.gmra.mrb[0].mxu0 %v286
        %v648 = vpop.f32.mrb[0].mxu0
        %v649 = vadd.f32 0.0, %v648
        %v650 = vpop.f32.mrb[0].mxu0
        %v651 = vadd.f32 0.0, %v650
        %652 = vmatprep.mubr.f32.mxu0 0.0
        %653 = vmatmul.mubr.f32.gmra.mrb[0].mxu0 %v287
        %v654 = vpop.f32.mrb[0].mxu0
        %v655 = vadd.f32 0.0, %v654
        %v656 = vpop.f32.mrb[0].mxu0
        %v657 = vadd.f32 0.0, %v656
        %658 = vmatprep.mubr.f32.mxu0 0.0
        %659 = vmatmul.mubr.f32.gmra.mrb[0].mxu0 %v288
        %v660 = vpop.f32.mrb[0].mxu0
        %v661 = vadd.f32 0.0, %v660
        %v662 = vpop.f32.mrb[0].mxu0
        %v663 = vadd.f32 0.0, %v662
        %664 = vmatprep.mubr.f32.mxu0 0.0
        %665 = vmatmul.mubr.f32.gmra.mrb[0].mxu0 %v289
        %v666 = vpop.f32.mrb[0].mxu0
        %v667 = vadd.f32 0.0, %v666
        %v668 = vpop.f32.mrb[0].mxu0
        %v669 = vadd.f32 0.0, %v668
        %670 = vmatprep.mubr.f32.mxu0 0.0
        %671 = vmatmul.mubr.f32.gmra.mrb[0].mxu0 %v290
        %v672 = vpop.f32.mrb[0].mxu0
        %v673 = vadd.f32 0.0, %v672
        %v674 = vpop.f32.mrb[0].mxu0
        %v675 = vadd.f32 0.0, %v674
        %676 = vdwg.mxu0
        %v677 = vmul.f32 %v422, 1.442695
        %v678 = vpow.pop %v677
        %v679 = vmul.f32 %v424, 1.442695
        %v680 = vpow.pop %v679
        %v681 = vmul.f32 %v583, 1.442695
        %v682 = vpow.pop %v681
        %v683 = vmul.f32 %v585, 1.442695
        %v684 = vpow.pop %v683
        %v685 = vmul.f32 %v428, 1.442695
        %v686 = vpow.pop %v685
        %v687 = vmul.f32 %v430, 1.442695
        %v688 = vpow.pop %v687
        %v689 = vmul.f32 %v589, 1.442695
        %v690 = vpow.pop %v689
        %v691 = vmul.f32 %v591, 1.442695
        %v692 = vpow.pop %v691
        %v693 = vmul.f32 %v434, 1.442695
        %v694 = vpow.pop %v693
        %v695 = vmul.f32 %v436, 1.442695
        %v696 = vpow.pop %v695
        %v697 = vmul.f32 %v595, 1.442695
        %v698 = vpow.pop %v697
        %v699 = vmul.f32 %v597, 1.442695
        %v700 = vpow.pop %v699
        %v701 = vmul.f32 %v440, 1.442695
        %v702 = vpow.pop %v701
        %v703 = vmul.f32 %v442, 1.442695
        %v704 = vpow.pop %v703
        %v705 = vmul.f32 %v601, 1.442695
        %v706 = vpow.pop %v705
        %v707 = vmul.f32 %v603, 1.442695
        %v708 = vpow.pop %v707
        %v709 = vmul.f32 %v446, 1.442695
        %v710 = vpow.pop %v709
        %v711 = vmul.f32 %v448, 1.442695
        %v712 = vpow.pop %v711
        %v713 = vmul.f32 %v607, 1.442695
        %v714 = vpow.pop %v713
        %v715 = vmul.f32 %v609, 1.442695
        %v716 = vpow.pop %v715
        %v717 = vmul.f32 %v452, 1.442695
        %v718 = vpow.pop %v717
        %v719 = vmul.f32 %v454, 1.442695
        %v720 = vpow.pop %v719
        %v721 = vmul.f32 %v613, 1.442695
        %v722 = vpow.pop %v721
        %v723 = vmul.f32 %v615, 1.442695
        %v724 = vpow.pop %v723
        %v725 = vmul.f32 %v458, 1.442695
        %v726 = vpow.pop %v725
        %v727 = vmul.f32 %v460, 1.442695
        %v728 = vpow.pop %v727
        %v729 = vmul.f32 %v619, 1.442695
        %v730 = vpow.pop %v729
        %v731 = vmul.f32 %v621, 1.442695
        %v732 = vpow.pop %v731
        %v733 = vmul.f32 %v464, 1.442695
        %v734 = vpow.pop %v733
        %v735 = vmul.f32 %v466, 1.442695
        %v736 = vpow.pop %v735
        %v737 = vmul.f32 %v625, 1.442695
        %v738 = vpow.pop %v737
        %v739 = vmul.f32 %v627, 1.442695
        %v740 = vpow.pop %v739
        %v741 = vmul.f32 %v470, 1.442695
        %v742 = vpow.pop %v741
        %v743 = vmul.f32 %v472, 1.442695
        %v744 = vpow.pop %v743
        %v745 = vmul.f32 %v631, 1.442695
        %v746 = vpow.pop %v745
        %v747 = vmul.f32 %v633, 1.442695
        %v748 = vpow.pop %v747
        %v749 = vmul.f32 %v476, 1.442695
        %v750 = vpow.pop %v749
        %v751 = vmul.f32 %v478, 1.442695
        %v752 = vpow.pop %v751
        %v753 = vmul.f32 %v637, 1.442695
        %v754 = vpow.pop %v753
        %v755 = vmul.f32 %v639, 1.442695
        %v756 = vpow.pop %v755
        %v757 = vmul.f32 %v482, 1.442695
        %v758 = vpow.pop %v757
        %v759 = vmul.f32 %v484, 1.442695
        %v760 = vpow.pop %v759
        %v761 = vmul.f32 %v643, 1.442695
        %v762 = vpow.pop %v761
        %v763 = vmul.f32 %v645, 1.442695
        %v764 = vpow.pop %v763
        %v765 = vmul.f32 %v488, 1.442695
        %v766 = vpow.pop %v765
        %v767 = vmul.f32 %v490, 1.442695
        %v768 = vpow.pop %v767
        %v769 = vmul.f32 %v649, 1.442695
        %v770 = vpow.pop %v769
        %v771 = vmul.f32 %v651, 1.442695
        %v772 = vpow.pop %v771
        %v773 = vmul.f32 %v494, 1.442695
        %v774 = vpow.pop %v773
        %v775 = vmul.f32 %v496, 1.442695
        %v776 = vpow.pop %v775
        %v777 = vmul.f32 %v655, 1.442695
        %v778 = vpow.pop %v777
        %v779 = vmul.f32 %v657, 1.442695
        %v780 = vpow.pop %v779
        %v781 = vmul.f32 %v500, 1.442695
        %v782 = vpow.pop %v781
        %v783 = vmul.f32 %v502, 1.442695
        %v784 = vpow.pop %v783
        %v785 = vmul.f32 %v661, 1.442695
        %v786 = vpow.pop %v785
        %v787 = vmul.f32 %v663, 1.442695
        %v788 = vpow.pop %v787
        %v789 = vmul.f32 %v506, 1.442695
        %v790 = vpow.pop %v789
        %v791 = vmul.f32 %v508, 1.442695
        %v792 = vpow.pop %v791
        %v793 = vmul.f32 %v667, 1.442695
        %v794 = vpow.pop %v793
        %v795 = vmul.f32 %v669, 1.442695
        %v796 = vpow.pop %v795
        %v797 = vmul.f32 %v512, 1.442695
        %v798 = vpow.pop %v797
        %v799 = vmul.f32 %v514, 1.442695
        %v800 = vpow.pop %v799
        %v801 = vmul.f32 %v673, 1.442695
        %v802 = vpow.pop %v801
        %v803 = vmul.f32 %v675, 1.442695
        %v804 = vpow.pop %v803
        %v805 = vmul.f32 %v422, 0.87758255
        %v806 = vmul.f32 %v424, 0.87758255
        %v807 = vmul.f32 %v583, 0.87758255
        %v808 = vmul.f32 %v585, 0.87758255
        %v809 = vmul.f32 %v428, 0.87758255
        %v810 = vmul.f32 %v430, 0.87758255
        %v811 = vmul.f32 %v589, 0.87758255
        %v812 = vmul.f32 %v591, 0.87758255
        %v813 = vmul.f32 %v434, 0.87758255
        %v814 = vmul.f32 %v436, 0.87758255
        %v815 = vmul.f32 %v595, 0.87758255
        %v816 = vmul.f32 %v597, 0.87758255
        %v817 = vmul.f32 %v440, 0.87758255
        %v818 = vmul.f32 %v442, 0.87758255
        %v819 = vmul.f32 %v601, 0.87758255
        %v820 = vmul.f32 %v603, 0.87758255
        %v821 = vmul.f32 %v446, 0.87758255
        %v822 = vmul.f32 %v448, 0.87758255
        %v823 = vmul.f32 %v607, 0.87758255
        %v824 = vmul.f32 %v609, 0.87758255
        %v825 = vmul.f32 %v452, 0.87758255
        %v826 = vmul.f32 %v454, 0.87758255
        %v827 = vmul.f32 %v613, 0.87758255
        %v828 = vmul.f32 %v615, 0.87758255
        %v829 = vmul.f32 %v458, 0.87758255
        %v830 = vmul.f32 %v460, 0.87758255
        %v831 = vmul.f32 %v619, 0.87758255
        %v832 = vmul.f32 %v621, 0.87758255
        %v833 = vmul.f32 %v464, 0.87758255
        %v834 = vmul.f32 %v466, 0.87758255
        %v835 = vmul.f32 %v625, 0.87758255
        %v836 = vmul.f32 %v627, 0.87758255
        %v837 = vmul.f32 %v470, 0.87758255
        %v838 = vmul.f32 %v472, 0.87758255
        %v839 = vmul.f32 %v631, 0.87758255
        %v840 = vmul.f32 %v633, 0.87758255
        %v841 = vmul.f32 %v476, 0.87758255
        %v842 = vmul.f32 %v478, 0.87758255
        %v843 = vmul.f32 %v637, 0.87758255
        %v844 = vmul.f32 %v639, 0.87758255
        %v845 = vmul.f32 %v482, 0.87758255
        %v846 = vmul.f32 %v484, 0.87758255
        %v847 = vmul.f32 %v643, 0.87758255
        %v848 = vmul.f32 %v645, 0.87758255
        %v849 = vmul.f32 %v488, 0.87758255
        %v850 = vmul.f32 %v490, 0.87758255
        %v851 = vmul.f32 %v649, 0.87758255
        %v852 = vmul.f32 %v651, 0.87758255
        %v853 = vmul.f32 %v494, 0.87758255
        %v854 = vmul.f32 %v496, 0.87758255
        %v855 = vmul.f32 %v655, 0.87758255
        %v856 = vmul.f32 %v657, 0.87758255
        %v857 = vmul.f32 %v500, 0.87758255
        %v858 = vmul.f32 %v502, 0.87758255
        %v859 = vmul.f32 %v661, 0.87758255
        %v860 = vmul.f32 %v663, 0.87758255
        %v861 = vmul.f32 %v506, 0.87758255
        %v862 = vmul.f32 %v508, 0.87758255
        %v863 = vmul.f32 %v667, 0.87758255
        %v864 = vmul.f32 %v669, 0.87758255
        %v865 = vmul.f32 %v512, 0.87758255
        %v866 = vmul.f32 %v514, 0.87758255
        %v867 = vmul.f32 %v673, 0.87758255
        %v868 = vmul.f32 %v675, 0.87758255
        %v869 = vmul.f32 %v422, 0.01
        %v870 = vmul.f32 %v424, 0.01
        %v871 = vmul.f32 %v583, 0.01
        %v872 = vmul.f32 %v585, 0.01
        %v873 = vmul.f32 %v428, 0.01
        %v874 = vmul.f32 %v430, 0.01
        %v875 = vmul.f32 %v589, 0.01
        %v876 = vmul.f32 %v591, 0.01
        %v877 = vmul.f32 %v434, 0.01
        %v878 = vmul.f32 %v436, 0.01
        %v879 = vmul.f32 %v595, 0.01
        %v880 = vmul.f32 %v597, 0.01
        %v881 = vmul.f32 %v440, 0.01
        %v882 = vmul.f32 %v442, 0.01
        %v883 = vmul.f32 %v601, 0.01
        %v884 = vmul.f32 %v603, 0.01
        %v885 = vmul.f32 %v446, 0.01
        %v886 = vmul.f32 %v448, 0.01
        %v887 = vmul.f32 %v607, 0.01
        %v888 = vmul.f32 %v609, 0.01
        %v889 = vmul.f32 %v452, 0.01
        %v890 = vmul.f32 %v454, 0.01
        %v891 = vmul.f32 %v613, 0.01
        %v892 = vmul.f32 %v615, 0.01
        %v893 = vmul.f32 %v458, 0.01
        %v894 = vmul.f32 %v460, 0.01
        %v895 = vmul.f32 %v619, 0.01
        %v896 = vmul.f32 %v621, 0.01
        %v897 = vmul.f32 %v464, 0.01
        %v898 = vmul.f32 %v466, 0.01
        %v899 = vmul.f32 %v625, 0.01
        %v900 = vmul.f32 %v627, 0.01
        %v901 = vmul.f32 %v470, 0.01
        %v902 = vmul.f32 %v472, 0.01
        %v903 = vmul.f32 %v631, 0.01
        %v904 = vmul.f32 %v633, 0.01
        %v905 = vmul.f32 %v476, 0.01
        %v906 = vmul.f32 %v478, 0.01
        %v907 = vmul.f32 %v637, 0.01
        %v908 = vmul.f32 %v639, 0.01
        %v909 = vmul.f32 %v482, 0.01
        %v910 = vmul.f32 %v484, 0.01
        %v911 = vmul.f32 %v643, 0.01
        %v912 = vmul.f32 %v645, 0.01
        %v913 = vmul.f32 %v488, 0.01
        %v914 = vmul.f32 %v490, 0.01
        %v915 = vmul.f32 %v649, 0.01
        %v916 = vmul.f32 %v651, 0.01
        %v917 = vmul.f32 %v494, 0.01
        %v918 = vmul.f32 %v496, 0.01
        %v919 = vmul.f32 %v655, 0.01
        %v920 = vmul.f32 %v657, 0.01
        %v921 = vmul.f32 %v500, 0.01
        %v922 = vmul.f32 %v502, 0.01
        %v923 = vmul.f32 %v661, 0.01
        %v924 = vmul.f32 %v663, 0.01
        %v925 = vmul.f32 %v506, 0.01
        %v926 = vmul.f32 %v508, 0.01
        %v927 = vmul.f32 %v667, 0.01
        %v928 = vmul.f32 %v669, 0.01
        %v929 = vmul.f32 %v512, 0.01
        %v930 = vmul.f32 %v514, 0.01
        %v931 = vmul.f32 %v673, 0.01
        %v932 = vmul.f32 %v675, 0.01
        %v933 = vmul.f32 %v869, %v422
        %v934 = vmul.f32 %v870, %v424
        %v935 = vmul.f32 %v871, %v583
        %v936 = vmul.f32 %v872, %v585
        %v937 = vmul.f32 %v873, %v428
        %v938 = vmul.f32 %v874, %v430
        %v939 = vmul.f32 %v875, %v589
        %v940 = vmul.f32 %v876, %v591
        %v941 = vmul.f32 %v877, %v434
        %v942 = vmul.f32 %v878, %v436
        %v943 = vmul.f32 %v879, %v595
        %v944 = vmul.f32 %v880, %v597
        %v945 = vmul.f32 %v881, %v440
        %v946 = vmul.f32 %v882, %v442
        %v947 = vmul.f32 %v883, %v601
        %v948 = vmul.f32 %v884, %v603
        %v949 = vmul.f32 %v885, %v446
        %v950 = vmul.f32 %v886, %v448
        %v951 = vmul.f32 %v887, %v607
        %v952 = vmul.f32 %v888, %v609
        %v953 = vmul.f32 %v889, %v452
        %v954 = vmul.f32 %v890, %v454
        %v955 = vmul.f32 %v891, %v613
        %v956 = vmul.f32 %v892, %v615
        %v957 = vmul.f32 %v893, %v458
        %v958 = vmul.f32 %v894, %v460
        %v959 = vmul.f32 %v895, %v619
        %v960 = vmul.f32 %v896, %v621
        %v961 = vmul.f32 %v897, %v464
        %v962 = vmul.f32 %v898, %v466
        %v963 = vmul.f32 %v899, %v625
        %v964 = vmul.f32 %v900, %v627
        %v965 = vmul.f32 %v901, %v470
        %v966 = vmul.f32 %v902, %v472
        %v967 = vmul.f32 %v903, %v631
        %v968 = vmul.f32 %v904, %v633
        %v969 = vmul.f32 %v905, %v476
        %v970 = vmul.f32 %v906, %v478
        %v971 = vmul.f32 %v907, %v637
        %v972 = vmul.f32 %v908, %v639
        %v973 = vmul.f32 %v909, %v482
        %v974 = vmul.f32 %v910, %v484
        %v975 = vmul.f32 %v911, %v643
        %v976 = vmul.f32 %v912, %v645
        %v977 = vmul.f32 %v913, %v488
        %v978 = vmul.f32 %v914, %v490
        %v979 = vmul.f32 %v915, %v649
        %v980 = vmul.f32 %v916, %v651
        %v981 = vmul.f32 %v917, %v494
        %v982 = vmul.f32 %v918, %v496
        %v983 = vmul.f32 %v919, %v655
        %v984 = vmul.f32 %v920, %v657
        %v985 = vmul.f32 %v921, %v500
        %v986 = vmul.f32 %v922, %v502
        %v987 = vmul.f32 %v923, %v661
        %v988 = vmul.f32 %v924, %v663
        %v989 = vmul.f32 %v925, %v506
        %v990 = vmul.f32 %v926, %v508
        %v991 = vmul.f32 %v927, %v667
        %v992 = vmul.f32 %v928, %v669
        %v993 = vmul.f32 %v929, %v512
        %v994 = vmul.f32 %v930, %v514
        %v995 = vmul.f32 %v931, %v673
        %v996 = vmul.f32 %v932, %v675
        %v997 = vmul.f32 %v933, 0.5
        %v998 = vmul.f32 %v934, 0.5
        %v999 = vmul.f32 %v935, 0.5
        %v1000 = vmul.f32 %v936, 0.5
        %v1001 = vmul.f32 %v937, 0.5
        %v1002 = vmul.f32 %v938, 0.5
        %v1003 = vmul.f32 %v939, 0.5
        %v1004 = vmul.f32 %v940, 0.5
        %v1005 = vmul.f32 %v941, 0.5
        %v1006 = vmul.f32 %v942, 0.5
        %v1007 = vmul.f32 %v943, 0.5
        %v1008 = vmul.f32 %v944, 0.5
        %v1009 = vmul.f32 %v945, 0.5
        %v1010 = vmul.f32 %v946, 0.5
        %v1011 = vmul.f32 %v947, 0.5
        %v1012 = vmul.f32 %v948, 0.5
        %v1013 = vmul.f32 %v949, 0.5
        %v1014 = vmul.f32 %v950, 0.5
        %v1015 = vmul.f32 %v951, 0.5
        %v1016 = vmul.f32 %v952, 0.5
        %v1017 = vmul.f32 %v953, 0.5
        %v1018 = vmul.f32 %v954, 0.5
        %v1019 = vmul.f32 %v955, 0.5
        %v1020 = vmul.f32 %v956, 0.5
        %v1021 = vmul.f32 %v957, 0.5
        %v1022 = vmul.f32 %v958, 0.5
        %v1023 = vmul.f32 %v959, 0.5
        %v1024 = vmul.f32 %v960, 0.5
        %v1025 = vmul.f32 %v961, 0.5
        %v1026 = vmul.f32 %v962, 0.5
        %v1027 = vmul.f32 %v963, 0.5
        %v1028 = vmul.f32 %v964, 0.5
        %v1029 = vmul.f32 %v965, 0.5
        %v1030 = vmul.f32 %v966, 0.5
        %v1031 = vmul.f32 %v967, 0.5
        %v1032 = vmul.f32 %v968, 0.5
        %v1033 = vmul.f32 %v969, 0.5
        %v1034 = vmul.f32 %v970, 0.5
        %v1035 = vmul.f32 %v971, 0.5
        %v1036 = vmul.f32 %v972, 0.5
        %v1037 = vmul.f32 %v973, 0.5
        %v1038 = vmul.f32 %v974, 0.5
        %v1039 = vmul.f32 %v975, 0.5
        %v1040 = vmul.f32 %v976, 0.5
        %v1041 = vmul.f32 %v977, 0.5
        %v1042 = vmul.f32 %v978, 0.5
        %v1043 = vmul.f32 %v979, 0.5
        %v1044 = vmul.f32 %v980, 0.5
        %v1045 = vmul.f32 %v981, 0.5
        %v1046 = vmul.f32 %v982, 0.5
        %v1047 = vmul.f32 %v983, 0.5
        %v1048 = vmul.f32 %v984, 0.5
        %v1049 = vmul.f32 %v985, 0.5
        %v1050 = vmul.f32 %v986, 0.5
        %v1051 = vmul.f32 %v987, 0.5
        %v1052 = vmul.f32 %v988, 0.5
        %v1053 = vmul.f32 %v989, 0.5
        %v1054 = vmul.f32 %v990, 0.5
        %v1055 = vmul.f32 %v991, 0.5
        %v1056 = vmul.f32 %v992, 0.5
        %v1057 = vmul.f32 %v993, 0.5
        %v1058 = vmul.f32 %v994, 0.5
        %v1059 = vmul.f32 %v995, 0.5
        %v1060 = vmul.f32 %v996, 0.5
        %v1061 = vsub.f32 1.0, %v997
        %v1062 = vsub.f32 1.0, %v998
        %v1063 = vsub.f32 1.0, %v999
        %v1064 = vsub.f32 1.0, %v1000
        %v1065 = vsub.f32 1.0, %v1001
        %v1066 = vsub.f32 1.0, %v1002
        %v1067 = vsub.f32 1.0, %v1003
        %v1068 = vsub.f32 1.0, %v1004
        %v1069 = vsub.f32 1.0, %v1005
        %v1070 = vsub.f32 1.0, %v1006
        %v1071 = vsub.f32 1.0, %v1007
        %v1072 = vsub.f32 1.0, %v1008
        %v1073 = vsub.f32 1.0, %v1009
        %v1074 = vsub.f32 1.0, %v1010
        %v1075 = vsub.f32 1.0, %v1011
        %v1076 = vsub.f32 1.0, %v1012
        %v1077 = vsub.f32 1.0, %v1013
        %v1078 = vsub.f32 1.0, %v1014
        %v1079 = vsub.f32 1.0, %v1015
        %v1080 = vsub.f32 1.0, %v1016
        %v1081 = vsub.f32 1.0, %v1017
        %v1082 = vsub.f32 1.0, %v1018
        %v1083 = vsub.f32 1.0, %v1019
        %v1084 = vsub.f32 1.0, %v1020
        %v1085 = vsub.f32 1.0, %v1021
        %v1086 = vsub.f32 1.0, %v1022
        %v1087 = vsub.f32 1.0, %v1023
        %v1088 = vsub.f32 1.0, %v1024
        %v1089 = vsub.f32 1.0, %v1025
        %v1090 = vsub.f32 1.0, %v1026
        %v1091 = vsub.f32 1.0, %v1027
        %v1092 = vsub.f32 1.0, %v1028
        %v1093 = vsub.f32 1.0, %v1029
        %v1094 = vsub.f32 1.0, %v1030
        %v1095 = vsub.f32 1.0, %v1031
        %v1096 = vsub.f32 1.0, %v1032
        %v1097 = vsub.f32 1.0, %v1033
        %v1098 = vsub.f32 1.0, %v1034
        %v1099 = vsub.f32 1.0, %v1035
        %v1100 = vsub.f32 1.0, %v1036
        %v1101 = vsub.f32 1.0, %v1037
        %v1102 = vsub.f32 1.0, %v1038
        %v1103 = vsub.f32 1.0, %v1039
        %v1104 = vsub.f32 1.0, %v1040
        %v1105 = vsub.f32 1.0, %v1041
        %v1106 = vsub.f32 1.0, %v1042
        %v1107 = vsub.f32 1.0, %v1043
        %v1108 = vsub.f32 1.0, %v1044
        %v1109 = vsub.f32 1.0, %v1045
        %v1110 = vsub.f32 1.0, %v1046
        %v1111 = vsub.f32 1.0, %v1047
        %v1112 = vsub.f32 1.0, %v1048
        %v1113 = vsub.f32 1.0, %v1049
        %v1114 = vsub.f32 1.0, %v1050
        %v1115 = vsub.f32 1.0, %v1051
        %v1116 = vsub.f32 1.0, %v1052
        %v1117 = vsub.f32 1.0, %v1053
        %v1118 = vsub.f32 1.0, %v1054
        %v1119 = vsub.f32 1.0, %v1055
        %v1120 = vsub.f32 1.0, %v1056
        %v1121 = vsub.f32 1.0, %v1057
        %v1122 = vsub.f32 1.0, %v1058
        %v1123 = vsub.f32 1.0, %v1059
        %v1124 = vsub.f32 1.0, %v1060
        %v1125 = vmul.f32 %v933, %v933
        %v1126 = vmul.f32 %v934, %v934
        %v1127 = vmul.f32 %v935, %v935
        %v1128 = vmul.f32 %v936, %v936
        %v1129 = vmul.f32 %v937, %v937
        %v1130 = vmul.f32 %v938, %v938
        %v1131 = vmul.f32 %v939, %v939
        %v1132 = vmul.f32 %v940, %v940
        %v1133 = vmul.f32 %v941, %v941
        %v1134 = vmul.f32 %v942, %v942
        %v1135 = vmul.f32 %v943, %v943
        %v1136 = vmul.f32 %v944, %v944
        %v1137 = vmul.f32 %v945, %v945
        %v1138 = vmul.f32 %v946, %v946
        %v1139 = vmul.f32 %v947, %v947
        %v1140 = vmul.f32 %v948, %v948
        %v1141 = vmul.f32 %v949, %v949
        %v1142 = vmul.f32 %v950, %v950
        %v1143 = vmul.f32 %v951, %v951
        %v1144 = vmul.f32 %v952, %v952
        %v1145 = vmul.f32 %v953, %v953
        %v1146 = vmul.f32 %v954, %v954
        %v1147 = vmul.f32 %v955, %v955
        %v1148 = vmul.f32 %v956, %v956
        %v1149 = vmul.f32 %v957, %v957
        %v1150 = vmul.f32 %v958, %v958
        %v1151 = vmul.f32 %v959, %v959
        %v1152 = vmul.f32 %v960, %v960
        %v1153 = vmul.f32 %v961, %v961
        %v1154 = vmul.f32 %v962, %v962
        %v1155 = vmul.f32 %v963, %v963
        %v1156 = vmul.f32 %v964, %v964
        %v1157 = vmul.f32 %v965, %v965
        %v1158 = vmul.f32 %v966, %v966
        %v1159 = vmul.f32 %v967, %v967
        %v1160 = vmul.f32 %v968, %v968
        %v1161 = vmul.f32 %v969, %v969
        %v1162 = vmul.f32 %v970, %v970
        %v1163 = vmul.f32 %v971, %v971
        %v1164 = vmul.f32 %v972, %v972
        %v1165 = vmul.f32 %v973, %v973
        %v1166 = vmul.f32 %v974, %v974
        %v1167 = vmul.f32 %v975, %v975
        %v1168 = vmul.f32 %v976, %v976
        %v1169 = vmul.f32 %v977, %v977
        %v1170 = vmul.f32 %v978, %v978
        %v1171 = vmul.f32 %v979, %v979
        %v1172 = vmul.f32 %v980, %v980
        %v1173 = vmul.f32 %v981, %v981
        %v1174 = vmul.f32 %v982, %v982
        %v1175 = vmul.f32 %v983, %v983
        %v1176 = vmul.f32 %v984, %v984
        %v1177 = vmul.f32 %v985, %v985
        %v1178 = vmul.f32 %v986, %v986
        %v1179 = vmul.f32 %v987, %v987
        %v1180 = vmul.f32 %v988, %v988
        %v1181 = vmul.f32 %v989, %v989
        %v1182 = vmul.f32 %v990, %v990
        %v1183 = vmul.f32 %v991, %v991
        %v1184 = vmul.f32 %v992, %v992
        %v1185 = vmul.f32 %v993, %v993
        %v1186 = vmul.f32 %v994, %v994
        %v1187 = vmul.f32 %v995, %v995
        %v1188 = vmul.f32 %v996, %v996
        %v1189 = vmul.f32 %v1125, 0.125
        %v1190 = vmul.f32 %v1126, 0.125
        %v1191 = vmul.f32 %v1127, 0.125
        %v1192 = vmul.f32 %v1128, 0.125
        %v1193 = vmul.f32 %v1129, 0.125
        %v1194 = vmul.f32 %v1130, 0.125
        %v1195 = vmul.f32 %v1131, 0.125
        %v1196 = vmul.f32 %v1132, 0.125
        %v1197 = vmul.f32 %v1133, 0.125
        %v1198 = vmul.f32 %v1134, 0.125
        %v1199 = vmul.f32 %v1135, 0.125
        %v1200 = vmul.f32 %v1136, 0.125
        %v1201 = vmul.f32 %v1137, 0.125
        %v1202 = vmul.f32 %v1138, 0.125
        %v1203 = vmul.f32 %v1139, 0.125
        %v1204 = vmul.f32 %v1140, 0.125
        %v1205 = vmul.f32 %v1141, 0.125
        %v1206 = vmul.f32 %v1142, 0.125
        %v1207 = vmul.f32 %v1143, 0.125
        %v1208 = vmul.f32 %v1144, 0.125
        %v1209 = vmul.f32 %v1145, 0.125
        %v1210 = vmul.f32 %v1146, 0.125
        %v1211 = vmul.f32 %v1147, 0.125
        %v1212 = vmul.f32 %v1148, 0.125
        %v1213 = vmul.f32 %v1149, 0.125
        %v1214 = vmul.f32 %v1150, 0.125
        %v1215 = vmul.f32 %v1151, 0.125
        %v1216 = vmul.f32 %v1152, 0.125
        %v1217 = vmul.f32 %v1153, 0.125
        %v1218 = vmul.f32 %v1154, 0.125
        %v1219 = vmul.f32 %v1155, 0.125
        %v1220 = vmul.f32 %v1156, 0.125
        %v1221 = vmul.f32 %v1157, 0.125
        %v1222 = vmul.f32 %v1158, 0.125
        %v1223 = vmul.f32 %v1159, 0.125
        %v1224 = vmul.f32 %v1160, 0.125
        %v1225 = vmul.f32 %v1161, 0.125
        %v1226 = vmul.f32 %v1162, 0.125
        %v1227 = vmul.f32 %v1163, 0.125
        %v1228 = vmul.f32 %v1164, 0.125
        %v1229 = vmul.f32 %v1165, 0.125
        %v1230 = vmul.f32 %v1166, 0.125
        %v1231 = vmul.f32 %v1167, 0.125
        %v1232 = vmul.f32 %v1168, 0.125
        %v1233 = vmul.f32 %v1169, 0.125
        %v1234 = vmul.f32 %v1170, 0.125
        %v1235 = vmul.f32 %v1171, 0.125
        %v1236 = vmul.f32 %v1172, 0.125
        %v1237 = vmul.f32 %v1173, 0.125
        %v1238 = vmul.f32 %v1174, 0.125
        %v1239 = vmul.f32 %v1175, 0.125
        %v1240 = vmul.f32 %v1176, 0.125
        %v1241 = vmul.f32 %v1177, 0.125
        %v1242 = vmul.f32 %v1178, 0.125
        %v1243 = vmul.f32 %v1179, 0.125
        %v1244 = vmul.f32 %v1180, 0.125
        %v1245 = vmul.f32 %v1181, 0.125
        %v1246 = vmul.f32 %v1182, 0.125
        %v1247 = vmul.f32 %v1183, 0.125
        %v1248 = vmul.f32 %v1184, 0.125
        %v1249 = vmul.f32 %v1185, 0.125
        %v1250 = vmul.f32 %v1186, 0.125
        %v1251 = vmul.f32 %v1187, 0.125
        %v1252 = vmul.f32 %v1188, 0.125
        %v1253 = vsub.f32 %v1061, %v1189
        %v1254 = vsub.f32 %v1062, %v1190
        %v1255 = vsub.f32 %v1063, %v1191
        %v1256 = vsub.f32 %v1064, %v1192
        %v1257 = vsub.f32 %v1065, %v1193
        %v1258 = vsub.f32 %v1066, %v1194
        %v1259 = vsub.f32 %v1067, %v1195
        %v1260 = vsub.f32 %v1068, %v1196
        %v1261 = vsub.f32 %v1069, %v1197
        %v1262 = vsub.f32 %v1070, %v1198
        %v1263 = vsub.f32 %v1071, %v1199
        %v1264 = vsub.f32 %v1072, %v1200
        %v1265 = vsub.f32 %v1073, %v1201
        %v1266 = vsub.f32 %v1074, %v1202
        %v1267 = vsub.f32 %v1075, %v1203
        %v1268 = vsub.f32 %v1076, %v1204
        %v1269 = vsub.f32 %v1077, %v1205
        %v1270 = vsub.f32 %v1078, %v1206
        %v1271 = vsub.f32 %v1079, %v1207
        %v1272 = vsub.f32 %v1080, %v1208
        %v1273 = vsub.f32 %v1081, %v1209
        %v1274 = vsub.f32 %v1082, %v1210
        %v1275 = vsub.f32 %v1083, %v1211
        %v1276 = vsub.f32 %v1084, %v1212
        %v1277 = vsub.f32 %v1085, %v1213
        %v1278 = vsub.f32 %v1086, %v1214
        %v1279 = vsub.f32 %v1087, %v1215
        %v1280 = vsub.f32 %v1088, %v1216
        %v1281 = vsub.f32 %v1089, %v1217
        %v1282 = vsub.f32 %v1090, %v1218
        %v1283 = vsub.f32 %v1091, %v1219
        %v1284 = vsub.f32 %v1092, %v1220
        %v1285 = vsub.f32 %v1093, %v1221
        %v1286 = vsub.f32 %v1094, %v1222
        %v1287 = vsub.f32 %v1095, %v1223
        %v1288 = vsub.f32 %v1096, %v1224
        %v1289 = vsub.f32 %v1097, %v1225
        %v1290 = vsub.f32 %v1098, %v1226
        %v1291 = vsub.f32 %v1099, %v1227
        %v1292 = vsub.f32 %v1100, %v1228
        %v1293 = vsub.f32 %v1101, %v1229
        %v1294 = vsub.f32 %v1102, %v1230
        %v1295 = vsub.f32 %v1103, %v1231
        %v1296 = vsub.f32 %v1104, %v1232
        %v1297 = vsub.f32 %v1105, %v1233
        %v1298 = vsub.f32 %v1106, %v1234
        %v1299 = vsub.f32 %v1107, %v1235
        %v1300 = vsub.f32 %v1108, %v1236
        %v1301 = vsub.f32 %v1109, %v1237
        %v1302 = vsub.f32 %v1110, %v1238
        %v1303 = vsub.f32 %v1111, %v1239
        %v1304 = vsub.f32 %v1112, %v1240
        %v1305 = vsub.f32 %v1113, %v1241
        %v1306 = vsub.f32 %v1114, %v1242
        %v1307 = vsub.f32 %v1115, %v1243
        %v1308 = vsub.f32 %v1116, %v1244
        %v1309 = vsub.f32 %v1117, %v1245
        %v1310 = vsub.f32 %v1118, %v1246
        %v1311 = vsub.f32 %v1119, %v1247
        %v1312 = vsub.f32 %v1120, %v1248
        %v1313 = vsub.f32 %v1121, %v1249
        %v1314 = vsub.f32 %v1122, %v1250
        %v1315 = vsub.f32 %v1123, %v1251
        %v1316 = vsub.f32 %v1124, %v1252
        %v1317 = vmul.f32 %v1253, 4.7942553
        %v1318 = vmul.f32 %v1254, 4.7942553
        %v1319 = vmul.f32 %v1255, 4.7942553
        %v1320 = vmul.f32 %v1256, 4.7942553
        %v1321 = vmul.f32 %v1257, 4.7942553
        %v1322 = vmul.f32 %v1258, 4.7942553
        %v1323 = vmul.f32 %v1259, 4.7942553
        %v1324 = vmul.f32 %v1260, 4.7942553
        %v1325 = vmul.f32 %v1261, 4.7942553
        %v1326 = vmul.f32 %v1262, 4.7942553
        %v1327 = vmul.f32 %v1263, 4.7942553
        %v1328 = vmul.f32 %v1264, 4.7942553
        %v1329 = vmul.f32 %v1265, 4.7942553
        %v1330 = vmul.f32 %v1266, 4.7942553
        %v1331 = vmul.f32 %v1267, 4.7942553
        %v1332 = vmul.f32 %v1268, 4.7942553
        %v1333 = vmul.f32 %v1269, 4.7942553
        %v1334 = vmul.f32 %v1270, 4.7942553
        %v1335 = vmul.f32 %v1271, 4.7942553
        %v1336 = vmul.f32 %v1272, 4.7942553
        %v1337 = vmul.f32 %v1273, 4.7942553
        %v1338 = vmul.f32 %v1274, 4.7942553
        %v1339 = vmul.f32 %v1275, 4.7942553
        %v1340 = vmul.f32 %v1276, 4.7942553
        %v1341 = vmul.f32 %v1277, 4.7942553
        %v1342 = vmul.f32 %v1278, 4.7942553
        %v1343 = vmul.f32 %v1279, 4.7942553
        %v1344 = vmul.f32 %v1280, 4.7942553
        %v1345 = vmul.f32 %v1281, 4.7942553
        %v1346 = vmul.f32 %v1282, 4.7942553
        %v1347 = vmul.f32 %v1283, 4.7942553
        %v1348 = vmul.f32 %v1284, 4.7942553
        %v1349 = vmul.f32 %v1285, 4.7942553
        %v1350 = vmul.f32 %v1286, 4.7942553
        %v1351 = vmul.f32 %v1287, 4.7942553
        %v1352 = vmul.f32 %v1288, 4.7942553
        %v1353 = vmul.f32 %v1289, 4.7942553
        %v1354 = vmul.f32 %v1290, 4.7942553
        %v1355 = vmul.f32 %v1291, 4.7942553
        %v1356 = vmul.f32 %v1292, 4.7942553
        %v1357 = vmul.f32 %v1293, 4.7942553
        %v1358 = vmul.f32 %v1294, 4.7942553
        %v1359 = vmul.f32 %v1295, 4.7942553
        %v1360 = vmul.f32 %v1296, 4.7942553
        %v1361 = vmul.f32 %v1297, 4.7942553
        %v1362 = vmul.f32 %v1298, 4.7942553
        %v1363 = vmul.f32 %v1299, 4.7942553
        %v1364 = vmul.f32 %v1300, 4.7942553
        %v1365 = vmul.f32 %v1301, 4.7942553
        %v1366 = vmul.f32 %v1302, 4.7942553
        %v1367 = vmul.f32 %v1303, 4.7942553
        %v1368 = vmul.f32 %v1304, 4.7942553
        %v1369 = vmul.f32 %v1305, 4.7942553
        %v1370 = vmul.f32 %v1306, 4.7942553
        %v1371 = vmul.f32 %v1307, 4.7942553
        %v1372 = vmul.f32 %v1308, 4.7942553
        %v1373 = vmul.f32 %v1309, 4.7942553
        %v1374 = vmul.f32 %v1310, 4.7942553
        %v1375 = vmul.f32 %v1311, 4.7942553
        %v1376 = vmul.f32 %v1312, 4.7942553
        %v1377 = vmul.f32 %v1313, 4.7942553
        %v1378 = vmul.f32 %v1314, 4.7942553
        %v1379 = vmul.f32 %v1315, 4.7942553
        %v1380 = vmul.f32 %v1316, 4.7942553
        %v1381 = vsub.f32 %v805, %v1317
        %v1382 = vsub.f32 %v806, %v1318
        %v1383 = vsub.f32 %v807, %v1319
        %v1384 = vsub.f32 %v808, %v1320
        %v1385 = vsub.f32 %v809, %v1321
        %v1386 = vsub.f32 %v810, %v1322
        %v1387 = vsub.f32 %v811, %v1323
        %v1388 = vsub.f32 %v812, %v1324
        %v1389 = vsub.f32 %v813, %v1325
        %v1390 = vsub.f32 %v814, %v1326
        %v1391 = vsub.f32 %v815, %v1327
        %v1392 = vsub.f32 %v816, %v1328
        %v1393 = vsub.f32 %v817, %v1329
        %v1394 = vsub.f32 %v818, %v1330
        %v1395 = vsub.f32 %v819, %v1331
        %v1396 = vsub.f32 %v820, %v1332
        %v1397 = vsub.f32 %v821, %v1333
        %v1398 = vsub.f32 %v822, %v1334
        %v1399 = vsub.f32 %v823, %v1335
        %v1400 = vsub.f32 %v824, %v1336
        %v1401 = vsub.f32 %v825, %v1337
        %v1402 = vsub.f32 %v826, %v1338
        %v1403 = vsub.f32 %v827, %v1339
        %v1404 = vsub.f32 %v828, %v1340
        %v1405 = vsub.f32 %v829, %v1341
        %v1406 = vsub.f32 %v830, %v1342
        %v1407 = vsub.f32 %v831, %v1343
        %v1408 = vsub.f32 %v832, %v1344
        %v1409 = vsub.f32 %v833, %v1345
        %v1410 = vsub.f32 %v834, %v1346
        %v1411 = vsub.f32 %v835, %v1347
        %v1412 = vsub.f32 %v836, %v1348
        %v1413 = vsub.f32 %v837, %v1349
        %v1414 = vsub.f32 %v838, %v1350
        %v1415 = vsub.f32 %v839, %v1351
        %v1416 = vsub.f32 %v840, %v1352
        %v1417 = vsub.f32 %v841, %v1353
        %v1418 = vsub.f32 %v842, %v1354
        %v1419 = vsub.f32 %v843, %v1355
        %v1420 = vsub.f32 %v844, %v1356
        %v1421 = vsub.f32 %v845, %v1357
        %v1422 = vsub.f32 %v846, %v1358
        %v1423 = vsub.f32 %v847, %v1359
        %v1424 = vsub.f32 %v848, %v1360
        %v1425 = vsub.f32 %v849, %v1361
        %v1426 = vsub.f32 %v850, %v1362
        %v1427 = vsub.f32 %v851, %v1363
        %v1428 = vsub.f32 %v852, %v1364
        %v1429 = vsub.f32 %v853, %v1365
        %v1430 = vsub.f32 %v854, %v1366
        %v1431 = vsub.f32 %v855, %v1367
        %v1432 = vsub.f32 %v856, %v1368
        %v1433 = vsub.f32 %v857, %v1369
        %v1434 = vsub.f32 %v858, %v1370
        %v1435 = vsub.f32 %v859, %v1371
        %v1436 = vsub.f32 %v860, %v1372
        %v1437 = vsub.f32 %v861, %v1373
        %v1438 = vsub.f32 %v862, %v1374
        %v1439 = vsub.f32 %v863, %v1375
        %v1440 = vsub.f32 %v864, %v1376
        %v1441 = vsub.f32 %v865, %v1377
        %v1442 = vsub.f32 %v866, %v1378
        %v1443 = vsub.f32 %v867, %v1379
        %v1444 = vsub.f32 %v868, %v1380
        %v1445 = vmul.f32 %v1381, 1.442695
        %v1446 = vpow.pop %v1445
        %v1447 = vmul.f32 %v1382, 1.442695
        %v1448 = vpow.pop %v1447
        %v1449 = vmul.f32 %v1383, 1.442695
        %v1450 = vpow.pop %v1449
        %v1451 = vmul.f32 %v1384, 1.442695
        %v1452 = vpow.pop %v1451
        %v1453 = vmul.f32 %v1385, 1.442695
        %v1454 = vpow.pop %v1453
        %v1455 = vmul.f32 %v1386, 1.442695
        %v1456 = vpow.pop %v1455
        %v1457 = vmul.f32 %v1387, 1.442695
        %v1458 = vpow.pop %v1457
        %v1459 = vmul.f32 %v1388, 1.442695
        %v1460 = vpow.pop %v1459
        %v1461 = vmul.f32 %v1389, 1.442695
        %v1462 = vpow.pop %v1461
        %v1463 = vmul.f32 %v1390, 1.442695
        %v1464 = vpow.pop %v1463
        %v1465 = vmul.f32 %v1391, 1.442695
        %v1466 = vpow.pop %v1465
        %v1467 = vmul.f32 %v1392, 1.442695
        %v1468 = vpow.pop %v1467
        %v1469 = vmul.f32 %v1393, 1.442695
        %v1470 = vpow.pop %v1469
        %v1471 = vmul.f32 %v1394, 1.442695
        %v1472 = vpow.pop %v1471
        %v1473 = vmul.f32 %v1395, 1.442695
        %v1474 = vpow.pop %v1473
        %v1475 = vmul.f32 %v1396, 1.442695
        %v1476 = vpow.pop %v1475
        %v1477 = vmul.f32 %v1397, 1.442695
        %v1478 = vpow.pop %v1477
        %v1479 = vmul.f32 %v1398, 1.442695
        %v1480 = vpow.pop %v1479
        %v1481 = vmul.f32 %v1399, 1.442695
        %v1482 = vpow.pop %v1481
        %v1483 = vmul.f32 %v1400, 1.442695
        %v1484 = vpow.pop %v1483
        %v1485 = vmul.f32 %v1401, 1.442695
        %v1486 = vpow.pop %v1485
        %v1487 = vmul.f32 %v1402, 1.442695
        %v1488 = vpow.pop %v1487
        %v1489 = vmul.f32 %v1403, 1.442695
        %v1490 = vpow.pop %v1489
        %v1491 = vmul.f32 %v1404, 1.442695
        %v1492 = vpow.pop %v1491
        %v1493 = vmul.f32 %v1405, 1.442695
        %v1494 = vpow.pop %v1493
        %v1495 = vmul.f32 %v1406, 1.442695
        %v1496 = vpow.pop %v1495
        %v1497 = vmul.f32 %v1407, 1.442695
        %v1498 = vpow.pop %v1497
        %v1499 = vmul.f32 %v1408, 1.442695
        %v1500 = vpow.pop %v1499
        %v1501 = vmul.f32 %v1409, 1.442695
        %v1502 = vpow.pop %v1501
        %v1503 = vmul.f32 %v1410, 1.442695
        %v1504 = vpow.pop %v1503
        %v1505 = vmul.f32 %v1411, 1.442695
        %v1506 = vpow.pop %v1505
        %v1507 = vmul.f32 %v1412, 1.442695
        %v1508 = vpow.pop %v1507
        %v1509 = vmul.f32 %v1413, 1.442695
        %v1510 = vpow.pop %v1509
        %v1511 = vmul.f32 %v1414, 1.442695
        %v1512 = vpow.pop %v1511
        %v1513 = vmul.f32 %v1415, 1.442695
        %v1514 = vpow.pop %v1513
        %v1515 = vmul.f32 %v1416, 1.442695
        %v1516 = vpow.pop %v1515
        %v1517 = vmul.f32 %v1417, 1.442695
        %v1518 = vpow.pop %v1517
        %v1519 = vmul.f32 %v1418, 1.442695
        %v1520 = vpow.pop %v1519
        %v1521 = vmul.f32 %v1419, 1.442695
        %v1522 = vpow.pop %v1521
        %v1523 = vmul.f32 %v1420, 1.442695
        %v1524 = vpow.pop %v1523
        %v1525 = vmul.f32 %v1421, 1.442695
        %v1526 = vpow.pop %v1525
        %v1527 = vmul.f32 %v1422, 1.442695
        %v1528 = vpow.pop %v1527
        %v1529 = vmul.f32 %v1423, 1.442695
        %v1530 = vpow.pop %v1529
        %v1531 = vmul.f32 %v1424, 1.442695
        %v1532 = vpow.pop %v1531
        %v1533 = vmul.f32 %v1425, 1.442695
        %v1534 = vpow.pop %v1533
        %v1535 = vmul.f32 %v1426, 1.442695
        %v1536 = vpow.pop %v1535
        %v1537 = vmul.f32 %v1427, 1.442695
        %v1538 = vpow.pop %v1537
        %v1539 = vmul.f32 %v1428, 1.442695
        %v1540 = vpow.pop %v1539
        %v1541 = vmul.f32 %v1429, 1.442695
        %v1542 = vpow.pop %v1541
        %v1543 = vmul.f32 %v1430, 1.442695
        %v1544 = vpow.pop %v1543
        %v1545 = vmul.f32 %v1431, 1.442695
        %v1546 = vpow.pop %v1545
        %v1547 = vmul.f32 %v1432, 1.442695
        %v1548 = vpow.pop %v1547
        %v1549 = vmul.f32 %v1433, 1.442695
        %v1550 = vpow.pop %v1549
        %v1551 = vmul.f32 %v1434, 1.442695
        %v1552 = vpow.pop %v1551
        %v1553 = vmul.f32 %v1435, 1.442695
        %v1554 = vpow.pop %v1553
        %v1555 = vmul.f32 %v1436, 1.442695
        %v1556 = vpow.pop %v1555
        %v1557 = vmul.f32 %v1437, 1.442695
        %v1558 = vpow.pop %v1557
        %v1559 = vmul.f32 %v1438, 1.442695
        %v1560 = vpow.pop %v1559
        %v1561 = vmul.f32 %v1439, 1.442695
        %v1562 = vpow.pop %v1561
        %v1563 = vmul.f32 %v1440, 1.442695
        %v1564 = vpow.pop %v1563
        %v1565 = vmul.f32 %v1441, 1.442695
        %v1566 = vpow.pop %v1565
        %v1567 = vmul.f32 %v1442, 1.442695
        %v1568 = vpow.pop %v1567
        %v1569 = vmul.f32 %v1443, 1.442695
        %v1570 = vpow.pop %v1569
        %v1571 = vmul.f32 %v1444, 1.442695
        %v1572 = vpow.pop %v1571
        %v1573 = vadd.f32 %v678, %v680
        %v1574 = vadd.f32 %v1573, %v682
        %v1575 = vadd.f32 %v1574, %v684
        %1576 = vadd.xlane.f32.xlu0 %v1575
        %v1577 = vpop.xlane.xlu0 %1576
        %v1578 = vadd.f32 %v686, %v688
        %v1579 = vadd.f32 %v1578, %v690
        %v1580 = vadd.f32 %v1579, %v692
        %1581 = vadd.xlane.f32.xlu0 %v1580
        %v1582 = vpop.xlane.xlu0 %1581
        %v1583 = vadd.f32 %v694, %v696
        %v1584 = vadd.f32 %v1583, %v698
        %v1585 = vadd.f32 %v1584, %v700
        %1586 = vadd.xlane.f32.xlu0 %v1585
        %v1587 = vpop.xlane.xlu0 %1586
        %v1588 = vadd.f32 %v702, %v704
        %v1589 = vadd.f32 %v1588, %v706
        %v1590 = vadd.f32 %v1589, %v708
        %1591 = vadd.xlane.f32.xlu0 %v1590
        %v1592 = vpop.xlane.xlu0 %1591
        %v1593 = vadd.f32 %v710, %v712
        %v1594 = vadd.f32 %v1593, %v714
        %v1595 = vadd.f32 %v1594, %v716
        %1596 = vadd.xlane.f32.xlu0 %v1595
        %v1597 = vpop.xlane.xlu0 %1596
        %v1598 = vadd.f32 %v718, %v720
        %v1599 = vadd.f32 %v1598, %v722
        %v1600 = vadd.f32 %v1599, %v724
        %1601 = vadd.xlane.f32.xlu0 %v1600
        %v1602 = vpop.xlane.xlu0 %1601
        %v1603 = vadd.f32 %v726, %v728
        %v1604 = vadd.f32 %v1603, %v730
        %v1605 = vadd.f32 %v1604, %v732
        %1606 = vadd.xlane.f32.xlu0 %v1605
        %v1607 = vpop.xlane.xlu0 %1606
        %v1608 = vadd.f32 %v734, %v736
        %v1609 = vadd.f32 %v1608, %v738
        %v1610 = vadd.f32 %v1609, %v740
        %1611 = vadd.xlane.f32.xlu0 %v1610
        %v1612 = vpop.xlane.xlu0 %1611
        %v1613 = vadd.f32 %v742, %v744
        %v1614 = vadd.f32 %v1613, %v746
        %v1615 = vadd.f32 %v1614, %v748
        %1616 = vadd.xlane.f32.xlu0 %v1615
        %v1617 = vpop.xlane.xlu0 %1616
        %v1618 = vadd.f32 %v750, %v752
        %v1619 = vadd.f32 %v1618, %v754
        %v1620 = vadd.f32 %v1619, %v756
        %1621 = vadd.xlane.f32.xlu0 %v1620
        %v1622 = vpop.xlane.xlu0 %1621
        %v1623 = vadd.f32 %v758, %v760
        %v1624 = vadd.f32 %v1623, %v762
        %v1625 = vadd.f32 %v1624, %v764
        %1626 = vadd.xlane.f32.xlu0 %v1625
        %v1627 = vpop.xlane.xlu0 %1626
        %v1628 = vadd.f32 %v766, %v768
        %v1629 = vadd.f32 %v1628, %v770
        %v1630 = vadd.f32 %v1629, %v772
        %1631 = vadd.xlane.f32.xlu0 %v1630
        %v1632 = vpop.xlane.xlu0 %1631
        %v1633 = vadd.f32 %v774, %v776
        %v1634 = vadd.f32 %v1633, %v778
        %v1635 = vadd.f32 %v1634, %v780
        %1636 = vadd.xlane.f32.xlu0 %v1635
        %v1637 = vpop.xlane.xlu0 %1636
        %v1638 = vadd.f32 %v782, %v784
        %v1639 = vadd.f32 %v1638, %v786
        %v1640 = vadd.f32 %v1639, %v788
        %1641 = vadd.xlane.f32.xlu0 %v1640
        %v1642 = vpop.xlane.xlu0 %1641
        %v1643 = vadd.f32 %v790, %v792
        %v1644 = vadd.f32 %v1643, %v794
        %v1645 = vadd.f32 %v1644, %v796
        %1646 = vadd.xlane.f32.xlu0 %v1645
        %v1647 = vpop.xlane.xlu0 %1646
        %v1648 = vadd.f32 %v798, %v800
        %v1649 = vadd.f32 %v1648, %v802
        %v1650 = vadd.f32 %v1649, %v804
        %1651 = vadd.xlane.f32.xlu0 %v1650
        %v1652 = vpop.xlane.xlu0 %1651
        %v1653 = vsub.f32 %v1577, %v678
        %v1654 = vsub.f32 %v1577, %v680
        %v1655 = vsub.f32 %v1577, %v682
        %v1656 = vsub.f32 %v1577, %v684
        %v1657 = vsub.f32 %v1582, %v686
        %v1658 = vsub.f32 %v1582, %v688
        %v1659 = vsub.f32 %v1582, %v690
        %v1660 = vsub.f32 %v1582, %v692
        %v1661 = vsub.f32 %v1587, %v694
        %v1662 = vsub.f32 %v1587, %v696
        %v1663 = vsub.f32 %v1587, %v698
        %v1664 = vsub.f32 %v1587, %v700
        %v1665 = vsub.f32 %v1592, %v702
        %v1666 = vsub.f32 %v1592, %v704
        %v1667 = vsub.f32 %v1592, %v706
        %v1668 = vsub.f32 %v1592, %v708
        %v1669 = vsub.f32 %v1597, %v710
        %v1670 = vsub.f32 %v1597, %v712
        %v1671 = vsub.f32 %v1597, %v714
        %v1672 = vsub.f32 %v1597, %v716
        %v1673 = vsub.f32 %v1602, %v718
        %v1674 = vsub.f32 %v1602, %v720
        %v1675 = vsub.f32 %v1602, %v722
        %v1676 = vsub.f32 %v1602, %v724
        %v1677 = vsub.f32 %v1607, %v726
        %v1678 = vsub.f32 %v1607, %v728
        %v1679 = vsub.f32 %v1607, %v730
        %v1680 = vsub.f32 %v1607, %v732
        %v1681 = vsub.f32 %v1612, %v734
        %v1682 = vsub.f32 %v1612, %v736
        %v1683 = vsub.f32 %v1612, %v738
        %v1684 = vsub.f32 %v1612, %v740
        %v1685 = vsub.f32 %v1617, %v742
        %v1686 = vsub.f32 %v1617, %v744
        %v1687 = vsub.f32 %v1617, %v746
        %v1688 = vsub.f32 %v1617, %v748
        %v1689 = vsub.f32 %v1622, %v750
        %v1690 = vsub.f32 %v1622, %v752
        %v1691 = vsub.f32 %v1622, %v754
        %v1692 = vsub.f32 %v1622, %v756
        %v1693 = vsub.f32 %v1627, %v758
        %v1694 = vsub.f32 %v1627, %v760
        %v1695 = vsub.f32 %v1627, %v762
        %v1696 = vsub.f32 %v1627, %v764
        %v1697 = vsub.f32 %v1632, %v766
        %v1698 = vsub.f32 %v1632, %v768
        %v1699 = vsub.f32 %v1632, %v770
        %v1700 = vsub.f32 %v1632, %v772
        %v1701 = vsub.f32 %v1637, %v774
        %v1702 = vsub.f32 %v1637, %v776
        %v1703 = vsub.f32 %v1637, %v778
        %v1704 = vsub.f32 %v1637, %v780
        %v1705 = vsub.f32 %v1642, %v782
        %v1706 = vsub.f32 %v1642, %v784
        %v1707 = vsub.f32 %v1642, %v786
        %v1708 = vsub.f32 %v1642, %v788
        %v1709 = vsub.f32 %v1647, %v790
        %v1710 = vsub.f32 %v1647, %v792
        %v1711 = vsub.f32 %v1647, %v794
        %v1712 = vsub.f32 %v1647, %v796
        %v1713 = vsub.f32 %v1652, %v798
        %v1714 = vsub.f32 %v1652, %v800
        %v1715 = vsub.f32 %v1652, %v802
        %v1716 = vsub.f32 %v1652, %v804
        %v1717 = vadd.f32 %v1653, %v1446
        %v1718 = vadd.f32 %v1654, %v1448
        %v1719 = vadd.f32 %v1655, %v1450
        %v1720 = vadd.f32 %v1656, %v1452
        %v1721 = vadd.f32 %v1657, %v1454
        %v1722 = vadd.f32 %v1658, %v1456
        %v1723 = vadd.f32 %v1659, %v1458
        %v1724 = vadd.f32 %v1660, %v1460
        %v1725 = vadd.f32 %v1661, %v1462
        %v1726 = vadd.f32 %v1662, %v1464
        %v1727 = vadd.f32 %v1663, %v1466
        %v1728 = vadd.f32 %v1664, %v1468
        %v1729 = vadd.f32 %v1665, %v1470
        %v1730 = vadd.f32 %v1666, %v1472
        %v1731 = vadd.f32 %v1667, %v1474
        %v1732 = vadd.f32 %v1668, %v1476
        %v1733 = vadd.f32 %v1669, %v1478
        %v1734 = vadd.f32 %v1670, %v1480
        %v1735 = vadd.f32 %v1671, %v1482
        %v1736 = vadd.f32 %v1672, %v1484
        %v1737 = vadd.f32 %v1673, %v1486
        %v1738 = vadd.f32 %v1674, %v1488
        %v1739 = vadd.f32 %v1675, %v1490
        %v1740 = vadd.f32 %v1676, %v1492
        %v1741 = vadd.f32 %v1677, %v1494
        %v1742 = vadd.f32 %v1678, %v1496
        %v1743 = vadd.f32 %v1679, %v1498
        %v1744 = vadd.f32 %v1680, %v1500
        %v1745 = vadd.f32 %v1681, %v1502
        %v1746 = vadd.f32 %v1682, %v1504
        %v1747 = vadd.f32 %v1683, %v1506
        %v1748 = vadd.f32 %v1684, %v1508
        %v1749 = vadd.f32 %v1685, %v1510
        %v1750 = vadd.f32 %v1686, %v1512
        %v1751 = vadd.f32 %v1687, %v1514
        %v1752 = vadd.f32 %v1688, %v1516
        %v1753 = vadd.f32 %v1689, %v1518
        %v1754 = vadd.f32 %v1690, %v1520
        %v1755 = vadd.f32 %v1691, %v1522
        %v1756 = vadd.f32 %v1692, %v1524
        %v1757 = vadd.f32 %v1693, %v1526
        %v1758 = vadd.f32 %v1694, %v1528
        %v1759 = vadd.f32 %v1695, %v1530
        %v1760 = vadd.f32 %v1696, %v1532
        %v1761 = vadd.f32 %v1697, %v1534
        %v1762 = vadd.f32 %v1698, %v1536
        %v1763 = vadd.f32 %v1699, %v1538
        %v1764 = vadd.f32 %v1700, %v1540
        %v1765 = vadd.f32 %v1701, %v1542
        %v1766 = vadd.f32 %v1702, %v1544
        %v1767 = vadd.f32 %v1703, %v1546
        %v1768 = vadd.f32 %v1704, %v1548
        %v1769 = vadd.f32 %v1705, %v1550
        %v1770 = vadd.f32 %v1706, %v1552
        %v1771 = vadd.f32 %v1707, %v1554
        %v1772 = vadd.f32 %v1708, %v1556
        %v1773 = vadd.f32 %v1709, %v1558
        %v1774 = vadd.f32 %v1710, %v1560
        %v1775 = vadd.f32 %v1711, %v1562
        %v1776 = vadd.f32 %v1712, %v1564
        %v1777 = vadd.f32 %v1713, %v1566
        %v1778 = vadd.f32 %v1714, %v1568
        %v1779 = vadd.f32 %v1715, %v1570
        %v1780 = vadd.f32 %v1716, %v1572
        %v1781 = vrcp.pop %v1717
        %v1782 = vrcp.pop %v1718
        %v1783 = vrcp.pop %v1719
        %v1784 = vrcp.pop %v1720
        %v1785 = vrcp.pop %v1721
        %v1786 = vrcp.pop %v1722
        %v1787 = vrcp.pop %v1723
        %v1788 = vrcp.pop %v1724
        %v1789 = vrcp.pop %v1725
        %v1790 = vrcp.pop %v1726
        %v1791 = vrcp.pop %v1727
        %v1792 = vrcp.pop %v1728
        %v1793 = vrcp.pop %v1729
        %v1794 = vrcp.pop %v1730
        %v1795 = vrcp.pop %v1731
        %v1796 = vrcp.pop %v1732
        %v1797 = vrcp.pop %v1733
        %v1798 = vrcp.pop %v1734
        %v1799 = vrcp.pop %v1735
        %v1800 = vrcp.pop %v1736
        %v1801 = vrcp.pop %v1737
        %v1802 = vrcp.pop %v1738
        %v1803 = vrcp.pop %v1739
        %v1804 = vrcp.pop %v1740
        %v1805 = vrcp.pop %v1741
        %v1806 = vrcp.pop %v1742
        %v1807 = vrcp.pop %v1743
        %v1808 = vrcp.pop %v1744
        %v1809 = vrcp.pop %v1745
        %v1810 = vrcp.pop %v1746
        %v1811 = vrcp.pop %v1747
        %v1812 = vrcp.pop %v1748
        %v1813 = vrcp.pop %v1749
        %v1814 = vrcp.pop %v1750
        %v1815 = vrcp.pop %v1751
        %v1816 = vrcp.pop %v1752
        %v1817 = vrcp.pop %v1753
        %v1818 = vrcp.pop %v1754
        %v1819 = vrcp.pop %v1755
        %v1820 = vrcp.pop %v1756
        %v1821 = vrcp.pop %v1757
        %v1822 = vrcp.pop %v1758
        %v1823 = vrcp.pop %v1759
        %v1824 = vrcp.pop %v1760
        %v1825 = vrcp.pop %v1761
        %v1826 = vrcp.pop %v1762
        %v1827 = vrcp.pop %v1763
        %v1828 = vrcp.pop %v1764
        %v1829 = vrcp.pop %v1765
        %v1830 = vrcp.pop %v1766
        %v1831 = vrcp.pop %v1767
        %v1832 = vrcp.pop %v1768
        %v1833 = vrcp.pop %v1769
        %v1834 = vrcp.pop %v1770
        %v1835 = vrcp.pop %v1771
        %v1836 = vrcp.pop %v1772
        %v1837 = vrcp.pop %v1773
        %v1838 = vrcp.pop %v1774
        %v1839 = vrcp.pop %v1775
        %v1840 = vrcp.pop %v1776
        %v1841 = vrcp.pop %v1777
        %v1842 = vrcp.pop %v1778
        %v1843 = vrcp.pop %v1779
        %v1844 = vrcp.pop %v1780
        %v1845 = vmul.f32 %v1717, %v1781
        %v1846 = vmul.f32 %v1718, %v1782
        %v1847 = vmul.f32 %v1719, %v1783
        %v1848 = vmul.f32 %v1720, %v1784
        %v1849 = vmul.f32 %v1721, %v1785
        %v1850 = vmul.f32 %v1722, %v1786
        %v1851 = vmul.f32 %v1723, %v1787
        %v1852 = vmul.f32 %v1724, %v1788
        %v1853 = vmul.f32 %v1725, %v1789
        %v1854 = vmul.f32 %v1726, %v1790
        %v1855 = vmul.f32 %v1727, %v1791
        %v1856 = vmul.f32 %v1728, %v1792
        %v1857 = vmul.f32 %v1729, %v1793
        %v1858 = vmul.f32 %v1730, %v1794
        %v1859 = vmul.f32 %v1731, %v1795
        %v1860 = vmul.f32 %v1732, %v1796
        %v1861 = vmul.f32 %v1733, %v1797
        %v1862 = vmul.f32 %v1734, %v1798
        %v1863 = vmul.f32 %v1735, %v1799
        %v1864 = vmul.f32 %v1736, %v1800
        %v1865 = vmul.f32 %v1737, %v1801
        %v1866 = vmul.f32 %v1738, %v1802
        %v1867 = vmul.f32 %v1739, %v1803
        %v1868 = vmul.f32 %v1740, %v1804
        %v1869 = vmul.f32 %v1741, %v1805
        %v1870 = vmul.f32 %v1742, %v1806
        %v1871 = vmul.f32 %v1743, %v1807
        %v1872 = vmul.f32 %v1744, %v1808
        %v1873 = vmul.f32 %v1745, %v1809
        %v1874 = vmul.f32 %v1746, %v1810
        %v1875 = vmul.f32 %v1747, %v1811
        %v1876 = vmul.f32 %v1748, %v1812
        %v1877 = vmul.f32 %v1749, %v1813
        %v1878 = vmul.f32 %v1750, %v1814
        %v1879 = vmul.f32 %v1751, %v1815
        %v1880 = vmul.f32 %v1752, %v1816
        %v1881 = vmul.f32 %v1753, %v1817
        %v1882 = vmul.f32 %v1754, %v1818
        %v1883 = vmul.f32 %v1755, %v1819
        %v1884 = vmul.f32 %v1756, %v1820
        %v1885 = vmul.f32 %v1757, %v1821
        %v1886 = vmul.f32 %v1758, %v1822
        %v1887 = vmul.f32 %v1759, %v1823
        %v1888 = vmul.f32 %v1760, %v1824
        %v1889 = vmul.f32 %v1761, %v1825
        %v1890 = vmul.f32 %v1762, %v1826
        %v1891 = vmul.f32 %v1763, %v1827
        %v1892 = vmul.f32 %v1764, %v1828
        %v1893 = vmul.f32 %v1765, %v1829
        %v1894 = vmul.f32 %v1766, %v1830
        %v1895 = vmul.f32 %v1767, %v1831
        %v1896 = vmul.f32 %v1768, %v1832
        %v1897 = vmul.f32 %v1769, %v1833
        %v1898 = vmul.f32 %v1770, %v1834
        %v1899 = vmul.f32 %v1771, %v1835
        %v1900 = vmul.f32 %v1772, %v1836
        %v1901 = vmul.f32 %v1773, %v1837
        %v1902 = vmul.f32 %v1774, %v1838
        %v1903 = vmul.f32 %v1775, %v1839
        %v1904 = vmul.f32 %v1776, %v1840
        %v1905 = vmul.f32 %v1777, %v1841
        %v1906 = vmul.f32 %v1778, %v1842
        %v1907 = vmul.f32 %v1779, %v1843
        %v1908 = vmul.f32 %v1780, %v1844
        %v1909 = vsub.f32 2.0, %v1845
        %v1910 = vsub.f32 2.0, %v1846
        %v1911 = vsub.f32 2.0, %v1847
        %v1912 = vsub.f32 2.0, %v1848
        %v1913 = vsub.f32 2.0, %v1849
        %v1914 = vsub.f32 2.0, %v1850
        %v1915 = vsub.f32 2.0, %v1851
        %v1916 = vsub.f32 2.0, %v1852
        %v1917 = vsub.f32 2.0, %v1853
        %v1918 = vsub.f32 2.0, %v1854
        %v1919 = vsub.f32 2.0, %v1855
        %v1920 = vsub.f32 2.0, %v1856
        %v1921 = vsub.f32 2.0, %v1857
        %v1922 = vsub.f32 2.0, %v1858
        %v1923 = vsub.f32 2.0, %v1859
        %v1924 = vsub.f32 2.0, %v1860
        %v1925 = vsub.f32 2.0, %v1861
        %v1926 = vsub.f32 2.0, %v1862
        %v1927 = vsub.f32 2.0, %v1863
        %v1928 = vsub.f32 2.0, %v1864
        %v1929 = vsub.f32 2.0, %v1865
        %v1930 = vsub.f32 2.0, %v1866
        %v1931 = vsub.f32 2.0, %v1867
        %v1932 = vsub.f32 2.0, %v1868
        %v1933 = vsub.f32 2.0, %v1869
        %v1934 = vsub.f32 2.0, %v1870
        %v1935 = vsub.f32 2.0, %v1871
        %v1936 = vsub.f32 2.0, %v1872
        %v1937 = vsub.f32 2.0, %v1873
        %v1938 = vsub.f32 2.0, %v1874
        %v1939 = vsub.f32 2.0, %v1875
        %v1940 = vsub.f32 2.0, %v1876
        %v1941 = vsub.f32 2.0, %v1877
        %v1942 = vsub.f32 2.0, %v1878
        %v1943 = vsub.f32 2.0, %v1879
        %v1944 = vsub.f32 2.0, %v1880
        %v1945 = vsub.f32 2.0, %v1881
        %v1946 = vsub.f32 2.0, %v1882
        %v1947 = vsub.f32 2.0, %v1883
        %v1948 = vsub.f32 2.0, %v1884
        %v1949 = vsub.f32 2.0, %v1885
        %v1950 = vsub.f32 2.0, %v1886
        %v1951 = vsub.f32 2.0, %v1887
        %v1952 = vsub.f32 2.0, %v1888
        %v1953 = vsub.f32 2.0, %v1889
        %v1954 = vsub.f32 2.0, %v1890
        %v1955 = vsub.f32 2.0, %v1891
        %v1956 = vsub.f32 2.0, %v1892
        %v1957 = vsub.f32 2.0, %v1893
        %v1958 = vsub.f32 2.0, %v1894
        %v1959 = vsub.f32 2.0, %v1895
        %v1960 = vsub.f32 2.0, %v1896
        %v1961 = vsub.f32 2.0, %v1897
        %v1962 = vsub.f32 2.0, %v1898
        %v1963 = vsub.f32 2.0, %v1899
        %v1964 = vsub.f32 2.0, %v1900
        %v1965 = vsub.f32 2.0, %v1901
        %v1966 = vsub.f32 2.0, %v1902
        %v1967 = vsub.f32 2.0, %v1903
        %v1968 = vsub.f32 2.0, %v1904
        %v1969 = vsub.f32 2.0, %v1905
        %v1970 = vsub.f32 2.0, %v1906
        %v1971 = vsub.f32 2.0, %v1907
        %v1972 = vsub.f32 2.0, %v1908
        %v1973 = vmul.f32 %v1781, %v1909
        %v1974 = vmul.f32 %v1782, %v1910
        %v1975 = vmul.f32 %v1783, %v1911
        %v1976 = vmul.f32 %v1784, %v1912
        %v1977 = vmul.f32 %v1785, %v1913
        %v1978 = vmul.f32 %v1786, %v1914
        %v1979 = vmul.f32 %v1787, %v1915
        %v1980 = vmul.f32 %v1788, %v1916
        %v1981 = vmul.f32 %v1789, %v1917
        %v1982 = vmul.f32 %v1790, %v1918
        %v1983 = vmul.f32 %v1791, %v1919
        %v1984 = vmul.f32 %v1792, %v1920
        %v1985 = vmul.f32 %v1793, %v1921
        %v1986 = vmul.f32 %v1794, %v1922
        %v1987 = vmul.f32 %v1795, %v1923
        %v1988 = vmul.f32 %v1796, %v1924
        %v1989 = vmul.f32 %v1797, %v1925
        %v1990 = vmul.f32 %v1798, %v1926
        %v1991 = vmul.f32 %v1799, %v1927
        %v1992 = vmul.f32 %v1800, %v1928
        %v1993 = vmul.f32 %v1801, %v1929
        %v1994 = vmul.f32 %v1802, %v1930
        %v1995 = vmul.f32 %v1803, %v1931
        %v1996 = vmul.f32 %v1804, %v1932
        %v1997 = vmul.f32 %v1805, %v1933
        %v1998 = vmul.f32 %v1806, %v1934
        %v1999 = vmul.f32 %v1807, %v1935
        %v2000 = vmul.f32 %v1808, %v1936
        %v2001 = vmul.f32 %v1809, %v1937
        %v2002 = vmul.f32 %v1810, %v1938
        %v2003 = vmul.f32 %v1811, %v1939
        %v2004 = vmul.f32 %v1812, %v1940
        %v2005 = vmul.f32 %v1813, %v1941
        %v2006 = vmul.f32 %v1814, %v1942
        %v2007 = vmul.f32 %v1815, %v1943
        %v2008 = vmul.f32 %v1816, %v1944
        %v2009 = vmul.f32 %v1817, %v1945
        %v2010 = vmul.f32 %v1818, %v1946
        %v2011 = vmul.f32 %v1819, %v1947
        %v2012 = vmul.f32 %v1820, %v1948
        %v2013 = vmul.f32 %v1821, %v1949
        %v2014 = vmul.f32 %v1822, %v1950
        %v2015 = vmul.f32 %v1823, %v1951
        %v2016 = vmul.f32 %v1824, %v1952
        %v2017 = vmul.f32 %v1825, %v1953
        %v2018 = vmul.f32 %v1826, %v1954
        %v2019 = vmul.f32 %v1827, %v1955
        %v2020 = vmul.f32 %v1828, %v1956
        %v2021 = vmul.f32 %v1829, %v1957
        %v2022 = vmul.f32 %v1830, %v1958
        %v2023 = vmul.f32 %v1831, %v1959
        %v2024 = vmul.f32 %v1832, %v1960
        %v2025 = vmul.f32 %v1833, %v1961
        %v2026 = vmul.f32 %v1834, %v1962
        %v2027 = vmul.f32 %v1835, %v1963
        %v2028 = vmul.f32 %v1836, %v1964
        %v2029 = vmul.f32 %v1837, %v1965
        %v2030 = vmul.f32 %v1838, %v1966
        %v2031 = vmul.f32 %v1839, %v1967
        %v2032 = vmul.f32 %v1840, %v1968
        %v2033 = vmul.f32 %v1841, %v1969
        %v2034 = vmul.f32 %v1842, %v1970
        %v2035 = vmul.f32 %v1843, %v1971
        %v2036 = vmul.f32 %v1844, %v1972
        %v2037 = vmul.f32 %v1446, %v1973
        %v2038 = vmul.f32 %v1448, %v1974
        %v2039 = vmul.f32 %v1450, %v1975
        %v2040 = vmul.f32 %v1452, %v1976
        %v2041 = vmul.f32 %v1454, %v1977
        %v2042 = vmul.f32 %v1456, %v1978
        %v2043 = vmul.f32 %v1458, %v1979
        %v2044 = vmul.f32 %v1460, %v1980
        %v2045 = vmul.f32 %v1462, %v1981
        %v2046 = vmul.f32 %v1464, %v1982
        %v2047 = vmul.f32 %v1466, %v1983
        %v2048 = vmul.f32 %v1468, %v1984
        %v2049 = vmul.f32 %v1470, %v1985
        %v2050 = vmul.f32 %v1472, %v1986
        %v2051 = vmul.f32 %v1474, %v1987
        %v2052 = vmul.f32 %v1476, %v1988
        %v2053 = vmul.f32 %v1478, %v1989
        %v2054 = vmul.f32 %v1480, %v1990
        %v2055 = vmul.f32 %v1482, %v1991
        %v2056 = vmul.f32 %v1484, %v1992
        %v2057 = vmul.f32 %v1486, %v1993
        %v2058 = vmul.f32 %v1488, %v1994
        %v2059 = vmul.f32 %v1490, %v1995
        %v2060 = vmul.f32 %v1492, %v1996
        %v2061 = vmul.f32 %v1494, %v1997
        %v2062 = vmul.f32 %v1496, %v1998
        %v2063 = vmul.f32 %v1498, %v1999
        %v2064 = vmul.f32 %v1500, %v2000
        %v2065 = vmul.f32 %v1502, %v2001
        %v2066 = vmul.f32 %v1504, %v2002
        %v2067 = vmul.f32 %v1506, %v2003
        %v2068 = vmul.f32 %v1508, %v2004
        %v2069 = vmul.f32 %v1510, %v2005
        %v2070 = vmul.f32 %v1512, %v2006
        %v2071 = vmul.f32 %v1514, %v2007
        %v2072 = vmul.f32 %v1516, %v2008
        %v2073 = vmul.f32 %v1518, %v2009
        %v2074 = vmul.f32 %v1520, %v2010
        %v2075 = vmul.f32 %v1522, %v2011
        %v2076 = vmul.f32 %v1524, %v2012
        %v2077 = vmul.f32 %v1526, %v2013
        %v2078 = vmul.f32 %v1528, %v2014
        %v2079 = vmul.f32 %v1530, %v2015
        %v2080 = vmul.f32 %v1532, %v2016
        %v2081 = vmul.f32 %v1534, %v2017
        %v2082 = vmul.f32 %v1536, %v2018
        %v2083 = vmul.f32 %v1538, %v2019
        %v2084 = vmul.f32 %v1540, %v2020
        %v2085 = vmul.f32 %v1542, %v2021
        %v2086 = vmul.f32 %v1544, %v2022
        %v2087 = vmul.f32 %v1546, %v2023
        %v2088 = vmul.f32 %v1548, %v2024
        %v2089 = vmul.f32 %v1550, %v2025
        %v2090 = vmul.f32 %v1552, %v2026
        %v2091 = vmul.f32 %v1554, %v2027
        %v2092 = vmul.f32 %v1556, %v2028
        %v2093 = vmul.f32 %v1558, %v2029
        %v2094 = vmul.f32 %v1560, %v2030
        %v2095 = vmul.f32 %v1562, %v2031
        %v2096 = vmul.f32 %v1564, %v2032
        %v2097 = vmul.f32 %v1566, %v2033
        %v2098 = vmul.f32 %v1568, %v2034
        %v2099 = vmul.f32 %v1570, %v2035
        %v2100 = vmul.f32 %v1572, %v2036
        %2101 = vst [vmem:[%s176] sm:$0xff] %v2037
        %2102 = vst [vmem:[%s176 + $0x8] sm:$0xff] %v2038
        %2103 = vst [vmem:[%s176 + $0x10] sm:$0xff] %v2039
        %2104 = vst [vmem:[%s176 + $0x18] sm:$0xff] %v2040
        %2105 = vst [vmem:[%s176 + $0x20] sm:$0xff] %v2041
        %2106 = vst [vmem:[%s176 + $0x28] sm:$0xff] %v2042
        %2107 = vst [vmem:[%s176 + $0x30] sm:$0xff] %v2043
        %2108 = vst [vmem:[%s176 + $0x38] sm:$0xff] %v2044
        %2109 = vst [vmem:[%s176 + $0x40] sm:$0xff] %v2045
        %2110 = vst [vmem:[%s176 + $0x48] sm:$0xff] %v2046
        %2111 = vst [vmem:[%s176 + $0x50] sm:$0xff] %v2047
        %2112 = vst [vmem:[%s176 + $0x58] sm:$0xff] %v2048
        %2113 = vst [vmem:[%s176 + $0x60] sm:$0xff] %v2049
        %2114 = vst [vmem:[%s176 + $0x68] sm:$0xff] %v2050
        %2115 = vst [vmem:[%s176 + $0x70] sm:$0xff] %v2051
        %2116 = vst [vmem:[%s176 + $0x78] sm:$0xff] %v2052
        %2117 = vst [vmem:[%s176 + $0x80] sm:$0xff] %v2053
        %2118 = vst [vmem:[%s176 + $0x88] sm:$0xff] %v2054
        %2119 = vst [vmem:[%s176 + $0x90] sm:$0xff] %v2055
        %2120 = vst [vmem:[%s176 + $0x98] sm:$0xff] %v2056
        %2121 = vst [vmem:[%s176 + $0xa0] sm:$0xff] %v2057
        %2122 = vst [vmem:[%s176 + $0xa8] sm:$0xff] %v2058
        %2123 = vst [vmem:[%s176 + $0xb0] sm:$0xff] %v2059
        %2124 = vst [vmem:[%s176 + $0xb8] sm:$0xff] %v2060
        %2125 = vst [vmem:[%s176 + $0xc0] sm:$0xff] %v2061
        %2126 = vst [vmem:[%s176 + $0xc8] sm:$0xff] %v2062
        %2127 = vst [vmem:[%s176 + $0xd0] sm:$0xff] %v2063
        %2128 = vst [vmem:[%s176 + $0xd8] sm:$0xff] %v2064
        %2129 = vst [vmem:[%s176 + $0xe0] sm:$0xff] %v2065
        %2130 = vst [vmem:[%s176 + $0xe8] sm:$0xff] %v2066
        %2131 = vst [vmem:[%s176 + $0xf0] sm:$0xff] %v2067
        %2132 = vst [vmem:[%s176 + $0xf8] sm:$0xff] %v2068
        %2133 = vst [vmem:[%s176 + $0x100] sm:$0xff] %v2069
        %2134 = vst [vmem:[%s176 + $0x108] sm:$0xff] %v2070
        %2135 = vst [vmem:[%s176 + $0x110] sm:$0xff] %v2071
        %2136 = vst [vmem:[%s176 + $0x118] sm:$0xff] %v2072
        %2137 = vst [vmem:[%s176 + $0x120] sm:$0xff] %v2073
        %2138 = vst [vmem:[%s176 + $0x128] sm:$0xff] %v2074
        %2139 = vst [vmem:[%s176 + $0x130] sm:$0xff] %v2075
        %2140 = vst [vmem:[%s176 + $0x138] sm:$0xff] %v2076
        %2141 = vst [vmem:[%s176 + $0x140] sm:$0xff] %v2077
        %2142 = vst [vmem:[%s176 + $0x148] sm:$0xff] %v2078
        %2143 = vst [vmem:[%s176 + $0x150] sm:$0xff] %v2079
        %2144 = vst [vmem:[%s176 + $0x158] sm:$0xff] %v2080
        %2145 = vst [vmem:[%s176 + $0x160] sm:$0xff] %v2081
        %2146 = vst [vmem:[%s176 + $0x168] sm:$0xff] %v2082
        %2147 = vst [vmem:[%s176 + $0x170] sm:$0xff] %v2083
        %2148 = vst [vmem:[%s176 + $0x178] sm:$0xff] %v2084
        %2149 = vst [vmem:[%s176 + $0x180] sm:$0xff] %v2085
        %2150 = vst [vmem:[%s176 + $0x188] sm:$0xff] %v2086
        %2151 = vst [vmem:[%s176 + $0x190] sm:$0xff] %v2087
        %2152 = vst [vmem:[%s176 + $0x198] sm:$0xff] %v2088
        %2153 = vst [vmem:[%s176 + $0x1a0] sm:$0xff] %v2089
        %2154 = vst [vmem:[%s176 + $0x1a8] sm:$0xff] %v2090
        %2155 = vst [vmem:[%s176 + $0x1b0] sm:$0xff] %v2091
        %2156 = vst [vmem:[%s176 + $0x1b8] sm:$0xff] %v2092
        %2157 = vst [vmem:[%s176 + $0x1c0] sm:$0xff] %v2093
        %2158 = vst [vmem:[%s176 + $0x1c8] sm:$0xff] %v2094
        %2159 = vst [vmem:[%s176 + $0x1d0] sm:$0xff] %v2095
        %2160 = vst [vmem:[%s176 + $0x1d8] sm:$0xff] %v2096
        %2161 = vst [vmem:[%s176 + $0x1e0] sm:$0xff] %v2097
        %2162 = vst [vmem:[%s176 + $0x1e8] sm:$0xff] %v2098
        %2163 = vst [vmem:[%s176 + $0x1f0] sm:$0xff] %v2099
        %2164 = vst [vmem:[%s176 + $0x1f8] sm:$0xff] %v2100
        %s2165 = sand.u32 %s75, 1
        %s2166 = scalar_lea.sflag [#allocation4], %s2165
        %s2167 = sand.u32 %s75, 1
        %s2168 = smul.addr %s2167, 512
        %s2169 = scalar_lea.vmem [#allocation7], %s2168
        // Predicated region
        $region37: #{tpu_custom_call.1} parent=27 // pred_check
          %p2170 = pneg %p85
        $region38: #{tpu_custom_call.1} parent=27 // pred_check_branch
          %2172 = sbr.rel (%p2170) target = $region40
        $region39: #{tpu_custom_call.1} parent=27 // pred_region
          %s2173 = smul.u32 16, %s20
          %s2175 = ssub.s32 8192, 8192
          %2176 = vsyncadd %s2166, %s2175
          %s2177 = smul.addr %s2173, 4
          %s2178 = smul.addr %s2177, 128
          %s2179 = scalar_lea.hbm %s2, %s2178
          %s2180 = sshll.u32 %s2169, 4
          %s2181 = int_to_ptr.vmem [resolvable:$true] %s2180
          %2186 = dma.vmem_to_hbm [thread:$0]  %s2181, 8192, %s2179, %s2166, 512, 512, 32
        $region40: #{tpu_custom_call.1} parent=27 // pred_fallthru
          _
      $region28: #{tpu_custom_call.1} parent=5 // pred_fallthru
        _
      %p2187 = scmp.le.s32.totalorder 2, %s15
      // Predicated region
      $region41: #{tpu_custom_call.1} parent=5 // pred_check
        %p2188 = pneg %p2187
      $region42: #{tpu_custom_call.1} parent=5 // pred_check_branch
        %2190 = sbr.rel (%p2188) target = $region44
      $region43: #{tpu_custom_call.1} parent=5 // pred_region
        %s2191 = ssub.s32 %s15, 2
        // Predicated region
        $region45: #{tpu_custom_call.1} parent=43 // pred_check
          %p2192 = pneg %p91
        $region46: #{tpu_custom_call.1} parent=43 // pred_check_branch
          %2194 = sbr.rel (%p2192) target = $region48
        $region47: #{tpu_custom_call.1} parent=43 // pred_region
          %s2195 = sand.u32 %s76, 1
          %s2196 = scalar_lea.sflag [#allocation4], %s2195
          %s2197 = sand.u32 %s76, 1
          %s2198 = smul.addr %s2197, 512
          %s2199 = scalar_lea.vmem [#allocation7], %s2198
          %2200 = dma.done %s2196, 8192
        $region48: #{tpu_custom_call.1} parent=43 // pred_fallthru
          _
      $region44: #{tpu_custom_call.1} parent=5 // pred_fallthru
        _
    $region6: #{tpu_custom_call.1} parent=1 // loop_footer
      %s19 = sadd.s32 1, %s15
    $region7: #{tpu_custom_call.1} parent=1 // loop_footer_branch
      %14 = sbr.rel target = $region3
    $region8: #{tpu_custom_call.1} parent=1 // loop_exit
      _
    %2201 = vsyncpa [#allocation3], 1
    %s2202 = scalar_lea.sflag [#allocation3], 1
    %2203 = vsyncpa %s2202, 1
    %2204 = vsyncpa [#allocation6], 1
    %2205 = vsyncpa [#allocation4], 1
    %s2206 = scalar_lea.sflag [#allocation4], 1
    %2207 = vsyncpa %s2206, 1

</llo_original>
